<compile_context>
chip_gen: v7x
topology: tpu7x:2x2x1
jax: 0.10.0
libtpu: 0.0.40
codegen_flags: <defaults>
</compile_context>

<pallas_src>
import functools

import jax
import jax.numpy as jnp
from jax import lax
from jax.experimental import pallas as pl
from jax.experimental.pallas import tpu as pltpu


def hardvfe_kernel(
    xt_ref,      # (N, C, TM) f32   raw points, transposed: voxels on lanes
    npts_ref,    # (1, TM)    i32   number of valid points per voxel
    coors_ref,   # (4, TM)    i32   voxel coords (batch, z, y, x), transposed
    a0_ref,      # (F0, 4)    f32   fused layer-0 weight (raw + cluster + center rows)
    wd_ref,      # (F0, 1)    f32   layer-0 distance-channel weight column
    wc4_ref,     # (F0, 4)    f32   cluster-mean weight (zero column for intensity)
    wcoor_ref,   # (F0, 4)    f32   voxel-center weight folded with coord scaling
    bcen_ref,    # (F0, 1)    f32   voxel-center weight folded with coord offsets
    s0_ref,      # (F0, 1)    f32   layer-0 folded BN scale  = gamma / sqrt(var+eps)
    b0_ref,      # (F0, 1)    f32   layer-0 folded BN shift  = beta - mean*scale
    a1a_ref,     # (F1, F0)   f32   layer-1 weight acting on per-point features
    a1b_ref,     # (F1, F0)   f32   layer-1 weight acting on the per-voxel max
    s1_ref,      # (F1, 1)    f32
    b1_ref,      # (F1, 1)    f32
    out_ref,     # (F1, TM)   f32   voxel features (transposed, lane-dense store)
    y0_scr,      # (N, F0, TM) f32  VMEM scratch: layer-0 per-point activations
):
    f32 = jnp.float32
    n_pts, _, tm = xt_ref.shape
    f0 = a0_ref.shape[0]
    f1 = a1a_ref.shape[0]

    npts = npts_ref[...]                                    # (1, TM) int32
    # 1/num_points on the EUP slot, off the VALU critical path.
    inv_n = pl.reciprocal(npts.astype(f32), approx=True)    # (1, TM)
    coors_f = coors_ref[...].astype(f32)                    # (4, TM)

    # ---- per-voxel part of the fused layer-0 linear:
    #      pv = w_c^T @ cluster_mean + w_v^T @ voxel_center  (subtracted below) ----
    def sum_body(n, acc):
        return acc + xt_ref[n]
    sum4 = lax.fori_loop(1, n_pts, sum_body, xt_ref[0])     # (4, TM); pad slots are 0
    mean4 = sum4 * inv_n                                    # (4, TM)
    pv = (jnp.dot(wc4_ref[...], mean4, preferred_element_type=f32)
          + jnp.dot(wcoor_ref[...], coors_f, preferred_element_type=f32)
          + bcen_ref[...])                                  # (F0, TM)

    a0 = a0_ref[...]
    wd = wd_ref[...]
    s0 = s0_ref[...]
    b0 = b0_ref[...]

    # ---- VFE layer 0: fused Linear(no bias) -> eval-BN affine -> ReLU,
    #      running max over point slots.  Everything is a lane-dense (F0, TM) tile.
    #      Mask applied pre-Linear in torch == post-Linear here (no bias, mask in {0,1}).
    def l0_body(n, agg0):
        x_n = xt_ref[n]                                     # (4, TM)
        x0 = x_n[0:1, :]
        x1 = x_n[1:2, :]
        x2 = x_n[2:3, :]
        dist = jnp.sqrt(x0 * x0 + x1 * x1 + x2 * x2)        # (1, TM)
        lin = (jnp.dot(a0, x_n, preferred_element_type=f32)
               + wd * dist - pv)                            # (F0, TM)
        mask = (npts > n).astype(f32)                       # (1, TM)
        y0 = jnp.maximum((lin * mask) * s0 + b0, 0.0)       # (F0, TM)
        y0_scr[n] = y0
        return jnp.maximum(agg0, y0)

    # ReLU output is >= 0, so zero-init reproduces torch's max exactly.
    agg0 = lax.fori_loop(0, n_pts, l0_body, jnp.zeros((f0, tm), f32))

    # ---- VFE layer 1 on cat([pointwise, repeat(max)]) as a block matmul:
    #      cat([y0, agg0]) @ W1  ==  W1a^T @ y0  +  W1b^T @ agg0 ----
    a1a = a1a_ref[...]
    s1 = s1_ref[...]
    b1 = b1_ref[...]
    vox1 = jnp.dot(a1b_ref[...], agg0, preferred_element_type=f32)   # (F1, TM)

    def l1_body(n, out):
        y1 = jnp.dot(a1a, y0_scr[n], preferred_element_type=f32) + vox1
        y1 = jnp.maximum(y1 * s1 + b1, 0.0)                 # (F1, TM)
        return jnp.maximum(out, y1)

    out_ref[...] = lax.fori_loop(0, n_pts, l1_body, jnp.zeros((f1, tm), f32))


def _round_up(x, k):
    return (x + k - 1) // k * k


def _prepare_weights(params, voxel_size, point_cloud_range):
    """Fold the concat-then-Linear of layer 0 and the coord->center affine into
    a few small dense matrices (all exact f32 algebra; Linear has no bias)."""
    (w0, s0, b0), (w1, s1, b1) = params
    f0 = w0.shape[1]
    f1 = w1.shape[1]
    vx, vy, vz = voxel_size
    x_off = vx / 2.0 + point_cloud_range[0]
    y_off = vy / 2.0 + point_cloud_range[1]
    z_off = vz / 2.0 + point_cloud_range[2]

    w_f = w0[0:4]      # raw (x, y, z, r) rows
    w_c = w0[4:7]      # cluster-offset rows
    w_v = w0[7:10]     # voxel-center-offset rows
    w_d = w0[10:11]    # distance row

    # one fused per-point matmul instead of three (feedback: collapse layer-0 dots)
    a0 = w_f.at[0:3].add(w_c + w_v).T                                   # (F0, 4)
    wdT = w_d.T                                                         # (F0, 1)
    # cluster-mean term; zero column so the (4, TM) mean (incl. intensity) is used as-is
    wc4 = jnp.concatenate([w_c, jnp.zeros((1, f0), w_c.dtype)], axis=0).T   # (F0, 4)
    # voxel center = S @ coors + o  folded into the weights
    S = jnp.zeros((3, 4), jnp.float32)
    S = S.at[0, 3].set(vx).at[1, 2].set(vy).at[2, 1].set(vz)
    o = jnp.array([x_off, y_off, z_off], jnp.float32)
    wcoor = w_v.T @ S                                                   # (F0, 4)
    bcen = (w_v.T @ o).reshape(f0, 1)                                   # (F0, 1)

    a1a = w1[0:f0].T                                                    # (F1, F0)
    a1b = w1[f0:2 * f0].T                                               # (F1, F0)

    return (a0, wdT, wc4, wcoor, bcen,
            s0.reshape(f0, 1), b0.reshape(f0, 1),
            a1a, a1b, s1.reshape(f1, 1), b1.reshape(f1, 1))


def hardvfe_forward(features, num_points, coors, params, *,
                    voxel_size=(0.2, 0.2, 4.0),
                    point_cloud_range=(0.0, -40.0, -3.0, 70.4, 40.0, 1.0),
                    tile_m=1024):
    m, n_pts, c = features.shape
    assert c == 4, "expected raw (x, y, z, intensity) point features"
    f0 = params[0][0].shape[1]
    f1 = params[1][0].shape[1]

    # ---- tile choice: lane-dense multiple of 128 voxels; keep >= 2 grid steps
    # when there is enough work so the 'parallel' axis shards across v7x's 2 TCs.
    m128 = _round_up(m, 128)
    tm = max(128, min(tile_m, m128) // 128 * 128)
    if m128 >= 256:
        tm = min(tm, _round_up(m128 // 2, 128))
    m_pad = _round_up(m, tm)

    feats = features.astype(jnp.float32)
    npts = num_points.astype(jnp.int32)
    co = coors.astype(jnp.int32)
    pad = m_pad - m
    if pad:
        feats = jnp.concatenate([feats, jnp.zeros((pad, n_pts, c), jnp.float32)], 0)
        npts = jnp.concatenate([npts, jnp.ones((pad,), jnp.int32)], 0)   # avoid 1/0
        co = jnp.concatenate([co, jnp.zeros((pad, co.shape[1]), jnp.int32)], 0)

    # ---- transpose once in XLA so the kernel sees a lane-dense layout
    # (voxels on lanes, channels/point-slots on sublanes / leading dim) ----
    xt = jnp.transpose(feats, (1, 2, 0))                    # (N, C, M)
    npts_t = npts.reshape(1, m_pad)                         # (1, M)
    coors_t = jnp.transpose(co, (1, 0))                     # (4, M)

    (a0, wdT, wc4, wcoor, bcen, s0, b0,
     a1a, a1b, s1, b1) = _prepare_weights(params, voxel_size, point_cloud_range)

    const = lambda i: (0, 0)
    out_t = pl.pallas_call(
        hardvfe_kernel,
        out_shape=jax.ShapeDtypeStruct((f1, m_pad), jnp.float32),
        grid_spec=pltpu.PrefetchScalarGridSpec(
            num_scalar_prefetch=0,
            grid=(m_pad // tm,),
            in_specs=[
                pl.BlockSpec((n_pts, c, tm), lambda i: (0, 0, i)),   # features (transposed)
                pl.BlockSpec((1, tm), lambda i: (0, i)),             # num_points
                pl.BlockSpec((4, tm), lambda i: (0, i)),             # coors (transposed)
                pl.BlockSpec((f0, 4), const),                        # fused layer-0 weight
                pl.BlockSpec((f0, 1), const),                        # distance weight col
                pl.BlockSpec((f0, 4), const),                        # cluster-mean weight
                pl.BlockSpec((f0, 4), const),                        # voxel-center weight
                pl.BlockSpec((f0, 1), const),                        # voxel-center offset
                pl.BlockSpec((f0, 1), const),                        # BN0 scale
                pl.BlockSpec((f0, 1), const),                        # BN0 shift
                pl.BlockSpec((f1, f0), const),                       # W1 (pointwise part)
                pl.BlockSpec((f1, f0), const),                       # W1 (max-repeat part)
                pl.BlockSpec((f1, 1), const),                        # BN1 scale
                pl.BlockSpec((f1, 1), const),                        # BN1 shift
            ],
            out_specs=pl.BlockSpec((f1, tm), lambda i: (0, i)),      # lane-dense store
            scratch_shapes=[pltpu.VMEM((n_pts, f0, tm), jnp.float32)],
        ),
        compiler_params=pltpu.CompilerParams(
            dimension_semantics=("parallel",),
            # ~6 MiB/step at tile_m=1024; 48 MiB leaves headroom on every
            # generation (v7x has only 64 MiB physical VMEM).
            vmem_limit_bytes=48 * 1024 * 1024,
        ),
    )(xt, npts_t, coors_t, a0, wdT, wc4, wcoor, bcen, s0, b0, a1a, a1b, s1, b1)

    # TODO(synk): @force_fp32(out_fp16=True) would cast the result to fp16; kept fp32 here.
    return jnp.transpose(out_t[:, :m], (1, 0))              # (M, F1)


def make_hardvfe_params(key, in_channels=4, feat_channels=(16, 32),
                        with_cluster_center=True, with_voxel_center=True,
                        with_distance=True, bn_eps=1e-3):
    """Deterministic synthetic parameters (Linear weight in (in,out) layout + folded
    eval-mode BN).  Matches HardVFE's channel bookkeeping (cat_max doubles layer>0)."""
    c = in_channels + 3 * with_cluster_center + 3 * with_voxel_center + 1 * with_distance
    chans = [c] + list(feat_channels)
    params = []
    for i in range(len(chans) - 1):
        cin = chans[i] * (2 if i > 0 else 1)
        cout = chans[i + 1]
        key, k1, k2, k3, k4, k5 = jax.random.split(key, 6)
        w = 0.1 * jax.random.normal(k1, (cin, cout), jnp.float32)
        gamma = 1.0 + 0.1 * jax.random.normal(k2, (cout,), jnp.float32)
        beta = 0.1 * jax.random.normal(k3, (cout,), jnp.float32)
        rmean = 0.1 * jax.random.normal(k4, (cout,), jnp.float32)
        rvar = jnp.abs(1.0 + 0.1 * jax.random.normal(k5, (cout,), jnp.float32))
        scale = gamma / jnp.sqrt(rvar + bn_eps)
        shift = beta - rmean * scale
        params.append((w, scale.reshape(1, cout), shift.reshape(1, cout)))
    return params
    # TODO(synk): BatchNorm1d is implemented in eval mode (running stats folded into a
    # per-channel affine); training-mode batch statistics would need a cross-tile reduction.


def hardvfe_reference(features, num_points, coors, params, *,
                      voxel_size, point_cloud_range):
    """Pure-JAX reference mirroring the torch forward (for a tolerance check)."""
    (w0, s0, b0), (w1, s1, b1) = params
    vx, vy, vz = voxel_size
    xo = vx / 2.0 + point_cloud_range[0]
    yo = vy / 2.0 + point_cloud_range[1]
    zo = vz / 2.0 + point_cloud_range[2]
    f = features.astype(jnp.float32)
    m, n, _ = f.shape
    xyz = f[:, :, :3]
    npts = num_points.astype(jnp.float32).reshape(-1, 1, 1)
    mean = jnp.sum(xyz, axis=1, keepdims=True) / npts
    f_cluster = xyz - mean
    cf = coors.astype(jnp.float32)
    cen = jnp.stack([cf[:, 3] * vx + xo, cf[:, 2] * vy + yo, cf[:, 1] * vz + zo],
                    axis=-1)[:, None, :]
    f_center = xyz - cen
    dist = jnp.sqrt(jnp.sum(xyz * xyz, axis=-1, keepdims=True))
    vf = jnp.concatenate([f, f_cluster, f_center, dist], axis=-1)
    mask = (jnp.arange(n)[None, :] < num_points[:, None]).astype(jnp.float32)[:, :, None]
    vf = vf * mask
    x = jnp.einsum('mni,io->mno', vf, w0, precision=lax.Precision.HIGHEST)
    x = jnp.maximum(x * s0[None] + b0[None], 0.0)
    agg = jnp.max(x, axis=1, keepdims=True)
    x = jnp.concatenate([x, jnp.broadcast_to(agg, x.shape)], axis=-1)
    x = jnp.einsum('mni,io->mno', x, w1, precision=lax.Precision.HIGHEST)
    x = jnp.maximum(x * s1[None] + b1[None], 0.0)
    return jnp.max(x, axis=1)


if __name__ == "__main__":
    key = jax.random.PRNGKey(0)
    M, N, C_in = 2048, 32, 4          # voxels, max points per voxel, raw channels
    voxel_size = (0.2, 0.2, 4.0)
    pc_range = (0.0, -40.0, -3.0, 70.4, 40.0, 1.0)

    k_pts, k_np, k_param = jax.random.split(key, 3)

    # points uniformly inside the point-cloud range, intensity in [0, 1]
    low = jnp.array([pc_range[0], pc_range[1], pc_range[2], 0.0], jnp.float32)
    high = jnp.array([pc_range[3], pc_range[4], pc_range[5], 1.0], jnp.float32)
    features = jax.random.uniform(k_pts, (M, N, C_in), jnp.float32) * (high - low) + low
    num_points = jax.random.randint(k_np, (M,), 1, N + 1, jnp.int32)
    # zero the padding slots, like hard voxelization would
    valid = jnp.arange(N)[None, :] < num_points[:, None]
    features = features * valid[:, :, None].astype(jnp.float32)

    # voxel coords (batch, z, y, x) derived from the first (always valid) point
    p0 = features[:, 0, :]
    cx = jnp.floor((p0[:, 0] - pc_range[0]) / voxel_size[0]).astype(jnp.int32)
    cy = jnp.floor((p0[:, 1] - pc_range[1]) / voxel_size[1]).astype(jnp.int32)
    cz = jnp.floor((p0[:, 2] - pc_range[2]) / voxel_size[2]).astype(jnp.int32)
    batch = (jnp.arange(M) // (M // 2)).astype(jnp.int32)
    coors = jnp.stack([batch, cz, cy, cx], axis=1)

    params = make_hardvfe_params(k_param, in_channels=C_in, feat_channels=(16, 32))

    run = jax.jit(functools.partial(hardvfe_forward, voxel_size=voxel_size,
                                    point_cloud_range=pc_range, tile_m=1024))
    out = jax.block_until_ready(run(features, num_points, coors, params))
    assert out.shape == (M, 32), out.shape
    assert bool(jnp.all(jnp.isfinite(out)))

    # tolerance check vs. a pure-JAX reference (approx reciprocal + MXU rounding only)
    ref = hardvfe_reference(features, num_points, coors, params,
                            voxel_size=voxel_size, point_cloud_range=pc_range)
    rel_err = float(jnp.max(jnp.abs(out - ref)) / (jnp.max(jnp.abs(ref)) + 1e-9))
    assert rel_err < 2e-2, f"relative error too large: {rel_err}"
    print("KERNEL_OK")
</pallas_src>

<mosaic_0001>
module attributes {stable_mosaic.version = 11 : i64} {
  func.func @hardvfe_kernel(%arg0: i32, %arg1: memref<32x4x1024xf32, #tpu.memory_space<vmem>>, %arg2: memref<1x1024xi32, #tpu.memory_space<vmem>>, %arg3: memref<4x1024xi32, #tpu.memory_space<vmem>>, %arg4: memref<16x4xf32, #tpu.memory_space<vmem>>, %arg5: memref<16x1xf32, #tpu.memory_space<vmem>>, %arg6: memref<16x4xf32, #tpu.memory_space<vmem>>, %arg7: memref<16x4xf32, #tpu.memory_space<vmem>>, %arg8: memref<16x1xf32, #tpu.memory_space<vmem>>, %arg9: memref<16x1xf32, #tpu.memory_space<vmem>>, %arg10: memref<16x1xf32, #tpu.memory_space<vmem>>, %arg11: memref<32x16xf32, #tpu.memory_space<vmem>>, %arg12: memref<32x16xf32, #tpu.memory_space<vmem>>, %arg13: memref<32x1xf32, #tpu.memory_space<vmem>>, %arg14: memref<32x1xf32, #tpu.memory_space<vmem>>, %arg15: memref<32x1024xf32, #tpu.memory_space<vmem>>, %arg16: memref<32x16x1024xf32, #tpu.memory_space<vmem>>) attributes {dimension_semantics = [#tpu.dimension_semantics<parallel>], iteration_bounds = array<i64: 2>, scalar_prefetch = 0 : i64, scratch_operands = 1 : i64, tpu.core_type = #tpu.core_type<tc>, window_params = [{transform_indices = @transform_0, window_bounds = array<i64: 32, 4, 1024>}, {transform_indices = @transform_1, window_bounds = array<i64: 1, 1024>}, {transform_indices = @transform_2, window_bounds = array<i64: 4, 1024>}, {pipeline_mode = #tpu.pipeline_mode<synchronous>, transform_indices = @transform_3, window_bounds = array<i64: 16, 4>}, {pipeline_mode = #tpu.pipeline_mode<synchronous>, transform_indices = @transform_4, window_bounds = array<i64: 16, 1>}, {pipeline_mode = #tpu.pipeline_mode<synchronous>, transform_indices = @transform_5, window_bounds = array<i64: 16, 4>}, {pipeline_mode = #tpu.pipeline_mode<synchronous>, transform_indices = @transform_6, window_bounds = array<i64: 16, 4>}, {pipeline_mode = #tpu.pipeline_mode<synchronous>, transform_indices = @transform_7, window_bounds = array<i64: 16, 1>}, {pipeline_mode = #tpu.pipeline_mode<synchronous>, transform_indices = @transform_8, window_bounds = array<i64: 16, 1>}, {pipeline_mode = #tpu.pipeline_mode<synchronous>, transform_indices = @transform_9, window_bounds = array<i64: 16, 1>}, {pipeline_mode = #tpu.pipeline_mode<synchronous>, transform_indices = @transform_10, window_bounds = array<i64: 32, 16>}, {pipeline_mode = #tpu.pipeline_mode<synchronous>, transform_indices = @transform_11, window_bounds = array<i64: 32, 16>}, {pipeline_mode = #tpu.pipeline_mode<synchronous>, transform_indices = @transform_12, window_bounds = array<i64: 32, 1>}, {pipeline_mode = #tpu.pipeline_mode<synchronous>, transform_indices = @transform_13, window_bounds = array<i64: 32, 1>}, {transform_indices = @transform_14, window_bounds = array<i64: 32, 1024>}]} {
    %c0 = arith.constant 0 : index
    %c0_0 = arith.constant 0 : index
    %0 = vector.load %arg2[%c0, %c0_0] : memref<1x1024xi32, #tpu.memory_space<vmem>>, vector<1x1024xi32>
    %1 = arith.sitofp %0 : vector<1x1024xi32> to vector<1x1024xf32>
    %2 = tpu.reciprocal %1 {approx = true} : vector<1x1024xf32> -> vector<1x1024xf32>
    %c0_1 = arith.constant 0 : index
    %c0_2 = arith.constant 0 : index
    %3 = vector.load %arg3[%c0_1, %c0_2] : memref<4x1024xi32, #tpu.memory_space<vmem>>, vector<4x1024xi32>
    %4 = arith.sitofp %3 : vector<4x1024xi32> to vector<4x1024xf32>
    %c0_3 = arith.constant 0 : index
    %c0_4 = arith.constant 0 : index
    %c0_5 = arith.constant 0 : index
    %5 = vector.load %arg1[%c0_3, %c0_4, %c0_5] : memref<32x4x1024xf32, #tpu.memory_space<vmem>>, vector<1x4x1024xf32>
    %6 = vector.shape_cast %5 : vector<1x4x1024xf32> to vector<4x1024xf32>
    %c1_i32 = arith.constant 1 : i32
    %c31_i32 = arith.constant 31 : i32
    %7 = arith.addi %c1_i32, %c31_i32 : i32
    %c1_i32_6 = arith.constant 1 : i32
    %8 = scf.for %arg17 = %c1_i32 to %7 step %c1_i32_6 iter_args(%arg18 = %6) -> (vector<4x1024xf32>)  : i32 {
      %35 = arith.index_cast %arg17 : i32 to index
      %c0_42 = arith.constant 0 : index
      %c0_43 = arith.constant 0 : index
      %36 = vector.load %arg1[%35, %c0_42, %c0_43] : memref<32x4x1024xf32, #tpu.memory_space<vmem>>, vector<1x4x1024xf32>
      %37 = vector.shape_cast %36 : vector<1x4x1024xf32> to vector<4x1024xf32>
      %38 = arith.addf %arg18, %37 : vector<4x1024xf32>
      scf.yield %38 : vector<4x1024xf32>
    }
    %c31_i32_7 = arith.constant 31 : i32
    %9 = vector.broadcast %2 : vector<1x1024xf32> to vector<4x1024xf32>
    %10 = arith.mulf %8, %9 : vector<4x1024xf32>
    %c0_8 = arith.constant 0 : index
    %c0_9 = arith.constant 0 : index
    %11 = vector.load %arg6[%c0_8, %c0_9] : memref<16x4xf32, #tpu.memory_space<vmem>>, vector<16x4xf32>
    %cst = arith.constant dense<0.000000e+00> : vector<16x1024xf32>
    %12 = tpu.matmul %11, %10, %cst {dimension_numbers = #tpu.dot_dimension_numbers<[1], [0], [0], [1], [0, 0, 1, 1], [], []>} : vector<16x4xf32>, vector<4x1024xf32>, vector<16x1024xf32> -> vector<16x1024xf32>
    %c0_10 = arith.constant 0 : index
    %c0_11 = arith.constant 0 : index
    %13 = vector.load %arg7[%c0_10, %c0_11] : memref<16x4xf32, #tpu.memory_space<vmem>>, vector<16x4xf32>
    %cst_12 = arith.constant dense<0.000000e+00> : vector<16x1024xf32>
    %14 = tpu.matmul %13, %4, %cst_12 {dimension_numbers = #tpu.dot_dimension_numbers<[1], [0], [0], [1], [0, 0, 1, 1], [], []>} : vector<16x4xf32>, vector<4x1024xf32>, vector<16x1024xf32> -> vector<16x1024xf32>
    %15 = arith.addf %12, %14 : vector<16x1024xf32>
    %c0_13 = arith.constant 0 : index
    %c0_14 = arith.constant 0 : index
    %16 = vector.load %arg8[%c0_13, %c0_14] : memref<16x1xf32, #tpu.memory_space<vmem>>, vector<16x1xf32>
    %17 = vector.broadcast %16 : vector<16x1xf32> to vector<16x1024xf32>
    %18 = arith.addf %15, %17 : vector<16x1024xf32>
    %c0_15 = arith.constant 0 : index
    %c0_16 = arith.constant 0 : index
    %19 = vector.load %arg4[%c0_15, %c0_16] : memref<16x4xf32, #tpu.memory_space<vmem>>, vector<16x4xf32>
    %c0_17 = arith.constant 0 : index
    %c0_18 = arith.constant 0 : index
    %20 = vector.load %arg5[%c0_17, %c0_18] : memref<16x1xf32, #tpu.memory_space<vmem>>, vector<16x1xf32>
    %c0_19 = arith.constant 0 : index
    %c0_20 = arith.constant 0 : index
    %21 = vector.load %arg9[%c0_19, %c0_20] : memref<16x1xf32, #tpu.memory_space<vmem>>, vector<16x1xf32>
    %c0_21 = arith.constant 0 : index
    %c0_22 = arith.constant 0 : index
    %22 = vector.load %arg10[%c0_21, %c0_22] : memref<16x1xf32, #tpu.memory_space<vmem>>, vector<16x1xf32>
    %cst_23 = arith.constant 0.000000e+00 : f32
    %23 = vector.broadcast %cst_23 : f32 to vector<16x1024xf32>
    %c0_i32 = arith.constant 0 : i32
    %c32_i32 = arith.constant 32 : i32
    %24 = arith.addi %c0_i32, %c32_i32 : i32
    %c1_i32_24 = arith.constant 1 : i32
    %25 = scf.for %arg17 = %c0_i32 to %24 step %c1_i32_24 iter_args(%arg18 = %23) -> (vector<16x1024xf32>)  : i32 {
      %35 = arith.index_cast %arg17 : i32 to index
      %c0_42 = arith.constant 0 : index
      %c0_43 = arith.constant 0 : index
      %36 = vector.load %arg1[%35, %c0_42, %c0_43] : memref<32x4x1024xf32, #tpu.memory_space<vmem>>, vector<1x4x1024xf32>
      %37 = vector.shape_cast %36 : vector<1x4x1024xf32> to vector<4x1024xf32>
      %38 = vector.extract_strided_slice %37 {offsets = [0, 0], sizes = [1, 1024], strides = [1, 1]} : vector<4x1024xf32> to vector<1x1024xf32>
      %39 = vector.extract_strided_slice %37 {offsets = [1, 0], sizes = [1, 1024], strides = [1, 1]} : vector<4x1024xf32> to vector<1x1024xf32>
      %40 = vector.extract_strided_slice %37 {offsets = [2, 0], sizes = [1, 1024], strides = [1, 1]} : vector<4x1024xf32> to vector<1x1024xf32>
      %41 = arith.mulf %38, %38 : vector<1x1024xf32>
      %42 = arith.mulf %39, %39 : vector<1x1024xf32>
      %43 = arith.addf %41, %42 : vector<1x1024xf32>
      %44 = arith.mulf %40, %40 : vector<1x1024xf32>
      %45 = arith.addf %43, %44 : vector<1x1024xf32>
      %46 = math.sqrt %45 : vector<1x1024xf32>
      %cst_44 = arith.constant dense<0.000000e+00> : vector<16x1024xf32>
      %47 = tpu.matmul %19, %37, %cst_44 {dimension_numbers = #tpu.dot_dimension_numbers<[1], [0], [0], [1], [0, 0, 1, 1], [], []>} : vector<16x4xf32>, vector<4x1024xf32>, vector<16x1024xf32> -> vector<16x1024xf32>
      %48 = vector.broadcast %20 : vector<16x1xf32> to vector<16x1024xf32>
      %49 = vector.broadcast %46 : vector<1x1024xf32> to vector<16x1024xf32>
      %50 = arith.mulf %48, %49 : vector<16x1024xf32>
      %51 = arith.addf %47, %50 : vector<16x1024xf32>
      %52 = arith.subf %51, %18 : vector<16x1024xf32>
      %53 = vector.broadcast %arg17 : i32 to vector<1x1024xi32>
      %54 = arith.cmpi sgt, %0, %53 : vector<1x1024xi32>
      %55 = arith.extui %54 : vector<1x1024xi1> to vector<1x1024xi32>
      %56 = arith.sitofp %55 : vector<1x1024xi32> to vector<1x1024xf32>
      %57 = vector.broadcast %56 : vector<1x1024xf32> to vector<16x1024xf32>
      %58 = arith.mulf %52, %57 : vector<16x1024xf32>
      %59 = vector.broadcast %21 : vector<16x1xf32> to vector<16x1024xf32>
      %60 = arith.mulf %58, %59 : vector<16x1024xf32>
      %61 = vector.broadcast %22 : vector<16x1xf32> to vector<16x1024xf32>
      %62 = arith.addf %60, %61 : vector<16x1024xf32>
      %cst_45 = arith.constant 0.000000e+00 : f32
      %63 = vector.broadcast %cst_45 : f32 to vector<16x1024xf32>
      %64 = arith.maximumf %62, %63 : vector<16x1024xf32>
      %65 = arith.index_cast %arg17 : i32 to index
      %c0_46 = arith.constant 0 : index
      %c0_47 = arith.constant 0 : index
      %66 = vector.load %arg16[%65, %c0_46, %c0_47] : memref<32x16x1024xf32, #tpu.memory_space<vmem>>, vector<1x16x1024xf32>
      %67 = vector.shape_cast %66 : vector<1x16x1024xf32> to vector<16x1024xf32>
      %68 = vector.shape_cast %64 : vector<16x1024xf32> to vector<1x16x1024xf32>
      tpu.vector_store %arg16[%65, %c0_46, %c0_47], %68 {strides = array<i32>} : memref<32x16x1024xf32, #tpu.memory_space<vmem>>, vector<1x16x1024xf32>,
      %69 = arith.maximumf %arg18, %64 : vector<16x1024xf32>
      scf.yield %69 : vector<16x1024xf32>
    }
    %c32_i32_25 = arith.constant 32 : i32
    %c0_26 = arith.constant 0 : index
    %c0_27 = arith.constant 0 : index
    %26 = vector.load %arg11[%c0_26, %c0_27] : memref<32x16xf32, #tpu.memory_space<vmem>>, vector<32x16xf32>
    %c0_28 = arith.constant 0 : index
    %c0_29 = arith.constant 0 : index
    %27 = vector.load %arg13[%c0_28, %c0_29] : memref<32x1xf32, #tpu.memory_space<vmem>>, vector<32x1xf32>
    %c0_30 = arith.constant 0 : index
    %c0_31 = arith.constant 0 : index
    %28 = vector.load %arg14[%c0_30, %c0_31] : memref<32x1xf32, #tpu.memory_space<vmem>>, vector<32x1xf32>
    %c0_32 = arith.constant 0 : index
    %c0_33 = arith.constant 0 : index
    %29 = vector.load %arg12[%c0_32, %c0_33] : memref<32x16xf32, #tpu.memory_space<vmem>>, vector<32x16xf32>
    %cst_34 = arith.constant dense<0.000000e+00> : vector<32x1024xf32>
    %30 = tpu.matmul %29, %25, %cst_34 {dimension_numbers = #tpu.dot_dimension_numbers<[1], [0], [0], [1], [0, 0, 1, 1], [], []>} : vector<32x16xf32>, vector<16x1024xf32>, vector<32x1024xf32> -> vector<32x1024xf32>
    %cst_35 = arith.constant 0.000000e+00 : f32
    %31 = vector.broadcast %cst_35 : f32 to vector<32x1024xf32>
    %c0_i32_36 = arith.constant 0 : i32
    %c32_i32_37 = arith.constant 32 : i32
    %32 = arith.addi %c0_i32_36, %c32_i32_37 : i32
    %c1_i32_38 = arith.constant 1 : i32
    %33 = scf.for %arg17 = %c0_i32_36 to %32 step %c1_i32_38 iter_args(%arg18 = %31) -> (vector<32x1024xf32>)  : i32 {
      %35 = arith.index_cast %arg17 : i32 to index
      %c0_42 = arith.constant 0 : index
      %c0_43 = arith.constant 0 : index
      %36 = vector.load %arg16[%35, %c0_42, %c0_43] : memref<32x16x1024xf32, #tpu.memory_space<vmem>>, vector<1x16x1024xf32>
      %37 = vector.shape_cast %36 : vector<1x16x1024xf32> to vector<16x1024xf32>
      %cst_44 = arith.constant dense<0.000000e+00> : vector<32x1024xf32>
      %38 = tpu.matmul %26, %37, %cst_44 {dimension_numbers = #tpu.dot_dimension_numbers<[1], [0], [0], [1], [0, 0, 1, 1], [], []>} : vector<32x16xf32>, vector<16x1024xf32>, vector<32x1024xf32> -> vector<32x1024xf32>
      %39 = arith.addf %38, %30 : vector<32x1024xf32>
      %40 = vector.broadcast %27 : vector<32x1xf32> to vector<32x1024xf32>
      %41 = arith.mulf %39, %40 : vector<32x1024xf32>
      %42 = vector.broadcast %28 : vector<32x1xf32> to vector<32x1024xf32>
      %43 = arith.addf %41, %42 : vector<32x1024xf32>
      %cst_45 = arith.constant 0.000000e+00 : f32
      %44 = vector.broadcast %cst_45 : f32 to vector<32x1024xf32>
      %45 = arith.maximumf %43, %44 : vector<32x1024xf32>
      %46 = arith.maximumf %arg18, %45 : vector<32x1024xf32>
      scf.yield %46 : vector<32x1024xf32>
    }
    %c32_i32_39 = arith.constant 32 : i32
    %c0_40 = arith.constant 0 : index
    %c0_41 = arith.constant 0 : index
    %34 = vector.load %arg15[%c0_40, %c0_41] : memref<32x1024xf32, #tpu.memory_space<vmem>>, vector<32x1024xf32>
    tpu.vector_store %arg15[%c0_40, %c0_41], %33 {strides = array<i32>} : memref<32x1024xf32, #tpu.memory_space<vmem>>, vector<32x1024xf32>,
    return
  }
  func.func @transform_0(%arg0: i32) -> (i32, i32, i32) {
    %c0_i32 = arith.constant 0 : i32
    %c0_i32_0 = arith.constant 0 : i32
    %c0_i32_1 = arith.constant 0 : i32
    return %c0_i32, %c0_i32_0, %arg0 : i32, i32, i32
  }
  func.func @transform_1(%arg0: i32) -> (i32, i32) {
    %c0_i32 = arith.constant 0 : i32
    %c0_i32_0 = arith.constant 0 : i32
    return %c0_i32, %arg0 : i32, i32
  }
  func.func @transform_2(%arg0: i32) -> (i32, i32) {
    %c0_i32 = arith.constant 0 : i32
    %c0_i32_0 = arith.constant 0 : i32
    return %c0_i32, %arg0 : i32, i32
  }
  func.func @transform_3(%arg0: i32) -> (i32, i32) {
    %c0_i32 = arith.constant 0 : i32
    %c0_i32_0 = arith.constant 0 : i32
    %c0_i32_1 = arith.constant 0 : i32
    return %c0_i32, %c0_i32_0 : i32, i32
  }
  func.func @transform_4(%arg0: i32) -> (i32, i32) {
    %c0_i32 = arith.constant 0 : i32
    %c0_i32_0 = arith.constant 0 : i32
    %c0_i32_1 = arith.constant 0 : i32
    return %c0_i32, %c0_i32_0 : i32, i32
  }
  func.func @transform_5(%arg0: i32) -> (i32, i32) {
    %c0_i32 = arith.constant 0 : i32
    %c0_i32_0 = arith.constant 0 : i32
    %c0_i32_1 = arith.constant 0 : i32
    return %c0_i32, %c0_i32_0 : i32, i32
  }
  func.func @transform_6(%arg0: i32) -> (i32, i32) {
    %c0_i32 = arith.constant 0 : i32
    %c0_i32_0 = arith.constant 0 : i32
    %c0_i32_1 = arith.constant 0 : i32
    return %c0_i32, %c0_i32_0 : i32, i32
  }
  func.func @transform_7(%arg0: i32) -> (i32, i32) {
    %c0_i32 = arith.constant 0 : i32
    %c0_i32_0 = arith.constant 0 : i32
    %c0_i32_1 = arith.constant 0 : i32
    return %c0_i32, %c0_i32_0 : i32, i32
  }
  func.func @transform_8(%arg0: i32) -> (i32, i32) {
    %c0_i32 = arith.constant 0 : i32
    %c0_i32_0 = arith.constant 0 : i32
    %c0_i32_1 = arith.constant 0 : i32
    return %c0_i32, %c0_i32_0 : i32, i32
  }
  func.func @transform_9(%arg0: i32) -> (i32, i32) {
    %c0_i32 = arith.constant 0 : i32
    %c0_i32_0 = arith.constant 0 : i32
    %c0_i32_1 = arith.constant 0 : i32
    return %c0_i32, %c0_i32_0 : i32, i32
  }
  func.func @transform_10(%arg0: i32) -> (i32, i32) {
    %c0_i32 = arith.constant 0 : i32
    %c0_i32_0 = arith.constant 0 : i32
    %c0_i32_1 = arith.constant 0 : i32
    return %c0_i32, %c0_i32_0 : i32, i32
  }
  func.func @transform_11(%arg0: i32) -> (i32, i32) {
    %c0_i32 = arith.constant 0 : i32
    %c0_i32_0 = arith.constant 0 : i32
    %c0_i32_1 = arith.constant 0 : i32
    return %c0_i32, %c0_i32_0 : i32, i32
  }
  func.func @transform_12(%arg0: i32) -> (i32, i32) {
    %c0_i32 = arith.constant 0 : i32
    %c0_i32_0 = arith.constant 0 : i32
    %c0_i32_1 = arith.constant 0 : i32
    return %c0_i32, %c0_i32_0 : i32, i32
  }
  func.func @transform_13(%arg0: i32) -> (i32, i32) {
    %c0_i32 = arith.constant 0 : i32
    %c0_i32_0 = arith.constant 0 : i32
    %c0_i32_1 = arith.constant 0 : i32
    return %c0_i32, %c0_i32_0 : i32, i32
  }
  func.func @transform_14(%arg0: i32) -> (i32, i32) {
    %c0_i32 = arith.constant 0 : i32
    %c0_i32_0 = arith.constant 0 : i32
    return %c0_i32, %arg0 : i32, i32
  }
}

</mosaic_0001>

<llo_original>
// kernel: hardvfe_forward.1
$region0: #{hardvfe_forward.1}
  #allocation0 [shape = 'u32[]', space=smem, size = 0x4, offset = 0x4, fixed_abs, tag = 'smem constant byte address 0x4 - core index']
  #allocation1 [shape = 'u32[144,128]{1,0:T(1,128)}', space=vmem, size = 0x12000, scoped, tag = 'internal scratch']
  #allocation2 [shape = 'f32[32,16,1024]{2,1,0:T(8,128)}', space=vmem, size = 0x200000, scoped, tag = 'scratch operand']
  %s0 = inlined_call_operand.hbm [shape: f32[32,4,2048], index: 0, kind: input, shape index: {}]
  %s1 = inlined_call_operand.vmem [shape: s32[1,2048], index: 1, kind: input, shape index: {}]
  %s2 = inlined_call_operand.vmem [shape: s32[4,2048], index: 2, kind: input, shape index: {}]
  %s3 = inlined_call_operand.vmem [shape: f32[16,4], index: 3, kind: input, shape index: {}]
  %s4 = inlined_call_operand.vmem [shape: f32[16,1], index: 4, kind: input, shape index: {}]
  %s5 = inlined_call_operand.vmem [shape: f32[16,4], index: 5, kind: input, shape index: {}]
  %s6 = inlined_call_operand.vmem [shape: f32[16,4], index: 6, kind: input, shape index: {}]
  %s7 = inlined_call_operand.vmem [shape: f32[16,1], index: 7, kind: input, shape index: {}]
  %s8 = inlined_call_operand.vmem [shape: f32[16,1], index: 8, kind: input, shape index: {}]
  %s9 = inlined_call_operand.vmem [shape: f32[16,1], index: 9, kind: input, shape index: {}]
  %s10 = inlined_call_operand.vmem [shape: f32[32,16], index: 10, kind: input, shape index: {}]
  %s11 = inlined_call_operand.vmem [shape: f32[32,16], index: 11, kind: input, shape index: {}]
  %s12 = inlined_call_operand.vmem [shape: f32[32,1], index: 12, kind: input, shape index: {}]
  %s13 = inlined_call_operand.vmem [shape: f32[32,1], index: 13, kind: input, shape index: {}]
  %s14 = inlined_call_operand.hbm [shape: f32[32,2048], index: 14, kind: output, shape index: {}]
  %s15 = sld [smem:[#allocation0]]
  $region114: #{hardvfe_forward.1} parent=0
    _
  %s17 = ssub.s32 1, %s15
  %s18 = scalar_select 0, %s17, %s15
  $region1: #{hardvfe_forward.1} parent=0
    #allocation3 [shape = 'u8[1048576]{0}', space=vmem, size = 0x100000, scoped, tag = 'input window, operand 0']
    #allocation4 [shape = 's32[2]{0}', space=sflag, size = 0x8, scoped, tag = 'scoped memory for hardvfe_forward.1']
    #allocation5 [shape = 's32[2]{0}', space=sflag, size = 0x8, scoped, tag = 'scoped memory for hardvfe_forward.1']
    #allocation6 [shape = 'u8[262144]{0}', space=vmem, size = 0x40000, scoped, tag = 'output window, operand 0']
    %19 = vsyncpa [#allocation4], 0
    %s20 = scalar_lea.sflag [#allocation4], 1
    %21 = vsyncpa %s20, 0
    %22 = vsyncpa [#allocation5], 0
    %s23 = scalar_lea.sflag [#allocation5], 1
    %24 = vsyncpa %s23, 0
    loop: start=0, step=1, limit=4
    $region2: #{hardvfe_forward.1} parent=1 // loop_pre_header
      _
    $region3: #{hardvfe_forward.1} parent=1 // loop_header
      %s26 = sphi 0, %s30
      %p27 = scmp.ge.s32.totalorder %s26, 4
      %s36 = sphi 0, %s38
      %s39 = sphi 0, %s36
      %s40 = sphi 0, %s39
      %s56 = sphi 0, %s40
      %s62 = sphi 0, %s64
      %s65 = sphi 0, %s62
      %s66 = sphi 0, %s65
      %s82 = sphi 0, %s66
      %s88 = sphi 0, %s90
      %s91 = sphi 0, %s88
      %s92 = sphi 0, %s91
      %s108 = sphi 0, %s92
      %s112 = sphi 0, %s112
      %s114 = sphi 0, %s112
      %s115 = sphi 0, %s114
      %s129 = sphi 0, %s115
      %s133 = sphi 0, %s133
      %s135 = sphi 0, %s133
      %s136 = sphi 0, %s135
      %s150 = sphi 0, %s136
      %s154 = sphi 0, %s154
      %s156 = sphi 0, %s154
      %s157 = sphi 0, %s156
      %s171 = sphi 0, %s157
      %s175 = sphi 0, %s175
      %s177 = sphi 0, %s175
      %s178 = sphi 0, %s177
      %s192 = sphi 0, %s178
      %s196 = sphi 0, %s196
      %s198 = sphi 0, %s196
      %s199 = sphi 0, %s198
      %s213 = sphi 0, %s199
      %s217 = sphi 0, %s217
      %s219 = sphi 0, %s217
      %s220 = sphi 0, %s219
      %s234 = sphi 0, %s220
      %s238 = sphi 0, %s238
      %s240 = sphi 0, %s238
      %s241 = sphi 0, %s240
      %s255 = sphi 0, %s241
      %s259 = sphi 0, %s259
      %s261 = sphi 0, %s259
      %s262 = sphi 0, %s261
      %s276 = sphi 0, %s262
      %s280 = sphi 0, %s280
      %s282 = sphi 0, %s280
      %s283 = sphi 0, %s282
      %s297 = sphi 0, %s283
      %s301 = sphi 0, %s301
      %s303 = sphi 0, %s301
      %s304 = sphi 0, %s303
      %s318 = sphi 0, %s304
      %s322 = sphi 0, %s322
      %s324 = sphi 0, %s322
      %s325 = sphi 0, %s324
      %s339 = sphi 0, %s325
      %s345 = sphi 0, %s347
      %s348 = sphi 0, %s345
      %s349 = sphi 0, %s348
      %s365 = sphi 0, %s349
    $region4: #{hardvfe_forward.1} parent=1 // loop_header_branch
      %29 = sbr.rel (%p27) target = $region8
    $region5: #{hardvfe_forward.1} parent=1 // loop_body
      %s31 = ssub.s32 %s26, 1
      %s32 = ssub.s32 %s26, 2
      %s33 = sadd.s32 %s26, 1
      %s34 = ssub.s32 %s26, %s33
      %p35 = scmp.eq.s32.totalorder %s34, 0
      %s37 = sadd.s32 %s36, 1
      %s38 = scalar_select %p35, %s36, %s37
      %p41 = pneg %p35
      %p42 = scmp.eq.s32.totalorder %s26, 1
      %p43 = por %p41, %p42
      %p44 = scmp.ne.s32.totalorder %s36, %s39
      %p45 = scmp.eq.s32.totalorder %s26, 0
      %p46 = por %p44, %p45
      %p47 = scmp.ne.s32.totalorder %s36, %s39
      %p48 = scmp.eq.s32.totalorder %s31, 1
      %p49 = por %p47, %p48
      %p50 = scmp.ne.s32.totalorder %s39, %s40
      %p51 = scmp.eq.s32.totalorder %s31, 0
      %p52 = por %p50, %p51
      %p53 = scmp.ne.s32.totalorder %s39, %s40
      %p54 = scmp.eq.s32.totalorder %s32, 1
      %p55 = por %p53, %p54
      %p57 = scmp.ne.s32.totalorder %s40, %s56
      %p58 = scmp.eq.s32.totalorder %s32, 0
      %p59 = por %p57, %p58
      %s60 = ssub.s32 %s26, %s33
      %p61 = scmp.eq.s32.totalorder %s60, 0
      %s63 = sadd.s32 %s62, 1
      %s64 = scalar_select %p61, %s62, %s63
      %p67 = pneg %p61
      %p68 = scmp.eq.s32.totalorder %s26, 1
      %p69 = por %p67, %p68
      %p70 = scmp.ne.s32.totalorder %s62, %s65
      %p71 = scmp.eq.s32.totalorder %s26, 0
      %p72 = por %p70, %p71
      %p73 = scmp.ne.s32.totalorder %s62, %s65
      %p74 = scmp.eq.s32.totalorder %s31, 1
      %p75 = por %p73, %p74
      %p76 = scmp.ne.s32.totalorder %s65, %s66
      %p77 = scmp.eq.s32.totalorder %s31, 0
      %p78 = por %p76, %p77
      %p79 = scmp.ne.s32.totalorder %s65, %s66
      %p80 = scmp.eq.s32.totalorder %s32, 1
      %p81 = por %p79, %p80
      %p83 = scmp.ne.s32.totalorder %s66, %s82
      %p84 = scmp.eq.s32.totalorder %s32, 0
      %p85 = por %p83, %p84
      %s86 = ssub.s32 %s26, %s33
      %p87 = scmp.eq.s32.totalorder %s86, 0
      %s89 = sadd.s32 %s88, 1
      %s90 = scalar_select %p87, %s88, %s89
      %p93 = pneg %p87
      %p94 = scmp.eq.s32.totalorder %s26, 1
      %p95 = por %p93, %p94
      %p96 = scmp.ne.s32.totalorder %s88, %s91
      %p97 = scmp.eq.s32.totalorder %s26, 0
      %p98 = por %p96, %p97
      %p99 = scmp.ne.s32.totalorder %s88, %s91
      %p100 = scmp.eq.s32.totalorder %s31, 1
      %p101 = por %p99, %p100
      %p102 = scmp.ne.s32.totalorder %s91, %s92
      %p103 = scmp.eq.s32.totalorder %s31, 0
      %p104 = por %p102, %p103
      %p105 = scmp.ne.s32.totalorder %s91, %s92
      %p106 = scmp.eq.s32.totalorder %s32, 1
      %p107 = por %p105, %p106
      %p109 = scmp.ne.s32.totalorder %s92, %s108
      %p110 = scmp.eq.s32.totalorder %s32, 0
      %p111 = por %p109, %p110
      %s113 = sadd.s32 %s112, 1
      %p116 = scmp.eq.s32.totalorder %s26, 1
      %p117 = scmp.ne.s32.totalorder %s112, %s114
      %p118 = scmp.eq.s32.totalorder %s26, 0
      %p119 = por %p117, %p118
      %p120 = scmp.ne.s32.totalorder %s112, %s114
      %p121 = scmp.eq.s32.totalorder %s31, 1
      %p122 = por %p120, %p121
      %p123 = scmp.ne.s32.totalorder %s114, %s115
      %p124 = scmp.eq.s32.totalorder %s31, 0
      %p125 = por %p123, %p124
      %p126 = scmp.ne.s32.totalorder %s114, %s115
      %p127 = scmp.eq.s32.totalorder %s32, 1
      %p128 = por %p126, %p127
      %p130 = scmp.ne.s32.totalorder %s115, %s129
      %p131 = scmp.eq.s32.totalorder %s32, 0
      %p132 = por %p130, %p131
      %s134 = sadd.s32 %s133, 1
      %p137 = scmp.eq.s32.totalorder %s26, 1
      %p138 = scmp.ne.s32.totalorder %s133, %s135
      %p139 = scmp.eq.s32.totalorder %s26, 0
      %p140 = por %p138, %p139
      %p141 = scmp.ne.s32.totalorder %s133, %s135
      %p142 = scmp.eq.s32.totalorder %s31, 1
      %p143 = por %p141, %p142
      %p144 = scmp.ne.s32.totalorder %s135, %s136
      %p145 = scmp.eq.s32.totalorder %s31, 0
      %p146 = por %p144, %p145
      %p147 = scmp.ne.s32.totalorder %s135, %s136
      %p148 = scmp.eq.s32.totalorder %s32, 1
      %p149 = por %p147, %p148
      %p151 = scmp.ne.s32.totalorder %s136, %s150
      %p152 = scmp.eq.s32.totalorder %s32, 0
      %p153 = por %p151, %p152
      %s155 = sadd.s32 %s154, 1
      %p158 = scmp.eq.s32.totalorder %s26, 1
      %p159 = scmp.ne.s32.totalorder %s154, %s156
      %p160 = scmp.eq.s32.totalorder %s26, 0
      %p161 = por %p159, %p160
      %p162 = scmp.ne.s32.totalorder %s154, %s156
      %p163 = scmp.eq.s32.totalorder %s31, 1
      %p164 = por %p162, %p163
      %p165 = scmp.ne.s32.totalorder %s156, %s157
      %p166 = scmp.eq.s32.totalorder %s31, 0
      %p167 = por %p165, %p166
      %p168 = scmp.ne.s32.totalorder %s156, %s157
      %p169 = scmp.eq.s32.totalorder %s32, 1
      %p170 = por %p168, %p169
      %p172 = scmp.ne.s32.totalorder %s157, %s171
      %p173 = scmp.eq.s32.totalorder %s32, 0
      %p174 = por %p172, %p173
      %s176 = sadd.s32 %s175, 1
      %p179 = scmp.eq.s32.totalorder %s26, 1
      %p180 = scmp.ne.s32.totalorder %s175, %s177
      %p181 = scmp.eq.s32.totalorder %s26, 0
      %p182 = por %p180, %p181
      %p183 = scmp.ne.s32.totalorder %s175, %s177
      %p184 = scmp.eq.s32.totalorder %s31, 1
      %p185 = por %p183, %p184
      %p186 = scmp.ne.s32.totalorder %s177, %s178
      %p187 = scmp.eq.s32.totalorder %s31, 0
      %p188 = por %p186, %p187
      %p189 = scmp.ne.s32.totalorder %s177, %s178
      %p190 = scmp.eq.s32.totalorder %s32, 1
      %p191 = por %p189, %p190
      %p193 = scmp.ne.s32.totalorder %s178, %s192
      %p194 = scmp.eq.s32.totalorder %s32, 0
      %p195 = por %p193, %p194
      %s197 = sadd.s32 %s196, 1
      %p200 = scmp.eq.s32.totalorder %s26, 1
      %p201 = scmp.ne.s32.totalorder %s196, %s198
      %p202 = scmp.eq.s32.totalorder %s26, 0
      %p203 = por %p201, %p202
      %p204 = scmp.ne.s32.totalorder %s196, %s198
      %p205 = scmp.eq.s32.totalorder %s31, 1
      %p206 = por %p204, %p205
      %p207 = scmp.ne.s32.totalorder %s198, %s199
      %p208 = scmp.eq.s32.totalorder %s31, 0
      %p209 = por %p207, %p208
      %p210 = scmp.ne.s32.totalorder %s198, %s199
      %p211 = scmp.eq.s32.totalorder %s32, 1
      %p212 = por %p210, %p211
      %p214 = scmp.ne.s32.totalorder %s199, %s213
      %p215 = scmp.eq.s32.totalorder %s32, 0
      %p216 = por %p214, %p215
      %s218 = sadd.s32 %s217, 1
      %p221 = scmp.eq.s32.totalorder %s26, 1
      %p222 = scmp.ne.s32.totalorder %s217, %s219
      %p223 = scmp.eq.s32.totalorder %s26, 0
      %p224 = por %p222, %p223
      %p225 = scmp.ne.s32.totalorder %s217, %s219
      %p226 = scmp.eq.s32.totalorder %s31, 1
      %p227 = por %p225, %p226
      %p228 = scmp.ne.s32.totalorder %s219, %s220
      %p229 = scmp.eq.s32.totalorder %s31, 0
      %p230 = por %p228, %p229
      %p231 = scmp.ne.s32.totalorder %s219, %s220
      %p232 = scmp.eq.s32.totalorder %s32, 1
      %p233 = por %p231, %p232
      %p235 = scmp.ne.s32.totalorder %s220, %s234
      %p236 = scmp.eq.s32.totalorder %s32, 0
      %p237 = por %p235, %p236
      %s239 = sadd.s32 %s238, 1
      %p242 = scmp.eq.s32.totalorder %s26, 1
      %p243 = scmp.ne.s32.totalorder %s238, %s240
      %p244 = scmp.eq.s32.totalorder %s26, 0
      %p245 = por %p243, %p244
      %p246 = scmp.ne.s32.totalorder %s238, %s240
      %p247 = scmp.eq.s32.totalorder %s31, 1
      %p248 = por %p246, %p247
      %p249 = scmp.ne.s32.totalorder %s240, %s241
      %p250 = scmp.eq.s32.totalorder %s31, 0
      %p251 = por %p249, %p250
      %p252 = scmp.ne.s32.totalorder %s240, %s241
      %p253 = scmp.eq.s32.totalorder %s32, 1
      %p254 = por %p252, %p253
      %p256 = scmp.ne.s32.totalorder %s241, %s255
      %p257 = scmp.eq.s32.totalorder %s32, 0
      %p258 = por %p256, %p257
      %s260 = sadd.s32 %s259, 1
      %p263 = scmp.eq.s32.totalorder %s26, 1
      %p264 = scmp.ne.s32.totalorder %s259, %s261
      %p265 = scmp.eq.s32.totalorder %s26, 0
      %p266 = por %p264, %p265
      %p267 = scmp.ne.s32.totalorder %s259, %s261
      %p268 = scmp.eq.s32.totalorder %s31, 1
      %p269 = por %p267, %p268
      %p270 = scmp.ne.s32.totalorder %s261, %s262
      %p271 = scmp.eq.s32.totalorder %s31, 0
      %p272 = por %p270, %p271
      %p273 = scmp.ne.s32.totalorder %s261, %s262
      %p274 = scmp.eq.s32.totalorder %s32, 1
      %p275 = por %p273, %p274
      %p277 = scmp.ne.s32.totalorder %s262, %s276
      %p278 = scmp.eq.s32.totalorder %s32, 0
      %p279 = por %p277, %p278
      %s281 = sadd.s32 %s280, 1
      %p284 = scmp.eq.s32.totalorder %s26, 1
      %p285 = scmp.ne.s32.totalorder %s280, %s282
      %p286 = scmp.eq.s32.totalorder %s26, 0
      %p287 = por %p285, %p286
      %p288 = scmp.ne.s32.totalorder %s280, %s282
      %p289 = scmp.eq.s32.totalorder %s31, 1
      %p290 = por %p288, %p289
      %p291 = scmp.ne.s32.totalorder %s282, %s283
      %p292 = scmp.eq.s32.totalorder %s31, 0
      %p293 = por %p291, %p292
      %p294 = scmp.ne.s32.totalorder %s282, %s283
      %p295 = scmp.eq.s32.totalorder %s32, 1
      %p296 = por %p294, %p295
      %p298 = scmp.ne.s32.totalorder %s283, %s297
      %p299 = scmp.eq.s32.totalorder %s32, 0
      %p300 = por %p298, %p299
      %s302 = sadd.s32 %s301, 1
      %p305 = scmp.eq.s32.totalorder %s26, 1
      %p306 = scmp.ne.s32.totalorder %s301, %s303
      %p307 = scmp.eq.s32.totalorder %s26, 0
      %p308 = por %p306, %p307
      %p309 = scmp.ne.s32.totalorder %s301, %s303
      %p310 = scmp.eq.s32.totalorder %s31, 1
      %p311 = por %p309, %p310
      %p312 = scmp.ne.s32.totalorder %s303, %s304
      %p313 = scmp.eq.s32.totalorder %s31, 0
      %p314 = por %p312, %p313
      %p315 = scmp.ne.s32.totalorder %s303, %s304
      %p316 = scmp.eq.s32.totalorder %s32, 1
      %p317 = por %p315, %p316
      %p319 = scmp.ne.s32.totalorder %s304, %s318
      %p320 = scmp.eq.s32.totalorder %s32, 0
      %p321 = por %p319, %p320
      %s323 = sadd.s32 %s322, 1
      %p326 = scmp.eq.s32.totalorder %s26, 1
      %p327 = scmp.ne.s32.totalorder %s322, %s324
      %p328 = scmp.eq.s32.totalorder %s26, 0
      %p329 = por %p327, %p328
      %p330 = scmp.ne.s32.totalorder %s322, %s324
      %p331 = scmp.eq.s32.totalorder %s31, 1
      %p332 = por %p330, %p331
      %p333 = scmp.ne.s32.totalorder %s324, %s325
      %p334 = scmp.eq.s32.totalorder %s31, 0
      %p335 = por %p333, %p334
      %p336 = scmp.ne.s32.totalorder %s324, %s325
      %p337 = scmp.eq.s32.totalorder %s32, 1
      %p338 = por %p336, %p337
      %p340 = scmp.ne.s32.totalorder %s325, %s339
      %p341 = scmp.eq.s32.totalorder %s32, 0
      %p342 = por %p340, %p341
      %s343 = ssub.s32 %s26, %s33
      %p344 = scmp.eq.s32.totalorder %s343, 0
      %s346 = sadd.s32 %s345, 1
      %s347 = scalar_select %p344, %s345, %s346
      %p350 = pneg %p344
      %p351 = scmp.eq.s32.totalorder %s26, 1
      %p352 = por %p350, %p351
      %p353 = scmp.ne.s32.totalorder %s345, %s348
      %p354 = scmp.eq.s32.totalorder %s26, 0
      %p355 = por %p353, %p354
      %p356 = scmp.ne.s32.totalorder %s345, %s348
      %p357 = scmp.eq.s32.totalorder %s31, 1
      %p358 = por %p356, %p357
      %p359 = scmp.ne.s32.totalorder %s348, %s349
      %p360 = scmp.eq.s32.totalorder %s31, 0
      %p361 = por %p359, %p360
      %p362 = scmp.ne.s32.totalorder %s348, %s349
      %p363 = scmp.eq.s32.totalorder %s32, 1
      %p364 = por %p362, %p363
      %p366 = scmp.ne.s32.totalorder %s349, %s365
      %p367 = scmp.eq.s32.totalorder %s32, 0
      %p368 = por %p366, %p367
      %p369 = scmp.le.s32.totalorder 1, %s26
      %p370 = scmp.lt.s32.totalorder %s26, 3
      %p371 = pnand %p369, %p370
      %p372 = pneg %p371
      // Predicated region
      $region9: #{hardvfe_forward.1} parent=5 // pred_check
        _
      $region10: #{hardvfe_forward.1} parent=5 // pred_check_branch
        %374 = sbr.rel (%p371) target = $region12
      $region11: #{hardvfe_forward.1} parent=5 // pred_region
        %s375 = ssub.s32 %s26, 1
        // Predicated region
        $region13: #{hardvfe_forward.1} parent=11 // pred_check
          %p376 = pneg %p125
        $region14: #{hardvfe_forward.1} parent=11 // pred_check_branch
          %378 = sbr.rel (%p376) target = $region16
        $region15: #{hardvfe_forward.1} parent=11 // pred_region
          _
        $region16: #{hardvfe_forward.1} parent=11 // pred_fallthru
          _
        // Predicated region
        $region17: #{hardvfe_forward.1} parent=11 // pred_check
          %p379 = pneg %p146
        $region18: #{hardvfe_forward.1} parent=11 // pred_check_branch
          %381 = sbr.rel (%p379) target = $region20
        $region19: #{hardvfe_forward.1} parent=11 // pred_region
          _
        $region20: #{hardvfe_forward.1} parent=11 // pred_fallthru
          _
        // Predicated region
        $region21: #{hardvfe_forward.1} parent=11 // pred_check
          %p382 = pneg %p167
        $region22: #{hardvfe_forward.1} parent=11 // pred_check_branch
          %384 = sbr.rel (%p382) target = $region24
        $region23: #{hardvfe_forward.1} parent=11 // pred_region
          _
        $region24: #{hardvfe_forward.1} parent=11 // pred_fallthru
          _
        // Predicated region
        $region25: #{hardvfe_forward.1} parent=11 // pred_check
          %p385 = pneg %p188
        $region26: #{hardvfe_forward.1} parent=11 // pred_check_branch
          %387 = sbr.rel (%p385) target = $region28
        $region27: #{hardvfe_forward.1} parent=11 // pred_region
          _
        $region28: #{hardvfe_forward.1} parent=11 // pred_fallthru
          _
        // Predicated region
        $region29: #{hardvfe_forward.1} parent=11 // pred_check
          %p388 = pneg %p209
        $region30: #{hardvfe_forward.1} parent=11 // pred_check_branch
          %390 = sbr.rel (%p388) target = $region32
        $region31: #{hardvfe_forward.1} parent=11 // pred_region
          _
        $region32: #{hardvfe_forward.1} parent=11 // pred_fallthru
          _
        // Predicated region
        $region33: #{hardvfe_forward.1} parent=11 // pred_check
          %p391 = pneg %p230
        $region34: #{hardvfe_forward.1} parent=11 // pred_check_branch
          %393 = sbr.rel (%p391) target = $region36
        $region35: #{hardvfe_forward.1} parent=11 // pred_region
          _
        $region36: #{hardvfe_forward.1} parent=11 // pred_fallthru
          _
        // Predicated region
        $region37: #{hardvfe_forward.1} parent=11 // pred_check
          %p394 = pneg %p251
        $region38: #{hardvfe_forward.1} parent=11 // pred_check_branch
          %396 = sbr.rel (%p394) target = $region40
        $region39: #{hardvfe_forward.1} parent=11 // pred_region
          _
        $region40: #{hardvfe_forward.1} parent=11 // pred_fallthru
          _
        // Predicated region
        $region41: #{hardvfe_forward.1} parent=11 // pred_check
          %p397 = pneg %p272
        $region42: #{hardvfe_forward.1} parent=11 // pred_check_branch
          %399 = sbr.rel (%p397) target = $region44
        $region43: #{hardvfe_forward.1} parent=11 // pred_region
          _
        $region44: #{hardvfe_forward.1} parent=11 // pred_fallthru
          _
        // Predicated region
        $region45: #{hardvfe_forward.1} parent=11 // pred_check
          %p400 = pneg %p293
        $region46: #{hardvfe_forward.1} parent=11 // pred_check_branch
          %402 = sbr.rel (%p400) target = $region48
        $region47: #{hardvfe_forward.1} parent=11 // pred_region
          _
        $region48: #{hardvfe_forward.1} parent=11 // pred_fallthru
          _
        // Predicated region
        $region49: #{hardvfe_forward.1} parent=11 // pred_check
          %p403 = pneg %p314
        $region50: #{hardvfe_forward.1} parent=11 // pred_check_branch
          %405 = sbr.rel (%p403) target = $region52
        $region51: #{hardvfe_forward.1} parent=11 // pred_region
          _
        $region52: #{hardvfe_forward.1} parent=11 // pred_fallthru
          _
        // Predicated region
        $region53: #{hardvfe_forward.1} parent=11 // pred_check
          %p406 = pneg %p335
        $region54: #{hardvfe_forward.1} parent=11 // pred_check_branch
          %408 = sbr.rel (%p406) target = $region56
        $region55: #{hardvfe_forward.1} parent=11 // pred_region
          _
        $region56: #{hardvfe_forward.1} parent=11 // pred_fallthru
          _
      $region12: #{hardvfe_forward.1} parent=5 // pred_fallthru
        _
      %p409 = scmp.lt.s32.totalorder %s26, 2
      // Predicated region
      $region57: #{hardvfe_forward.1} parent=5 // pred_check
        %p410 = pneg %p409
      $region58: #{hardvfe_forward.1} parent=5 // pred_check_branch
        %412 = sbr.rel (%p410) target = $region60
      $region59: #{hardvfe_forward.1} parent=5 // pred_region
        // Predicated region
        $region61: #{hardvfe_forward.1} parent=59 // pred_check
          %p413 = pneg %p46
        $region62: #{hardvfe_forward.1} parent=59 // pred_check_branch
          %415 = sbr.rel (%p413) target = $region64
        $region63: #{hardvfe_forward.1} parent=59 // pred_region
          %s416 = sand.u32 %s36, 1
          %s417 = scalar_lea.sflag [#allocation4], %s416
          %s418 = sand.u32 %s36, 1
          %s419 = smul.addr %s418, 1024
          %s420 = scalar_lea.vmem [#allocation3], %s419
          %s421 = smul.u32 8, %s26
          %s423 = ssub.s32 16384, 16384
          %424 = vsyncadd %s417, %s423
          %s425 = smul.addr %s421, 64
          %s426 = scalar_lea.hbm %s0, %s425
          %s427 = sshll.u32 %s420, 4
          %s428 = int_to_ptr.vmem [resolvable:$true] %s427
          %433 = dma.hbm_to_vmem [thread:$0]  %s426, 16384, %s428, %s417, 1024, 512, 32
        $region64: #{hardvfe_forward.1} parent=59 // pred_fallthru
          _
        // Predicated region
        $region65: #{hardvfe_forward.1} parent=59 // pred_check
          %p434 = pneg %p72
        $region66: #{hardvfe_forward.1} parent=59 // pred_check_branch
          %436 = sbr.rel (%p434) target = $region68
        $region67: #{hardvfe_forward.1} parent=59 // pred_region
          %s437 = smul.u32 8, %s26
          %p438 = scmp.lt.s32.totalorder %s437, 15
          %s439 = scalar_select %p438, %s437, 15
          %s440 = scalar_lea.vmem %s1, %s439
          %s441 = smul.u32 8, %s26
        $region68: #{hardvfe_forward.1} parent=59 // pred_fallthru
          _
        // Predicated region
        $region69: #{hardvfe_forward.1} parent=59 // pred_check
          %p442 = pneg %p98
        $region70: #{hardvfe_forward.1} parent=59 // pred_check_branch
          %444 = sbr.rel (%p442) target = $region72
        $region71: #{hardvfe_forward.1} parent=59 // pred_region
          %s445 = smul.u32 8, %s26
          %p446 = scmp.lt.s32.totalorder %s445, 15
          %s447 = scalar_select %p446, %s445, 15
          %s448 = smul.addr %s447, 4
          %s449 = scalar_lea.vmem %s2, %s448
          %s450 = smul.u32 8, %s26
        $region72: #{hardvfe_forward.1} parent=59 // pred_fallthru
          _
      $region60: #{hardvfe_forward.1} parent=5 // pred_fallthru
        _
      %p451 = scmp.le.s32.totalorder 1, %s26
      %p452 = scmp.lt.s32.totalorder %s26, 3
      %p453 = pnand %p451, %p452
      %p454 = pneg %p453
      // Predicated region
      $region73: #{hardvfe_forward.1} parent=5 // pred_check
        _
      $region74: #{hardvfe_forward.1} parent=5 // pred_check_branch
        %456 = sbr.rel (%p453) target = $region76
      $region75: #{hardvfe_forward.1} parent=5 // pred_region
        %s457 = ssub.s32 %s26, 1
        %s458 = sand.u32 %s39, 1
        %s459 = scalar_lea.sflag [#allocation4], %s458
        %s460 = sand.u32 %s39, 1
        %s461 = smul.addr %s460, 1024
        %s462 = scalar_lea.vmem [#allocation3], %s461
        // Predicated region
        $region77: #{hardvfe_forward.1} parent=75 // pred_check
          %p463 = pneg %p52
        $region78: #{hardvfe_forward.1} parent=75 // pred_check_branch
          %465 = sbr.rel (%p463) target = $region80
        $region79: #{hardvfe_forward.1} parent=75 // pred_region
          %466 = dma.done %s459, 16384
        $region80: #{hardvfe_forward.1} parent=75 // pred_fallthru
          _
        %s467 = sand.u32 %s39, 1
        %s468 = scalar_lea.sflag [#allocation4], %s467
        %s469 = sand.u32 %s39, 1
        %s470 = smul.addr %s469, 1024
        %s471 = scalar_lea.vmem [#allocation3], %s470
        %p472 = pneg %p52
        %p473 = pneg %p49
        %s474 = smul.u32 8, %s31
        %p475 = scmp.lt.s32.totalorder %s474, 15
        %s476 = scalar_select %p475, %s474, 15
        %s477 = scalar_lea.vmem %s1, %s476
        %p478 = pneg %p78
        %p479 = pneg %p75
        %s480 = smul.u32 8, %s31
        %p481 = scmp.lt.s32.totalorder %s480, 15
        %s482 = scalar_select %p481, %s480, 15
        %s483 = smul.addr %s482, 4
        %s484 = scalar_lea.vmem %s2, %s483
        %p485 = pneg %p104
        %p486 = pneg %p101
        %p487 = pneg %p125
        %p488 = pneg %p122
        %p489 = pneg %p146
        %p490 = pneg %p143
        %p491 = pneg %p167
        %p492 = pneg %p164
        %p493 = pneg %p188
        %p494 = pneg %p185
        %p495 = pneg %p209
        %p496 = pneg %p206
        %p497 = pneg %p230
        %p498 = pneg %p227
        %p499 = pneg %p251
        %p500 = pneg %p248
        %p501 = pneg %p272
        %p502 = pneg %p269
        %p503 = pneg %p293
        %p504 = pneg %p290
        %p505 = pneg %p314
        %p506 = pneg %p311
        %p507 = pneg %p335
        %p508 = pneg %p332
        %p509 = pneg %p361
        %p510 = pneg %p358
        %s511 = sand.u32 %s348, 1
        %s512 = scalar_lea.sflag [#allocation5], %s511
        %s513 = sand.u32 %s348, 1
        %s514 = smul.addr %s513, 256
        %s515 = scalar_lea.vmem [#allocation6], %s514
        %s516 = smul.u32 8, %s31
        %s517 = smul.u32 8, %s31
        %p518 = scmp.lt.s32.totalorder %s517, 15
        %s519 = scalar_select %p518, %s517, 15
        %s520 = scalar_lea.vmem %s1, %s519
        %s521 = smul.u32 8, %s31
        %s522 = smul.u32 8, %s31
        %p523 = scmp.lt.s32.totalorder %s522, 15
        %s524 = scalar_select %p523, %s522, 15
        %s525 = smul.addr %s524, 4
        %s526 = scalar_lea.vmem %s2, %s525
        %s527 = smul.u32 8, %s31
        %s528 = smul.u32 8, %s31
        %v529 = vld [vmem:[%s520] sm:$0xff]
        %v530 = vcvt.s32.f32 %v529
        %v531 = vrcp.pop %v530
        %v532 = vld [vmem:[%s526] sm:$0xff]
        %v533 = vld [vmem:[%s526 + $0x8] sm:$0xff]
        %v534 = vld [vmem:[%s526 + $0x10] sm:$0xff]
        %v535 = vld [vmem:[%s526 + $0x18] sm:$0xff]
        %v536 = vcvt.s32.f32 %v532
        %v537 = vcvt.s32.f32 %v533
        %v538 = vcvt.s32.f32 %v534
        %v539 = vcvt.s32.f32 %v535
        %v540 = vld [vmem:[%s462] sm:$0xff]
        %v541 = vld [vmem:[%s462 + $0x8] sm:$0xff]
        %v542 = vld [vmem:[%s462 + $0x10] sm:$0xff]
        %v543 = vld [vmem:[%s462 + $0x18] sm:$0xff]
        loop: start=1, step=1, limit=32
        $region81: #{hardvfe_forward.1} parent=75 // loop_pre_header
          _
        $region82: #{hardvfe_forward.1} parent=75 // loop_header
          %s545 = sphi 1, %s549
          %p546 = scmp.ge.s32.totalorder %s545, 32
          %v550 = vphi %v540, %v561
          %v551 = vphi %v541, %v562
          %v552 = vphi %v542, %v563
          %v553 = vphi %v543, %v564
        $region83: #{hardvfe_forward.1} parent=75 // loop_header_branch
          %548 = sbr.rel (%p546) target = $region87
        $region84: #{hardvfe_forward.1} parent=75 // loop_body
          %s554 = smul.u32 %s545, 8
          %s555 = smul.addr %s554, 4
          %s556 = scalar_lea.vmem %s462, %s555 [#allocation3]
          %v557 = vld [vmem:[%s556] sm:$0xff]
          %v558 = vld [vmem:[%s556 + $0x8] sm:$0xff]
          %v559 = vld [vmem:[%s556 + $0x10] sm:$0xff]
          %v560 = vld [vmem:[%s556 + $0x18] sm:$0xff]
          %v561 = vadd.f32 %v550, %v557
          %v562 = vadd.f32 %v551, %v558
          %v563 = vadd.f32 %v552, %v559
          %v564 = vadd.f32 %v553, %v560
        $region85: #{hardvfe_forward.1} parent=75 // loop_footer
          %s549 = sadd.s32 1, %s545
        $region86: #{hardvfe_forward.1} parent=75 // loop_footer_branch
          %544 = sbr.rel target = $region82
        $region87: #{hardvfe_forward.1} parent=75 // loop_exit
          _
        %v566 = vlaneseq
        %v567 = vshrl.u32 %v566, 7
        %v568 = vsub.s32 0, %v567
        %v569 = vrot.slane %v531, %v568
        %v570 = vlaneseq
        %v571 = vshrl.u32 %v570, 7
        %v572 = vsub.s32 1, %v571
        %v573 = vrot.slane %v531, %v572
        %v574 = vlaneseq
        %v575 = vshrl.u32 %v574, 7
        %v576 = vsub.s32 2, %v575
        %v577 = vrot.slane %v531, %v576
        %v578 = vlaneseq
        %v579 = vshrl.u32 %v578, 7
        %v580 = vsub.s32 3, %v579
        %v581 = vrot.slane %v531, %v580
        %v582 = vlaneseq
        %v583 = vshrl.u32 %v582, 7
        %v584 = vsub.s32 4, %v583
        %v585 = vrot.slane %v531, %v584
        %v586 = vlaneseq
        %v587 = vshrl.u32 %v586, 7
        %v588 = vsub.s32 5, %v587
        %v589 = vrot.slane %v531, %v588
        %v590 = vlaneseq
        %v591 = vshrl.u32 %v590, 7
        %v592 = vsub.s32 6, %v591
        %v593 = vrot.slane %v531, %v592
        %v594 = vlaneseq
        %v595 = vshrl.u32 %v594, 7
        %v596 = vsub.s32 7, %v595
        %v597 = vrot.slane %v531, %v596
        %v598 = vcombine.low %v569, %v573
        %v599 = vcombine.low %v577, %v581
        %v600 = vcombine.low %v585, %v589
        %v601 = vcombine.low %v593, %v597
        %v606 = vmul.f32 %v550, %v598
        %v607 = vmul.f32 %v551, %v599
        %v608 = vmul.f32 %v552, %v600
        %v609 = vmul.f32 %v553, %v601
        %v610 = vld [vmem:[%s5] sm:$0xff]
        %v611 = vld [vmem:[%s5 + $0x8] sm:$0xff]
        %v612 = vld [vmem:[%s6] sm:$0xff]
        %v613 = vld [vmem:[%s6 + $0x8] sm:$0xff]
        %v618 = vcombine.high %v536, %v536
        %v619 = vcombine.high %v537, %v537
        %v620 = vcombine.high %v538, %v538
        %v621 = vcombine.high %v539, %v539
        %vm622 = vcmask 31744
        %v624 = vsel %vm622, %v612, 0
        %v627 = vsel %vm622, %v613, 0
        %vm629 = vcmask 1043456
        %v630 = vsel %vm629, %v536, 0
        %v632 = vsel %vm629, %v618, 0
        %v634 = vsel %vm629, %v537, 0
        %v636 = vsel %vm629, %v619, 0
        %v638 = vsel %vm629, %v538, 0
        %v640 = vsel %vm629, %v620, 0
        %v642 = vsel %vm629, %v539, 0
        %v644 = vsel %vm629, %v621, 0
        %646 = vmatprep.subr.mxu0 %v632
        %647 = vmatpush1.msra.mxu0 %v630
        %648 = vmatprep.subr.mxu0 0.0
        %649 = vmatpush1.msra.mxu0 0.0
        %650 = vmatprep.subr.mxu0 0.0
        %651 = vmatpush1.msra.mxu0 0.0
        %652 = vmatprep.subr.mxu0 0.0
        %653 = vmatpush1.msra.mxu0 0.0
        %654 = vmatprep.subr.mxu0 0.0
        %655 = vmatpush1.msra.mxu0 0.0
        %656 = vmatprep.subr.mxu0 0.0
        %657 = vmatpush1.msra.mxu0 0.0
        %658 = vmatprep.subr.mxu0 0.0
        %659 = vmatpush1.msra.mxu0 0.0
        %660 = vmatprep.subr.mxu0 0.0
        %661 = vmatpush1.msra.mxu0 0.0
        %662 = vmatprep.subr.mxu0 0.0
        %663 = vmatpush1.msra.mxu0 0.0
        %664 = vmatprep.subr.mxu0 0.0
        %665 = vmatpush1.msra.mxu0 0.0
        %666 = vmatprep.subr.mxu0 0.0
        %667 = vmatpush1.msra.mxu0 0.0
        %668 = vmatprep.subr.mxu0 0.0
        %669 = vmatpush1.msra.mxu0 0.0
        %670 = vmatprep.subr.mxu0 0.0
        %671 = vmatpush1.msra.mxu0 0.0
        %672 = vmatprep.subr.mxu0 0.0
        %673 = vmatpush1.msra.mxu0 0.0
        %674 = vmatprep.subr.mxu0 0.0
        %675 = vmatpush1.msra.mxu0 0.0
        %676 = vmatprep.subr.mxu0 0.0
        %677 = vmatpush1.msra.mxu0 0.0
        %678 = vmatprep.subr.mxu0 0.0
        %679 = vmatpush1.msra.mxu0 0.0
        %680 = vmatprep.subr.mxu0 0.0
        %681 = vmatpush1.msra.mxu0 0.0
        %682 = vmatprep.subr.mxu0 0.0
        %683 = vmatpush1.msra.mxu0 0.0
        %684 = vmatprep.subr.mxu0 0.0
        %685 = vmatpush1.msra.mxu0 0.0
        %686 = vmatprep.subr.mxu0 0.0
        %687 = vmatpush1.msra.mxu0 0.0
        %688 = vmatprep.subr.mxu0 0.0
        %689 = vmatpush1.msra.mxu0 0.0
        %690 = vmatprep.subr.mxu0 0.0
        %691 = vmatpush1.msra.mxu0 0.0
        %692 = vmatprep.subr.mxu0 0.0
        %693 = vmatpush1.msra.mxu0 0.0
        %694 = vmatprep.subr.mxu0 0.0
        %695 = vmatpush1.msra.mxu0 0.0
        %696 = vmatprep.subr.mxu0 0.0
        %697 = vmatpush1.msra.mxu0 0.0
        %698 = vmatprep.subr.mxu0 0.0
        %699 = vmatpush1.msra.mxu0 0.0
        %700 = vmatprep.subr.mxu0 0.0
        %701 = vmatpush1.msra.mxu0 0.0
        %702 = vmatprep.subr.mxu0 0.0
        %703 = vmatpush1.msra.mxu0 0.0
        %704 = vmatprep.subr.mxu0 0.0
        %705 = vmatpush1.msra.mxu0 0.0
        %706 = vmatprep.subr.mxu0 0.0
        %707 = vmatpush1.msra.mxu0 0.0
        %708 = vmatprep.subr.mxu0 0.0
        %709 = vmatpush1.msra.mxu0 0.0
        %710 = vmatprep.mubr.f32.mxu0 0.0
        %711 = vmatmul.mubr.f32.gmra.mrb[0].mxu0 %v624
        %v712 = vpop.f32.mrb[0].mxu0
        %v713 = vadd.f32 0.0, %v712
        %v714 = vpop.f32.mrb[0].mxu0
        %v715 = vadd.f32 0.0, %v714
        %716 = vmatprep.mubr.f32.mxu0 0.0
        %717 = vmatmul.mubr.f32.gmra.mrb[0].mxu0 %v627
        %v718 = vpop.f32.mrb[0].mxu0
        %v719 = vadd.f32 0.0, %v718
        %v720 = vpop.f32.mrb[0].mxu0
        %v721 = vadd.f32 0.0, %v720
        %722 = vdwg.mxu0
        %723 = vmatprep.subr.mxu0 %v636
        %724 = vmatpush1.msra.mxu0 %v634
        %725 = vmatprep.subr.mxu0 0.0
        %726 = vmatpush1.msra.mxu0 0.0
        %727 = vmatprep.subr.mxu0 0.0
        %728 = vmatpush1.msra.mxu0 0.0
        %729 = vmatprep.subr.mxu0 0.0
        %730 = vmatpush1.msra.mxu0 0.0
        %731 = vmatprep.subr.mxu0 0.0
        %732 = vmatpush1.msra.mxu0 0.0
        %733 = vmatprep.subr.mxu0 0.0
        %734 = vmatpush1.msra.mxu0 0.0
        %735 = vmatprep.subr.mxu0 0.0
        %736 = vmatpush1.msra.mxu0 0.0
        %737 = vmatprep.subr.mxu0 0.0
        %738 = vmatpush1.msra.mxu0 0.0
        %739 = vmatprep.subr.mxu0 0.0
        %740 = vmatpush1.msra.mxu0 0.0
        %741 = vmatprep.subr.mxu0 0.0
        %742 = vmatpush1.msra.mxu0 0.0
        %743 = vmatprep.subr.mxu0 0.0
        %744 = vmatpush1.msra.mxu0 0.0
        %745 = vmatprep.subr.mxu0 0.0
        %746 = vmatpush1.msra.mxu0 0.0
        %747 = vmatprep.subr.mxu0 0.0
        %748 = vmatpush1.msra.mxu0 0.0
        %749 = vmatprep.subr.mxu0 0.0
        %750 = vmatpush1.msra.mxu0 0.0
        %751 = vmatprep.subr.mxu0 0.0
        %752 = vmatpush1.msra.mxu0 0.0
        %753 = vmatprep.subr.mxu0 0.0
        %754 = vmatpush1.msra.mxu0 0.0
        %755 = vmatprep.subr.mxu0 0.0
        %756 = vmatpush1.msra.mxu0 0.0
        %757 = vmatprep.subr.mxu0 0.0
        %758 = vmatpush1.msra.mxu0 0.0
        %759 = vmatprep.subr.mxu0 0.0
        %760 = vmatpush1.msra.mxu0 0.0
        %761 = vmatprep.subr.mxu0 0.0
        %762 = vmatpush1.msra.mxu0 0.0
        %763 = vmatprep.subr.mxu0 0.0
        %764 = vmatpush1.msra.mxu0 0.0
        %765 = vmatprep.subr.mxu0 0.0
        %766 = vmatpush1.msra.mxu0 0.0
        %767 = vmatprep.subr.mxu0 0.0
        %768 = vmatpush1.msra.mxu0 0.0
        %769 = vmatprep.subr.mxu0 0.0
        %770 = vmatpush1.msra.mxu0 0.0
        %771 = vmatprep.subr.mxu0 0.0
        %772 = vmatpush1.msra.mxu0 0.0
        %773 = vmatprep.subr.mxu0 0.0
        %774 = vmatpush1.msra.mxu0 0.0
        %775 = vmatprep.subr.mxu0 0.0
        %776 = vmatpush1.msra.mxu0 0.0
        %777 = vmatprep.subr.mxu0 0.0
        %778 = vmatpush1.msra.mxu0 0.0
        %779 = vmatprep.subr.mxu0 0.0
        %780 = vmatpush1.msra.mxu0 0.0
        %781 = vmatprep.subr.mxu0 0.0
        %782 = vmatpush1.msra.mxu0 0.0
        %783 = vmatprep.subr.mxu0 0.0
        %784 = vmatpush1.msra.mxu0 0.0
        %785 = vmatprep.subr.mxu0 0.0
        %786 = vmatpush1.msra.mxu0 0.0
        %787 = vmatprep.mubr.f32.mxu0 0.0
        %788 = vmatmul.mubr.f32.gmra.mrb[0].mxu0 %v624
        %v789 = vpop.f32.mrb[0].mxu0
        %v790 = vadd.f32 0.0, %v789
        %v791 = vpop.f32.mrb[0].mxu0
        %v792 = vadd.f32 0.0, %v791
        %793 = vmatprep.mubr.f32.mxu0 0.0
        %794 = vmatmul.mubr.f32.gmra.mrb[0].mxu0 %v627
        %v795 = vpop.f32.mrb[0].mxu0
        %v796 = vadd.f32 0.0, %v795
        %v797 = vpop.f32.mrb[0].mxu0
        %v798 = vadd.f32 0.0, %v797
        %799 = vdwg.mxu0
        %800 = vmatprep.subr.mxu0 %v640
        %801 = vmatpush1.msra.mxu0 %v638
        %802 = vmatprep.subr.mxu0 0.0
        %803 = vmatpush1.msra.mxu0 0.0
        %804 = vmatprep.subr.mxu0 0.0
        %805 = vmatpush1.msra.mxu0 0.0
        %806 = vmatprep.subr.mxu0 0.0
        %807 = vmatpush1.msra.mxu0 0.0
        %808 = vmatprep.subr.mxu0 0.0
        %809 = vmatpush1.msra.mxu0 0.0
        %810 = vmatprep.subr.mxu0 0.0
        %811 = vmatpush1.msra.mxu0 0.0
        %812 = vmatprep.subr.mxu0 0.0
        %813 = vmatpush1.msra.mxu0 0.0
        %814 = vmatprep.subr.mxu0 0.0
        %815 = vmatpush1.msra.mxu0 0.0
        %816 = vmatprep.subr.mxu0 0.0
        %817 = vmatpush1.msra.mxu0 0.0
        %818 = vmatprep.subr.mxu0 0.0
        %819 = vmatpush1.msra.mxu0 0.0
        %820 = vmatprep.subr.mxu0 0.0
        %821 = vmatpush1.msra.mxu0 0.0
        %822 = vmatprep.subr.mxu0 0.0
        %823 = vmatpush1.msra.mxu0 0.0
        %824 = vmatprep.subr.mxu0 0.0
        %825 = vmatpush1.msra.mxu0 0.0
        %826 = vmatprep.subr.mxu0 0.0
        %827 = vmatpush1.msra.mxu0 0.0
        %828 = vmatprep.subr.mxu0 0.0
        %829 = vmatpush1.msra.mxu0 0.0
        %830 = vmatprep.subr.mxu0 0.0
        %831 = vmatpush1.msra.mxu0 0.0
        %832 = vmatprep.subr.mxu0 0.0
        %833 = vmatpush1.msra.mxu0 0.0
        %834 = vmatprep.subr.mxu0 0.0
        %835 = vmatpush1.msra.mxu0 0.0
        %836 = vmatprep.subr.mxu0 0.0
        %837 = vmatpush1.msra.mxu0 0.0
        %838 = vmatprep.subr.mxu0 0.0
        %839 = vmatpush1.msra.mxu0 0.0
        %840 = vmatprep.subr.mxu0 0.0
        %841 = vmatpush1.msra.mxu0 0.0
        %842 = vmatprep.subr.mxu0 0.0
        %843 = vmatpush1.msra.mxu0 0.0
        %844 = vmatprep.subr.mxu0 0.0
        %845 = vmatpush1.msra.mxu0 0.0
        %846 = vmatprep.subr.mxu0 0.0
        %847 = vmatpush1.msra.mxu0 0.0
        %848 = vmatprep.subr.mxu0 0.0
        %849 = vmatpush1.msra.mxu0 0.0
        %850 = vmatprep.subr.mxu0 0.0
        %851 = vmatpush1.msra.mxu0 0.0
        %852 = vmatprep.subr.mxu0 0.0
        %853 = vmatpush1.msra.mxu0 0.0
        %854 = vmatprep.subr.mxu0 0.0
        %855 = vmatpush1.msra.mxu0 0.0
        %856 = vmatprep.subr.mxu0 0.0
        %857 = vmatpush1.msra.mxu0 0.0
        %858 = vmatprep.subr.mxu0 0.0
        %859 = vmatpush1.msra.mxu0 0.0
        %860 = vmatprep.subr.mxu0 0.0
        %861 = vmatpush1.msra.mxu0 0.0
        %862 = vmatprep.subr.mxu0 0.0
        %863 = vmatpush1.msra.mxu0 0.0
        %864 = vmatprep.mubr.f32.mxu0 0.0
        %865 = vmatmul.mubr.f32.gmra.mrb[0].mxu0 %v624
        %v866 = vpop.f32.mrb[0].mxu0
        %v867 = vadd.f32 0.0, %v866
        %v868 = vpop.f32.mrb[0].mxu0
        %v869 = vadd.f32 0.0, %v868
        %870 = vmatprep.mubr.f32.mxu0 0.0
        %871 = vmatmul.mubr.f32.gmra.mrb[0].mxu0 %v627
        %v872 = vpop.f32.mrb[0].mxu0
        %v873 = vadd.f32 0.0, %v872
        %v874 = vpop.f32.mrb[0].mxu0
        %v875 = vadd.f32 0.0, %v874
        %876 = vdwg.mxu0
        %877 = vmatprep.subr.mxu0 %v644
        %878 = vmatpush1.msra.mxu0 %v642
        %879 = vmatprep.subr.mxu0 0.0
        %880 = vmatpush1.msra.mxu0 0.0
        %881 = vmatprep.subr.mxu0 0.0
        %882 = vmatpush1.msra.mxu0 0.0
        %883 = vmatprep.subr.mxu0 0.0
        %884 = vmatpush1.msra.mxu0 0.0
        %885 = vmatprep.subr.mxu0 0.0
        %886 = vmatpush1.msra.mxu0 0.0
        %887 = vmatprep.subr.mxu0 0.0
        %888 = vmatpush1.msra.mxu0 0.0
        %889 = vmatprep.subr.mxu0 0.0
        %890 = vmatpush1.msra.mxu0 0.0
        %891 = vmatprep.subr.mxu0 0.0
        %892 = vmatpush1.msra.mxu0 0.0
        %893 = vmatprep.subr.mxu0 0.0
        %894 = vmatpush1.msra.mxu0 0.0
        %895 = vmatprep.subr.mxu0 0.0
        %896 = vmatpush1.msra.mxu0 0.0
        %897 = vmatprep.subr.mxu0 0.0
        %898 = vmatpush1.msra.mxu0 0.0
        %899 = vmatprep.subr.mxu0 0.0
        %900 = vmatpush1.msra.mxu0 0.0
        %901 = vmatprep.subr.mxu0 0.0
        %902 = vmatpush1.msra.mxu0 0.0
        %903 = vmatprep.subr.mxu0 0.0
        %904 = vmatpush1.msra.mxu0 0.0
        %905 = vmatprep.subr.mxu0 0.0
        %906 = vmatpush1.msra.mxu0 0.0
        %907 = vmatprep.subr.mxu0 0.0
        %908 = vmatpush1.msra.mxu0 0.0
        %909 = vmatprep.subr.mxu0 0.0
        %910 = vmatpush1.msra.mxu0 0.0
        %911 = vmatprep.subr.mxu0 0.0
        %912 = vmatpush1.msra.mxu0 0.0
        %913 = vmatprep.subr.mxu0 0.0
        %914 = vmatpush1.msra.mxu0 0.0
        %915 = vmatprep.subr.mxu0 0.0
        %916 = vmatpush1.msra.mxu0 0.0
        %917 = vmatprep.subr.mxu0 0.0
        %918 = vmatpush1.msra.mxu0 0.0
        %919 = vmatprep.subr.mxu0 0.0
        %920 = vmatpush1.msra.mxu0 0.0
        %921 = vmatprep.subr.mxu0 0.0
        %922 = vmatpush1.msra.mxu0 0.0
        %923 = vmatprep.subr.mxu0 0.0
        %924 = vmatpush1.msra.mxu0 0.0
        %925 = vmatprep.subr.mxu0 0.0
        %926 = vmatpush1.msra.mxu0 0.0
        %927 = vmatprep.subr.mxu0 0.0
        %928 = vmatpush1.msra.mxu0 0.0
        %929 = vmatprep.subr.mxu0 0.0
        %930 = vmatpush1.msra.mxu0 0.0
        %931 = vmatprep.subr.mxu0 0.0
        %932 = vmatpush1.msra.mxu0 0.0
        %933 = vmatprep.subr.mxu0 0.0
        %934 = vmatpush1.msra.mxu0 0.0
        %935 = vmatprep.subr.mxu0 0.0
        %936 = vmatpush1.msra.mxu0 0.0
        %937 = vmatprep.subr.mxu0 0.0
        %938 = vmatpush1.msra.mxu0 0.0
        %939 = vmatprep.subr.mxu0 0.0
        %940 = vmatpush1.msra.mxu0 0.0
        %941 = vmatprep.mubr.f32.mxu0 0.0
        %942 = vmatmul.mubr.f32.gmra.mrb[0].mxu0 %v624
        %v943 = vpop.f32.mrb[0].mxu0
        %v944 = vadd.f32 0.0, %v943
        %v945 = vpop.f32.mrb[0].mxu0
        %v946 = vadd.f32 0.0, %v945
        %947 = vmatprep.mubr.f32.mxu0 0.0
        %948 = vmatmul.mubr.f32.gmra.mrb[0].mxu0 %v627
        %v949 = vpop.f32.mrb[0].mxu0
        %v950 = vadd.f32 0.0, %v949
        %v951 = vpop.f32.mrb[0].mxu0
        %v952 = vadd.f32 0.0, %v951
        %953 = vdwg.mxu0
        %v958 = vcombine.high %v606, %v606
        %v959 = vcombine.high %v607, %v607
        %v960 = vcombine.high %v608, %v608
        %v961 = vcombine.high %v609, %v609
        %v963 = vsel %vm622, %v610, 0
        %v966 = vsel %vm622, %v611, 0
        %v968 = vsel %vm629, %v606, 0
        %v970 = vsel %vm629, %v958, 0
        %v972 = vsel %vm629, %v607, 0
        %v974 = vsel %vm629, %v959, 0
        %v976 = vsel %vm629, %v608, 0
        %v978 = vsel %vm629, %v960, 0
        %v980 = vsel %vm629, %v609, 0
        %v982 = vsel %vm629, %v961, 0
        %984 = vmatprep.subr.mxu0 %v970
        %985 = vmatpush1.msra.mxu0 %v968
        %986 = vmatprep.subr.mxu0 0.0
        %987 = vmatpush1.msra.mxu0 0.0
        %988 = vmatprep.subr.mxu0 0.0
        %989 = vmatpush1.msra.mxu0 0.0
        %990 = vmatprep.subr.mxu0 0.0
        %991 = vmatpush1.msra.mxu0 0.0
        %992 = vmatprep.subr.mxu0 0.0
        %993 = vmatpush1.msra.mxu0 0.0
        %994 = vmatprep.subr.mxu0 0.0
        %995 = vmatpush1.msra.mxu0 0.0
        %996 = vmatprep.subr.mxu0 0.0
        %997 = vmatpush1.msra.mxu0 0.0
        %998 = vmatprep.subr.mxu0 0.0
        %999 = vmatpush1.msra.mxu0 0.0
        %1000 = vmatprep.subr.mxu0 0.0
        %1001 = vmatpush1.msra.mxu0 0.0
        %1002 = vmatprep.subr.mxu0 0.0
        %1003 = vmatpush1.msra.mxu0 0.0
        %1004 = vmatprep.subr.mxu0 0.0
        %1005 = vmatpush1.msra.mxu0 0.0
        %1006 = vmatprep.subr.mxu0 0.0
        %1007 = vmatpush1.msra.mxu0 0.0
        %1008 = vmatprep.subr.mxu0 0.0
        %1009 = vmatpush1.msra.mxu0 0.0
        %1010 = vmatprep.subr.mxu0 0.0
        %1011 = vmatpush1.msra.mxu0 0.0
        %1012 = vmatprep.subr.mxu0 0.0
        %1013 = vmatpush1.msra.mxu0 0.0
        %1014 = vmatprep.subr.mxu0 0.0
        %1015 = vmatpush1.msra.mxu0 0.0
        %1016 = vmatprep.subr.mxu0 0.0
        %1017 = vmatpush1.msra.mxu0 0.0
        %1018 = vmatprep.subr.mxu0 0.0
        %1019 = vmatpush1.msra.mxu0 0.0
        %1020 = vmatprep.subr.mxu0 0.0
        %1021 = vmatpush1.msra.mxu0 0.0
        %1022 = vmatprep.subr.mxu0 0.0
        %1023 = vmatpush1.msra.mxu0 0.0
        %1024 = vmatprep.subr.mxu0 0.0
        %1025 = vmatpush1.msra.mxu0 0.0
        %1026 = vmatprep.subr.mxu0 0.0
        %1027 = vmatpush1.msra.mxu0 0.0
        %1028 = vmatprep.subr.mxu0 0.0
        %1029 = vmatpush1.msra.mxu0 0.0
        %1030 = vmatprep.subr.mxu0 0.0
        %1031 = vmatpush1.msra.mxu0 0.0
        %1032 = vmatprep.subr.mxu0 0.0
        %1033 = vmatpush1.msra.mxu0 0.0
        %1034 = vmatprep.subr.mxu0 0.0
        %1035 = vmatpush1.msra.mxu0 0.0
        %1036 = vmatprep.subr.mxu0 0.0
        %1037 = vmatpush1.msra.mxu0 0.0
        %1038 = vmatprep.subr.mxu0 0.0
        %1039 = vmatpush1.msra.mxu0 0.0
        %1040 = vmatprep.subr.mxu0 0.0
        %1041 = vmatpush1.msra.mxu0 0.0
        %1042 = vmatprep.subr.mxu0 0.0
        %1043 = vmatpush1.msra.mxu0 0.0
        %1044 = vmatprep.subr.mxu0 0.0
        %1045 = vmatpush1.msra.mxu0 0.0
        %1046 = vmatprep.subr.mxu0 0.0
        %1047 = vmatpush1.msra.mxu0 0.0
        %1048 = vmatprep.mubr.f32.mxu0 0.0
        %1049 = vmatmul.mubr.f32.gmra.mrb[0].mxu0 %v963
        %v1050 = vpop.f32.mrb[0].mxu0
        %v1051 = vadd.f32 %v713, %v1050
        %v1052 = vpop.f32.mrb[0].mxu0
        %v1053 = vadd.f32 %v715, %v1052
        %1054 = vmatprep.mubr.f32.mxu0 0.0
        %1055 = vmatmul.mubr.f32.gmra.mrb[0].mxu0 %v966
        %v1056 = vpop.f32.mrb[0].mxu0
        %v1057 = vadd.f32 %v719, %v1056
        %v1058 = vpop.f32.mrb[0].mxu0
        %v1059 = vadd.f32 %v721, %v1058
        %1060 = vdwg.mxu0
        %1061 = vmatprep.subr.mxu0 %v974
        %1062 = vmatpush1.msra.mxu0 %v972
        %1063 = vmatprep.subr.mxu0 0.0
        %1064 = vmatpush1.msra.mxu0 0.0
        %1065 = vmatprep.subr.mxu0 0.0
        %1066 = vmatpush1.msra.mxu0 0.0
        %1067 = vmatprep.subr.mxu0 0.0
        %1068 = vmatpush1.msra.mxu0 0.0
        %1069 = vmatprep.subr.mxu0 0.0
        %1070 = vmatpush1.msra.mxu0 0.0
        %1071 = vmatprep.subr.mxu0 0.0
        %1072 = vmatpush1.msra.mxu0 0.0
        %1073 = vmatprep.subr.mxu0 0.0
        %1074 = vmatpush1.msra.mxu0 0.0
        %1075 = vmatprep.subr.mxu0 0.0
        %1076 = vmatpush1.msra.mxu0 0.0
        %1077 = vmatprep.subr.mxu0 0.0
        %1078 = vmatpush1.msra.mxu0 0.0
        %1079 = vmatprep.subr.mxu0 0.0
        %1080 = vmatpush1.msra.mxu0 0.0
        %1081 = vmatprep.subr.mxu0 0.0
        %1082 = vmatpush1.msra.mxu0 0.0
        %1083 = vmatprep.subr.mxu0 0.0
        %1084 = vmatpush1.msra.mxu0 0.0
        %1085 = vmatprep.subr.mxu0 0.0
        %1086 = vmatpush1.msra.mxu0 0.0
        %1087 = vmatprep.subr.mxu0 0.0
        %1088 = vmatpush1.msra.mxu0 0.0
        %1089 = vmatprep.subr.mxu0 0.0
        %1090 = vmatpush1.msra.mxu0 0.0
        %1091 = vmatprep.subr.mxu0 0.0
        %1092 = vmatpush1.msra.mxu0 0.0
        %1093 = vmatprep.subr.mxu0 0.0
        %1094 = vmatpush1.msra.mxu0 0.0
        %1095 = vmatprep.subr.mxu0 0.0
        %1096 = vmatpush1.msra.mxu0 0.0
        %1097 = vmatprep.subr.mxu0 0.0
        %1098 = vmatpush1.msra.mxu0 0.0
        %1099 = vmatprep.subr.mxu0 0.0
        %1100 = vmatpush1.msra.mxu0 0.0
        %1101 = vmatprep.subr.mxu0 0.0
        %1102 = vmatpush1.msra.mxu0 0.0
        %1103 = vmatprep.subr.mxu0 0.0
        %1104 = vmatpush1.msra.mxu0 0.0
        %1105 = vmatprep.subr.mxu0 0.0
        %1106 = vmatpush1.msra.mxu0 0.0
        %1107 = vmatprep.subr.mxu0 0.0
        %1108 = vmatpush1.msra.mxu0 0.0
        %1109 = vmatprep.subr.mxu0 0.0
        %1110 = vmatpush1.msra.mxu0 0.0
        %1111 = vmatprep.subr.mxu0 0.0
        %1112 = vmatpush1.msra.mxu0 0.0
        %1113 = vmatprep.subr.mxu0 0.0
        %1114 = vmatpush1.msra.mxu0 0.0
        %1115 = vmatprep.subr.mxu0 0.0
        %1116 = vmatpush1.msra.mxu0 0.0
        %1117 = vmatprep.subr.mxu0 0.0
        %1118 = vmatpush1.msra.mxu0 0.0
        %1119 = vmatprep.subr.mxu0 0.0
        %1120 = vmatpush1.msra.mxu0 0.0
        %1121 = vmatprep.subr.mxu0 0.0
        %1122 = vmatpush1.msra.mxu0 0.0
        %1123 = vmatprep.subr.mxu0 0.0
        %1124 = vmatpush1.msra.mxu0 0.0
        %1125 = vmatprep.mubr.f32.mxu0 0.0
        %1126 = vmatmul.mubr.f32.gmra.mrb[0].mxu0 %v963
        %v1127 = vpop.f32.mrb[0].mxu0
        %v1128 = vadd.f32 %v790, %v1127
        %v1129 = vpop.f32.mrb[0].mxu0
        %v1130 = vadd.f32 %v792, %v1129
        %1131 = vmatprep.mubr.f32.mxu0 0.0
        %1132 = vmatmul.mubr.f32.gmra.mrb[0].mxu0 %v966
        %v1133 = vpop.f32.mrb[0].mxu0
        %v1134 = vadd.f32 %v796, %v1133
        %v1135 = vpop.f32.mrb[0].mxu0
        %v1136 = vadd.f32 %v798, %v1135
        %1137 = vdwg.mxu0
        %1138 = vmatprep.subr.mxu0 %v978
        %1139 = vmatpush1.msra.mxu0 %v976
        %1140 = vmatprep.subr.mxu0 0.0
        %1141 = vmatpush1.msra.mxu0 0.0
        %1142 = vmatprep.subr.mxu0 0.0
        %1143 = vmatpush1.msra.mxu0 0.0
        %1144 = vmatprep.subr.mxu0 0.0
        %1145 = vmatpush1.msra.mxu0 0.0
        %1146 = vmatprep.subr.mxu0 0.0
        %1147 = vmatpush1.msra.mxu0 0.0
        %1148 = vmatprep.subr.mxu0 0.0
        %1149 = vmatpush1.msra.mxu0 0.0
        %1150 = vmatprep.subr.mxu0 0.0
        %1151 = vmatpush1.msra.mxu0 0.0
        %1152 = vmatprep.subr.mxu0 0.0
        %1153 = vmatpush1.msra.mxu0 0.0
        %1154 = vmatprep.subr.mxu0 0.0
        %1155 = vmatpush1.msra.mxu0 0.0
        %1156 = vmatprep.subr.mxu0 0.0
        %1157 = vmatpush1.msra.mxu0 0.0
        %1158 = vmatprep.subr.mxu0 0.0
        %1159 = vmatpush1.msra.mxu0 0.0
        %1160 = vmatprep.subr.mxu0 0.0
        %1161 = vmatpush1.msra.mxu0 0.0
        %1162 = vmatprep.subr.mxu0 0.0
        %1163 = vmatpush1.msra.mxu0 0.0
        %1164 = vmatprep.subr.mxu0 0.0
        %1165 = vmatpush1.msra.mxu0 0.0
        %1166 = vmatprep.subr.mxu0 0.0
        %1167 = vmatpush1.msra.mxu0 0.0
        %1168 = vmatprep.subr.mxu0 0.0
        %1169 = vmatpush1.msra.mxu0 0.0
        %1170 = vmatprep.subr.mxu0 0.0
        %1171 = vmatpush1.msra.mxu0 0.0
        %1172 = vmatprep.subr.mxu0 0.0
        %1173 = vmatpush1.msra.mxu0 0.0
        %1174 = vmatprep.subr.mxu0 0.0
        %1175 = vmatpush1.msra.mxu0 0.0
        %1176 = vmatprep.subr.mxu0 0.0
        %1177 = vmatpush1.msra.mxu0 0.0
        %1178 = vmatprep.subr.mxu0 0.0
        %1179 = vmatpush1.msra.mxu0 0.0
        %1180 = vmatprep.subr.mxu0 0.0
        %1181 = vmatpush1.msra.mxu0 0.0
        %1182 = vmatprep.subr.mxu0 0.0
        %1183 = vmatpush1.msra.mxu0 0.0
        %1184 = vmatprep.subr.mxu0 0.0
        %1185 = vmatpush1.msra.mxu0 0.0
        %1186 = vmatprep.subr.mxu0 0.0
        %1187 = vmatpush1.msra.mxu0 0.0
        %1188 = vmatprep.subr.mxu0 0.0
        %1189 = vmatpush1.msra.mxu0 0.0
        %1190 = vmatprep.subr.mxu0 0.0
        %1191 = vmatpush1.msra.mxu0 0.0
        %1192 = vmatprep.subr.mxu0 0.0
        %1193 = vmatpush1.msra.mxu0 0.0
        %1194 = vmatprep.subr.mxu0 0.0
        %1195 = vmatpush1.msra.mxu0 0.0
        %1196 = vmatprep.subr.mxu0 0.0
        %1197 = vmatpush1.msra.mxu0 0.0
        %1198 = vmatprep.subr.mxu0 0.0
        %1199 = vmatpush1.msra.mxu0 0.0
        %1200 = vmatprep.subr.mxu0 0.0
        %1201 = vmatpush1.msra.mxu0 0.0
        %1202 = vmatprep.mubr.f32.mxu0 0.0
        %1203 = vmatmul.mubr.f32.gmra.mrb[0].mxu0 %v963
        %v1204 = vpop.f32.mrb[0].mxu0
        %v1205 = vadd.f32 %v867, %v1204
        %v1206 = vpop.f32.mrb[0].mxu0
        %v1207 = vadd.f32 %v869, %v1206
        %1208 = vmatprep.mubr.f32.mxu0 0.0
        %1209 = vmatmul.mubr.f32.gmra.mrb[0].mxu0 %v966
        %v1210 = vpop.f32.mrb[0].mxu0
        %v1211 = vadd.f32 %v873, %v1210
        %v1212 = vpop.f32.mrb[0].mxu0
        %v1213 = vadd.f32 %v875, %v1212
        %1214 = vdwg.mxu0
        %1215 = vmatprep.subr.mxu0 %v982
        %1216 = vmatpush1.msra.mxu0 %v980
        %1217 = vmatprep.subr.mxu0 0.0
        %1218 = vmatpush1.msra.mxu0 0.0
        %1219 = vmatprep.subr.mxu0 0.0
        %1220 = vmatpush1.msra.mxu0 0.0
        %1221 = vmatprep.subr.mxu0 0.0
        %1222 = vmatpush1.msra.mxu0 0.0
        %1223 = vmatprep.subr.mxu0 0.0
        %1224 = vmatpush1.msra.mxu0 0.0
        %1225 = vmatprep.subr.mxu0 0.0
        %1226 = vmatpush1.msra.mxu0 0.0
        %1227 = vmatprep.subr.mxu0 0.0
        %1228 = vmatpush1.msra.mxu0 0.0
        %1229 = vmatprep.subr.mxu0 0.0
        %1230 = vmatpush1.msra.mxu0 0.0
        %1231 = vmatprep.subr.mxu0 0.0
        %1232 = vmatpush1.msra.mxu0 0.0
        %1233 = vmatprep.subr.mxu0 0.0
        %1234 = vmatpush1.msra.mxu0 0.0
        %1235 = vmatprep.subr.mxu0 0.0
        %1236 = vmatpush1.msra.mxu0 0.0
        %1237 = vmatprep.subr.mxu0 0.0
        %1238 = vmatpush1.msra.mxu0 0.0
        %1239 = vmatprep.subr.mxu0 0.0
        %1240 = vmatpush1.msra.mxu0 0.0
        %1241 = vmatprep.subr.mxu0 0.0
        %1242 = vmatpush1.msra.mxu0 0.0
        %1243 = vmatprep.subr.mxu0 0.0
        %1244 = vmatpush1.msra.mxu0 0.0
        %1245 = vmatprep.subr.mxu0 0.0
        %1246 = vmatpush1.msra.mxu0 0.0
        %1247 = vmatprep.subr.mxu0 0.0
        %1248 = vmatpush1.msra.mxu0 0.0
        %1249 = vmatprep.subr.mxu0 0.0
        %1250 = vmatpush1.msra.mxu0 0.0
        %1251 = vmatprep.subr.mxu0 0.0
        %1252 = vmatpush1.msra.mxu0 0.0
        %1253 = vmatprep.subr.mxu0 0.0
        %1254 = vmatpush1.msra.mxu0 0.0
        %1255 = vmatprep.subr.mxu0 0.0
        %1256 = vmatpush1.msra.mxu0 0.0
        %1257 = vmatprep.subr.mxu0 0.0
        %1258 = vmatpush1.msra.mxu0 0.0
        %1259 = vmatprep.subr.mxu0 0.0
        %1260 = vmatpush1.msra.mxu0 0.0
        %1261 = vmatprep.subr.mxu0 0.0
        %1262 = vmatpush1.msra.mxu0 0.0
        %1263 = vmatprep.subr.mxu0 0.0
        %1264 = vmatpush1.msra.mxu0 0.0
        %1265 = vmatprep.subr.mxu0 0.0
        %1266 = vmatpush1.msra.mxu0 0.0
        %1267 = vmatprep.subr.mxu0 0.0
        %1268 = vmatpush1.msra.mxu0 0.0
        %1269 = vmatprep.subr.mxu0 0.0
        %1270 = vmatpush1.msra.mxu0 0.0
        %1271 = vmatprep.subr.mxu0 0.0
        %1272 = vmatpush1.msra.mxu0 0.0
        %1273 = vmatprep.subr.mxu0 0.0
        %1274 = vmatpush1.msra.mxu0 0.0
        %1275 = vmatprep.subr.mxu0 0.0
        %1276 = vmatpush1.msra.mxu0 0.0
        %1277 = vmatprep.subr.mxu0 0.0
        %1278 = vmatpush1.msra.mxu0 0.0
        %1279 = vmatprep.mubr.f32.mxu0 0.0
        %1280 = vmatmul.mubr.f32.gmra.mrb[0].mxu0 %v963
        %v1281 = vpop.f32.mrb[0].mxu0
        %v1282 = vadd.f32 %v944, %v1281
        %v1283 = vpop.f32.mrb[0].mxu0
        %v1284 = vadd.f32 %v946, %v1283
        %1285 = vmatprep.mubr.f32.mxu0 0.0
        %1286 = vmatmul.mubr.f32.gmra.mrb[0].mxu0 %v966
        %v1287 = vpop.f32.mrb[0].mxu0
        %v1288 = vadd.f32 %v950, %v1287
        %v1289 = vpop.f32.mrb[0].mxu0
        %v1290 = vadd.f32 %v952, %v1289
        %1291 = vdwg.mxu0
        %v1292 = vld [vmem:[%s7] sm:$0xff]
        %v1293 = vld [vmem:[%s7 + $0x8] sm:$0xff]
        %1295 = vset.pattern.permute.xlu0 0
        %1296 = vperm.xlu0 %1295, %v1292
        %v1297 = vpop.permute.xlu0 %1296
        %1300 = vset.pattern.permute.xlu0 0
        %1301 = vperm.xlu0 %1300, %v1293
        %v1302 = vpop.permute.xlu0 %1301
        %v1304 = vadd.f32 %v1051, %v1297
        %v1305 = vadd.f32 %v1053, %v1297
        %v1306 = vadd.f32 %v1128, %v1297
        %v1307 = vadd.f32 %v1130, %v1297
        %v1308 = vadd.f32 %v1205, %v1297
        %v1309 = vadd.f32 %v1207, %v1297
        %v1310 = vadd.f32 %v1282, %v1297
        %v1311 = vadd.f32 %v1284, %v1297
        %v1312 = vadd.f32 %v1057, %v1302
        %v1313 = vadd.f32 %v1059, %v1302
        %v1314 = vadd.f32 %v1134, %v1302
        %v1315 = vadd.f32 %v1136, %v1302
        %v1316 = vadd.f32 %v1211, %v1302
        %v1317 = vadd.f32 %v1213, %v1302
        %v1318 = vadd.f32 %v1288, %v1302
        %v1319 = vadd.f32 %v1290, %v1302
        %v1320 = vld [vmem:[%s3] sm:$0xff]
        %v1321 = vld [vmem:[%s3 + $0x8] sm:$0xff]
        %v1322 = vld [vmem:[%s4] sm:$0xff]
        %v1323 = vld [vmem:[%s4 + $0x8] sm:$0xff]
        %v1324 = vld [vmem:[%s8] sm:$0xff]
        %v1325 = vld [vmem:[%s8 + $0x8] sm:$0xff]
        %v1326 = vld [vmem:[%s9] sm:$0xff]
        %v1327 = vld [vmem:[%s9 + $0x8] sm:$0xff]
        loop: start=0, step=1, limit=32
        $region88: #{hardvfe_forward.1} parent=75 // loop_pre_header
          _
        $region89: #{hardvfe_forward.1} parent=75 // loop_header
          %s1329 = sphi 0, %s1333
          %p1330 = scmp.ge.s32.totalorder %s1329, 32
          %v1334 = vphi 0.0, %v2029
          %v1335 = vphi 0.0, %v2030
          %v1336 = vphi 0.0, %v2031
          %v1337 = vphi 0.0, %v2032
          %v1338 = vphi 0.0, %v2033
          %v1339 = vphi 0.0, %v2034
          %v1340 = vphi 0.0, %v2035
          %v1341 = vphi 0.0, %v2036
          %v1342 = vphi 0.0, %v2037
          %v1343 = vphi 0.0, %v2038
          %v1344 = vphi 0.0, %v2039
          %v1345 = vphi 0.0, %v2040
          %v1346 = vphi 0.0, %v2041
          %v1347 = vphi 0.0, %v2042
          %v1348 = vphi 0.0, %v2043
          %v1349 = vphi 0.0, %v2044
        $region90: #{hardvfe_forward.1} parent=75 // loop_header_branch
          %1332 = sbr.rel (%p1330) target = $region94
        $region91: #{hardvfe_forward.1} parent=75 // loop_body
          %s1350 = smul.u32 %s1329, 8
          %s1351 = smul.addr %s1350, 4
          %s1352 = scalar_lea.vmem %s462, %s1351 [#allocation3]
          %v1353 = vld [vmem:[%s1352] sm:$0xff]
          %v1354 = vld [vmem:[%s1352 + $0x8] sm:$0xff]
          %v1355 = vld [vmem:[%s1352 + $0x10] sm:$0xff]
          %v1356 = vld [vmem:[%s1352 + $0x18] sm:$0xff]
          %v1357 = vmul.f32 %v1353, %v1353
          %v1358 = vmul.f32 %v1354, %v1354
          %v1359 = vmul.f32 %v1355, %v1355
          %v1360 = vmul.f32 %v1356, %v1356
          %v1365 = vrot.slane %v1357, 5
          %v1366 = vrot.slane %v1365, 4
          %v1367 = vrot.slane %v1358, 5
          %v1368 = vrot.slane %v1367, 4
          %v1369 = vrot.slane %v1359, 5
          %v1370 = vrot.slane %v1369, 4
          %v1371 = vrot.slane %v1360, 5
          %v1372 = vrot.slane %v1371, 4
          %v1377 = vadd.f32 %v1357, %v1366
          %v1378 = vadd.f32 %v1358, %v1368
          %v1379 = vadd.f32 %v1359, %v1370
          %v1380 = vadd.f32 %v1360, %v1372
          %v1381 = vrot.slane %v1357, 6
          %v1382 = vrot.slane %v1381, 4
          %v1383 = vrot.slane %v1358, 6
          %v1384 = vrot.slane %v1383, 4
          %v1385 = vrot.slane %v1359, 6
          %v1386 = vrot.slane %v1385, 4
          %v1387 = vrot.slane %v1360, 6
          %v1388 = vrot.slane %v1387, 4
          %v1393 = vadd.f32 %v1377, %v1382
          %v1394 = vadd.f32 %v1378, %v1384
          %v1395 = vadd.f32 %v1379, %v1386
          %v1396 = vadd.f32 %v1380, %v1388
          %v1397 = vrsqrt.pop %v1393
          %v1398 = vmul.f32 %v1393, %v1397
          %vm1399 = vcmp.eq.f32.partialorder %v1393, inf
          %v1400 = vsel %vm1399, %v1393, %v1398
          %vm1401 = vcmp.eq.f32.partialorder %v1393, 0.0
          %v1402 = vand.u32 %v1393, 2147483648
          %v1403 = vsel %vm1401, %v1402, %v1400
          %v1404 = vrsqrt.pop %v1394
          %v1405 = vmul.f32 %v1394, %v1404
          %vm1406 = vcmp.eq.f32.partialorder %v1394, inf
          %v1407 = vsel %vm1406, %v1394, %v1405
          %vm1408 = vcmp.eq.f32.partialorder %v1394, 0.0
          %v1409 = vand.u32 %v1394, 2147483648
          %v1410 = vsel %vm1408, %v1409, %v1407
          %v1411 = vrsqrt.pop %v1395
          %v1412 = vmul.f32 %v1395, %v1411
          %vm1413 = vcmp.eq.f32.partialorder %v1395, inf
          %v1414 = vsel %vm1413, %v1395, %v1412
          %vm1415 = vcmp.eq.f32.partialorder %v1395, 0.0
          %v1416 = vand.u32 %v1395, 2147483648
          %v1417 = vsel %vm1415, %v1416, %v1414
          %v1418 = vrsqrt.pop %v1396
          %v1419 = vmul.f32 %v1396, %v1418
          %vm1420 = vcmp.eq.f32.partialorder %v1396, inf
          %v1421 = vsel %vm1420, %v1396, %v1419
          %vm1422 = vcmp.eq.f32.partialorder %v1396, 0.0
          %v1423 = vand.u32 %v1396, 2147483648
          %v1424 = vsel %vm1422, %v1423, %v1421
          %1426 = vset.pattern.permute.xlu0 0
          %1427 = vperm.xlu0 %1426, %v1322
          %v1428 = vpop.permute.xlu0 %1427
          %1431 = vset.pattern.permute.xlu0 0
          %1432 = vperm.xlu0 %1431, %v1323
          %v1433 = vpop.permute.xlu0 %1432
          %v1439 = vlaneseq
          %v1440 = vshrl.u32 %v1439, 7
          %v1441 = vsub.s32 0, %v1440
          %v1442 = vrot.slane %v1403, %v1441
          %v1443 = vlaneseq
          %v1444 = vshrl.u32 %v1443, 7
          %v1445 = vsub.s32 4, %v1444
          %v1446 = vrot.slane %v1403, %v1445
          %v1447 = vlaneseq
          %v1448 = vshrl.u32 %v1447, 7
          %v1449 = vsub.s32 0, %v1448
          %v1450 = vrot.slane %v1410, %v1449
          %v1451 = vlaneseq
          %v1452 = vshrl.u32 %v1451, 7
          %v1453 = vsub.s32 4, %v1452
          %v1454 = vrot.slane %v1410, %v1453
          %v1455 = vlaneseq
          %v1456 = vshrl.u32 %v1455, 7
          %v1457 = vsub.s32 0, %v1456
          %v1458 = vrot.slane %v1417, %v1457
          %v1459 = vlaneseq
          %v1460 = vshrl.u32 %v1459, 7
          %v1461 = vsub.s32 4, %v1460
          %v1462 = vrot.slane %v1417, %v1461
          %v1463 = vlaneseq
          %v1464 = vshrl.u32 %v1463, 7
          %v1465 = vsub.s32 0, %v1464
          %v1466 = vrot.slane %v1424, %v1465
          %v1467 = vlaneseq
          %v1468 = vshrl.u32 %v1467, 7
          %v1469 = vsub.s32 4, %v1468
          %v1470 = vrot.slane %v1424, %v1469
          %v1479 = vlaneseq
          %v1480 = vshrl.u32 %v1479, 7
          %v1481 = vsub.s32 0, %v1480
          %v1482 = vrot.slane %v1442, %v1481
          %v1483 = vlaneseq
          %v1484 = vshrl.u32 %v1483, 7
          %v1485 = vsub.s32 0, %v1484
          %v1486 = vrot.slane %v1446, %v1485
          %v1487 = vlaneseq
          %v1488 = vshrl.u32 %v1487, 7
          %v1489 = vsub.s32 0, %v1488
          %v1490 = vrot.slane %v1450, %v1489
          %v1491 = vlaneseq
          %v1492 = vshrl.u32 %v1491, 7
          %v1493 = vsub.s32 0, %v1492
          %v1494 = vrot.slane %v1454, %v1493
          %v1495 = vlaneseq
          %v1496 = vshrl.u32 %v1495, 7
          %v1497 = vsub.s32 0, %v1496
          %v1498 = vrot.slane %v1458, %v1497
          %v1499 = vlaneseq
          %v1500 = vshrl.u32 %v1499, 7
          %v1501 = vsub.s32 0, %v1500
          %v1502 = vrot.slane %v1462, %v1501
          %v1503 = vlaneseq
          %v1504 = vshrl.u32 %v1503, 7
          %v1505 = vsub.s32 0, %v1504
          %v1506 = vrot.slane %v1466, %v1505
          %v1507 = vlaneseq
          %v1508 = vshrl.u32 %v1507, 7
          %v1509 = vsub.s32 0, %v1508
          %v1510 = vrot.slane %v1470, %v1509
          %v1511 = vmul.f32 %v1428, %v1482
          %v1512 = vmul.f32 %v1428, %v1486
          %v1513 = vmul.f32 %v1428, %v1490
          %v1514 = vmul.f32 %v1428, %v1494
          %v1515 = vmul.f32 %v1428, %v1498
          %v1516 = vmul.f32 %v1428, %v1502
          %v1517 = vmul.f32 %v1428, %v1506
          %v1518 = vmul.f32 %v1428, %v1510
          %v1519 = vmul.f32 %v1433, %v1482
          %v1520 = vmul.f32 %v1433, %v1486
          %v1521 = vmul.f32 %v1433, %v1490
          %v1522 = vmul.f32 %v1433, %v1494
          %v1523 = vmul.f32 %v1433, %v1498
          %v1524 = vmul.f32 %v1433, %v1502
          %v1525 = vmul.f32 %v1433, %v1506
          %v1526 = vmul.f32 %v1433, %v1510
          %v1531 = vcombine.high %v1353, %v1353
          %v1532 = vcombine.high %v1354, %v1354
          %v1533 = vcombine.high %v1355, %v1355
          %v1534 = vcombine.high %v1356, %v1356
          %v1536 = vsel %vm622, %v1320, 0
          %v1539 = vsel %vm622, %v1321, 0
          %v1541 = vsel %vm629, %v1353, 0
          %v1543 = vsel %vm629, %v1531, 0
          %v1545 = vsel %vm629, %v1354, 0
          %v1547 = vsel %vm629, %v1532, 0
          %v1549 = vsel %vm629, %v1355, 0
          %v1551 = vsel %vm629, %v1533, 0
          %v1553 = vsel %vm629, %v1356, 0
          %v1555 = vsel %vm629, %v1534, 0
          %1557 = vmatprep.subr.mxu0 %v1543
          %1558 = vmatpush1.msra.mxu0 %v1541
          %1559 = vmatprep.subr.mxu0 0.0
          %1560 = vmatpush1.msra.mxu0 0.0
          %1561 = vmatprep.subr.mxu0 0.0
          %1562 = vmatpush1.msra.mxu0 0.0
          %1563 = vmatprep.subr.mxu0 0.0
          %1564 = vmatpush1.msra.mxu0 0.0
          %1565 = vmatprep.subr.mxu0 0.0
          %1566 = vmatpush1.msra.mxu0 0.0
          %1567 = vmatprep.subr.mxu0 0.0
          %1568 = vmatpush1.msra.mxu0 0.0
          %1569 = vmatprep.subr.mxu0 0.0
          %1570 = vmatpush1.msra.mxu0 0.0
          %1571 = vmatprep.subr.mxu0 0.0
          %1572 = vmatpush1.msra.mxu0 0.0
          %1573 = vmatprep.subr.mxu0 0.0
          %1574 = vmatpush1.msra.mxu0 0.0
          %1575 = vmatprep.subr.mxu0 0.0
          %1576 = vmatpush1.msra.mxu0 0.0
          %1577 = vmatprep.subr.mxu0 0.0
          %1578 = vmatpush1.msra.mxu0 0.0
          %1579 = vmatprep.subr.mxu0 0.0
          %1580 = vmatpush1.msra.mxu0 0.0
          %1581 = vmatprep.subr.mxu0 0.0
          %1582 = vmatpush1.msra.mxu0 0.0
          %1583 = vmatprep.subr.mxu0 0.0
          %1584 = vmatpush1.msra.mxu0 0.0
          %1585 = vmatprep.subr.mxu0 0.0
          %1586 = vmatpush1.msra.mxu0 0.0
          %1587 = vmatprep.subr.mxu0 0.0
          %1588 = vmatpush1.msra.mxu0 0.0
          %1589 = vmatprep.subr.mxu0 0.0
          %1590 = vmatpush1.msra.mxu0 0.0
          %1591 = vmatprep.subr.mxu0 0.0
          %1592 = vmatpush1.msra.mxu0 0.0
          %1593 = vmatprep.subr.mxu0 0.0
          %1594 = vmatpush1.msra.mxu0 0.0
          %1595 = vmatprep.subr.mxu0 0.0
          %1596 = vmatpush1.msra.mxu0 0.0
          %1597 = vmatprep.subr.mxu0 0.0
          %1598 = vmatpush1.msra.mxu0 0.0
          %1599 = vmatprep.subr.mxu0 0.0
          %1600 = vmatpush1.msra.mxu0 0.0
          %1601 = vmatprep.subr.mxu0 0.0
          %1602 = vmatpush1.msra.mxu0 0.0
          %1603 = vmatprep.subr.mxu0 0.0
          %1604 = vmatpush1.msra.mxu0 0.0
          %1605 = vmatprep.subr.mxu0 0.0
          %1606 = vmatpush1.msra.mxu0 0.0
          %1607 = vmatprep.subr.mxu0 0.0
          %1608 = vmatpush1.msra.mxu0 0.0
          %1609 = vmatprep.subr.mxu0 0.0
          %1610 = vmatpush1.msra.mxu0 0.0
          %1611 = vmatprep.subr.mxu0 0.0
          %1612 = vmatpush1.msra.mxu0 0.0
          %1613 = vmatprep.subr.mxu0 0.0
          %1614 = vmatpush1.msra.mxu0 0.0
          %1615 = vmatprep.subr.mxu0 0.0
          %1616 = vmatpush1.msra.mxu0 0.0
          %1617 = vmatprep.subr.mxu0 0.0
          %1618 = vmatpush1.msra.mxu0 0.0
          %1619 = vmatprep.subr.mxu0 0.0
          %1620 = vmatpush1.msra.mxu0 0.0
          %1621 = vmatprep.mubr.f32.mxu0 0.0
          %1622 = vmatmul.mubr.f32.gmra.mrb[0].mxu0 %v1536
          %v1623 = vpop.f32.mrb[0].mxu0
          %v1624 = vadd.f32 %v1511, %v1623
          %v1625 = vpop.f32.mrb[0].mxu0
          %v1626 = vadd.f32 %v1512, %v1625
          %1627 = vmatprep.mubr.f32.mxu0 0.0
          %1628 = vmatmul.mubr.f32.gmra.mrb[0].mxu0 %v1539
          %v1629 = vpop.f32.mrb[0].mxu0
          %v1630 = vadd.f32 %v1519, %v1629
          %v1631 = vpop.f32.mrb[0].mxu0
          %v1632 = vadd.f32 %v1520, %v1631
          %1633 = vdwg.mxu0
          %1634 = vmatprep.subr.mxu0 %v1547
          %1635 = vmatpush1.msra.mxu0 %v1545
          %1636 = vmatprep.subr.mxu0 0.0
          %1637 = vmatpush1.msra.mxu0 0.0
          %1638 = vmatprep.subr.mxu0 0.0
          %1639 = vmatpush1.msra.mxu0 0.0
          %1640 = vmatprep.subr.mxu0 0.0
          %1641 = vmatpush1.msra.mxu0 0.0
          %1642 = vmatprep.subr.mxu0 0.0
          %1643 = vmatpush1.msra.mxu0 0.0
          %1644 = vmatprep.subr.mxu0 0.0
          %1645 = vmatpush1.msra.mxu0 0.0
          %1646 = vmatprep.subr.mxu0 0.0
          %1647 = vmatpush1.msra.mxu0 0.0
          %1648 = vmatprep.subr.mxu0 0.0
          %1649 = vmatpush1.msra.mxu0 0.0
          %1650 = vmatprep.subr.mxu0 0.0
          %1651 = vmatpush1.msra.mxu0 0.0
          %1652 = vmatprep.subr.mxu0 0.0
          %1653 = vmatpush1.msra.mxu0 0.0
          %1654 = vmatprep.subr.mxu0 0.0
          %1655 = vmatpush1.msra.mxu0 0.0
          %1656 = vmatprep.subr.mxu0 0.0
          %1657 = vmatpush1.msra.mxu0 0.0
          %1658 = vmatprep.subr.mxu0 0.0
          %1659 = vmatpush1.msra.mxu0 0.0
          %1660 = vmatprep.subr.mxu0 0.0
          %1661 = vmatpush1.msra.mxu0 0.0
          %1662 = vmatprep.subr.mxu0 0.0
          %1663 = vmatpush1.msra.mxu0 0.0
          %1664 = vmatprep.subr.mxu0 0.0
          %1665 = vmatpush1.msra.mxu0 0.0
          %1666 = vmatprep.subr.mxu0 0.0
          %1667 = vmatpush1.msra.mxu0 0.0
          %1668 = vmatprep.subr.mxu0 0.0
          %1669 = vmatpush1.msra.mxu0 0.0
          %1670 = vmatprep.subr.mxu0 0.0
          %1671 = vmatpush1.msra.mxu0 0.0
          %1672 = vmatprep.subr.mxu0 0.0
          %1673 = vmatpush1.msra.mxu0 0.0
          %1674 = vmatprep.subr.mxu0 0.0
          %1675 = vmatpush1.msra.mxu0 0.0
          %1676 = vmatprep.subr.mxu0 0.0
          %1677 = vmatpush1.msra.mxu0 0.0
          %1678 = vmatprep.subr.mxu0 0.0
          %1679 = vmatpush1.msra.mxu0 0.0
          %1680 = vmatprep.subr.mxu0 0.0
          %1681 = vmatpush1.msra.mxu0 0.0
          %1682 = vmatprep.subr.mxu0 0.0
          %1683 = vmatpush1.msra.mxu0 0.0
          %1684 = vmatprep.subr.mxu0 0.0
          %1685 = vmatpush1.msra.mxu0 0.0
          %1686 = vmatprep.subr.mxu0 0.0
          %1687 = vmatpush1.msra.mxu0 0.0
          %1688 = vmatprep.subr.mxu0 0.0
          %1689 = vmatpush1.msra.mxu0 0.0
          %1690 = vmatprep.subr.mxu0 0.0
          %1691 = vmatpush1.msra.mxu0 0.0
          %1692 = vmatprep.subr.mxu0 0.0
          %1693 = vmatpush1.msra.mxu0 0.0
          %1694 = vmatprep.subr.mxu0 0.0
          %1695 = vmatpush1.msra.mxu0 0.0
          %1696 = vmatprep.subr.mxu0 0.0
          %1697 = vmatpush1.msra.mxu0 0.0
          %1698 = vmatprep.mubr.f32.mxu0 0.0
          %1699 = vmatmul.mubr.f32.gmra.mrb[0].mxu0 %v1536
          %v1700 = vpop.f32.mrb[0].mxu0
          %v1701 = vadd.f32 %v1513, %v1700
          %v1702 = vpop.f32.mrb[0].mxu0
          %v1703 = vadd.f32 %v1514, %v1702
          %1704 = vmatprep.mubr.f32.mxu0 0.0
          %1705 = vmatmul.mubr.f32.gmra.mrb[0].mxu0 %v1539
          %v1706 = vpop.f32.mrb[0].mxu0
          %v1707 = vadd.f32 %v1521, %v1706
          %v1708 = vpop.f32.mrb[0].mxu0
          %v1709 = vadd.f32 %v1522, %v1708
          %1710 = vdwg.mxu0
          %1711 = vmatprep.subr.mxu0 %v1551
          %1712 = vmatpush1.msra.mxu0 %v1549
          %1713 = vmatprep.subr.mxu0 0.0
          %1714 = vmatpush1.msra.mxu0 0.0
          %1715 = vmatprep.subr.mxu0 0.0
          %1716 = vmatpush1.msra.mxu0 0.0
          %1717 = vmatprep.subr.mxu0 0.0
          %1718 = vmatpush1.msra.mxu0 0.0
          %1719 = vmatprep.subr.mxu0 0.0
          %1720 = vmatpush1.msra.mxu0 0.0
          %1721 = vmatprep.subr.mxu0 0.0
          %1722 = vmatpush1.msra.mxu0 0.0
          %1723 = vmatprep.subr.mxu0 0.0
          %1724 = vmatpush1.msra.mxu0 0.0
          %1725 = vmatprep.subr.mxu0 0.0
          %1726 = vmatpush1.msra.mxu0 0.0
          %1727 = vmatprep.subr.mxu0 0.0
          %1728 = vmatpush1.msra.mxu0 0.0
          %1729 = vmatprep.subr.mxu0 0.0
          %1730 = vmatpush1.msra.mxu0 0.0
          %1731 = vmatprep.subr.mxu0 0.0
          %1732 = vmatpush1.msra.mxu0 0.0
          %1733 = vmatprep.subr.mxu0 0.0
          %1734 = vmatpush1.msra.mxu0 0.0
          %1735 = vmatprep.subr.mxu0 0.0
          %1736 = vmatpush1.msra.mxu0 0.0
          %1737 = vmatprep.subr.mxu0 0.0
          %1738 = vmatpush1.msra.mxu0 0.0
          %1739 = vmatprep.subr.mxu0 0.0
          %1740 = vmatpush1.msra.mxu0 0.0
          %1741 = vmatprep.subr.mxu0 0.0
          %1742 = vmatpush1.msra.mxu0 0.0
          %1743 = vmatprep.subr.mxu0 0.0
          %1744 = vmatpush1.msra.mxu0 0.0
          %1745 = vmatprep.subr.mxu0 0.0
          %1746 = vmatpush1.msra.mxu0 0.0
          %1747 = vmatprep.subr.mxu0 0.0
          %1748 = vmatpush1.msra.mxu0 0.0
          %1749 = vmatprep.subr.mxu0 0.0
          %1750 = vmatpush1.msra.mxu0 0.0
          %1751 = vmatprep.subr.mxu0 0.0
          %1752 = vmatpush1.msra.mxu0 0.0
          %1753 = vmatprep.subr.mxu0 0.0
          %1754 = vmatpush1.msra.mxu0 0.0
          %1755 = vmatprep.subr.mxu0 0.0
          %1756 = vmatpush1.msra.mxu0 0.0
          %1757 = vmatprep.subr.mxu0 0.0
          %1758 = vmatpush1.msra.mxu0 0.0
          %1759 = vmatprep.subr.mxu0 0.0
          %1760 = vmatpush1.msra.mxu0 0.0
          %1761 = vmatprep.subr.mxu0 0.0
          %1762 = vmatpush1.msra.mxu0 0.0
          %1763 = vmatprep.subr.mxu0 0.0
          %1764 = vmatpush1.msra.mxu0 0.0
          %1765 = vmatprep.subr.mxu0 0.0
          %1766 = vmatpush1.msra.mxu0 0.0
          %1767 = vmatprep.subr.mxu0 0.0
          %1768 = vmatpush1.msra.mxu0 0.0
          %1769 = vmatprep.subr.mxu0 0.0
          %1770 = vmatpush1.msra.mxu0 0.0
          %1771 = vmatprep.subr.mxu0 0.0
          %1772 = vmatpush1.msra.mxu0 0.0
          %1773 = vmatprep.subr.mxu0 0.0
          %1774 = vmatpush1.msra.mxu0 0.0
          %1775 = vmatprep.mubr.f32.mxu0 0.0
          %1776 = vmatmul.mubr.f32.gmra.mrb[0].mxu0 %v1536
          %v1777 = vpop.f32.mrb[0].mxu0
          %v1778 = vadd.f32 %v1515, %v1777
          %v1779 = vpop.f32.mrb[0].mxu0
          %v1780 = vadd.f32 %v1516, %v1779
          %1781 = vmatprep.mubr.f32.mxu0 0.0
          %1782 = vmatmul.mubr.f32.gmra.mrb[0].mxu0 %v1539
          %v1783 = vpop.f32.mrb[0].mxu0
          %v1784 = vadd.f32 %v1523, %v1783
          %v1785 = vpop.f32.mrb[0].mxu0
          %v1786 = vadd.f32 %v1524, %v1785
          %1787 = vdwg.mxu0
          %1788 = vmatprep.subr.mxu0 %v1555
          %1789 = vmatpush1.msra.mxu0 %v1553
          %1790 = vmatprep.subr.mxu0 0.0
          %1791 = vmatpush1.msra.mxu0 0.0
          %1792 = vmatprep.subr.mxu0 0.0
          %1793 = vmatpush1.msra.mxu0 0.0
          %1794 = vmatprep.subr.mxu0 0.0
          %1795 = vmatpush1.msra.mxu0 0.0
          %1796 = vmatprep.subr.mxu0 0.0
          %1797 = vmatpush1.msra.mxu0 0.0
          %1798 = vmatprep.subr.mxu0 0.0
          %1799 = vmatpush1.msra.mxu0 0.0
          %1800 = vmatprep.subr.mxu0 0.0
          %1801 = vmatpush1.msra.mxu0 0.0
          %1802 = vmatprep.subr.mxu0 0.0
          %1803 = vmatpush1.msra.mxu0 0.0
          %1804 = vmatprep.subr.mxu0 0.0
          %1805 = vmatpush1.msra.mxu0 0.0
          %1806 = vmatprep.subr.mxu0 0.0
          %1807 = vmatpush1.msra.mxu0 0.0
          %1808 = vmatprep.subr.mxu0 0.0
          %1809 = vmatpush1.msra.mxu0 0.0
          %1810 = vmatprep.subr.mxu0 0.0
          %1811 = vmatpush1.msra.mxu0 0.0
          %1812 = vmatprep.subr.mxu0 0.0
          %1813 = vmatpush1.msra.mxu0 0.0
          %1814 = vmatprep.subr.mxu0 0.0
          %1815 = vmatpush1.msra.mxu0 0.0
          %1816 = vmatprep.subr.mxu0 0.0
          %1817 = vmatpush1.msra.mxu0 0.0
          %1818 = vmatprep.subr.mxu0 0.0
          %1819 = vmatpush1.msra.mxu0 0.0
          %1820 = vmatprep.subr.mxu0 0.0
          %1821 = vmatpush1.msra.mxu0 0.0
          %1822 = vmatprep.subr.mxu0 0.0
          %1823 = vmatpush1.msra.mxu0 0.0
          %1824 = vmatprep.subr.mxu0 0.0
          %1825 = vmatpush1.msra.mxu0 0.0
          %1826 = vmatprep.subr.mxu0 0.0
          %1827 = vmatpush1.msra.mxu0 0.0
          %1828 = vmatprep.subr.mxu0 0.0
          %1829 = vmatpush1.msra.mxu0 0.0
          %1830 = vmatprep.subr.mxu0 0.0
          %1831 = vmatpush1.msra.mxu0 0.0
          %1832 = vmatprep.subr.mxu0 0.0
          %1833 = vmatpush1.msra.mxu0 0.0
          %1834 = vmatprep.subr.mxu0 0.0
          %1835 = vmatpush1.msra.mxu0 0.0
          %1836 = vmatprep.subr.mxu0 0.0
          %1837 = vmatpush1.msra.mxu0 0.0
          %1838 = vmatprep.subr.mxu0 0.0
          %1839 = vmatpush1.msra.mxu0 0.0
          %1840 = vmatprep.subr.mxu0 0.0
          %1841 = vmatpush1.msra.mxu0 0.0
          %1842 = vmatprep.subr.mxu0 0.0
          %1843 = vmatpush1.msra.mxu0 0.0
          %1844 = vmatprep.subr.mxu0 0.0
          %1845 = vmatpush1.msra.mxu0 0.0
          %1846 = vmatprep.subr.mxu0 0.0
          %1847 = vmatpush1.msra.mxu0 0.0
          %1848 = vmatprep.subr.mxu0 0.0
          %1849 = vmatpush1.msra.mxu0 0.0
          %1850 = vmatprep.subr.mxu0 0.0
          %1851 = vmatpush1.msra.mxu0 0.0
          %1852 = vmatprep.mubr.f32.mxu0 0.0
          %1853 = vmatmul.mubr.f32.gmra.mrb[0].mxu0 %v1536
          %v1854 = vpop.f32.mrb[0].mxu0
          %v1855 = vadd.f32 %v1517, %v1854
          %v1856 = vpop.f32.mrb[0].mxu0
          %v1857 = vadd.f32 %v1518, %v1856
          %1858 = vmatprep.mubr.f32.mxu0 0.0
          %1859 = vmatmul.mubr.f32.gmra.mrb[0].mxu0 %v1539
          %v1860 = vpop.f32.mrb[0].mxu0
          %v1861 = vadd.f32 %v1525, %v1860
          %v1862 = vpop.f32.mrb[0].mxu0
          %v1863 = vadd.f32 %v1526, %v1862
          %1864 = vdwg.mxu0
          %v1865 = vsub.f32 %v1624, %v1304
          %v1866 = vsub.f32 %v1626, %v1305
          %v1867 = vsub.f32 %v1701, %v1306
          %v1868 = vsub.f32 %v1703, %v1307
          %v1869 = vsub.f32 %v1778, %v1308
          %v1870 = vsub.f32 %v1780, %v1309
          %v1871 = vsub.f32 %v1855, %v1310
          %v1872 = vsub.f32 %v1857, %v1311
          %v1873 = vsub.f32 %v1630, %v1312
          %v1874 = vsub.f32 %v1632, %v1313
          %v1875 = vsub.f32 %v1707, %v1314
          %v1876 = vsub.f32 %v1709, %v1315
          %v1877 = vsub.f32 %v1784, %v1316
          %v1878 = vsub.f32 %v1786, %v1317
          %v1879 = vsub.f32 %v1861, %v1318
          %v1880 = vsub.f32 %v1863, %v1319
          %v1881 = vstv %s1329
          %vm1882 = vcmp.gt.s32.totalorder %v529, %v1881
          %v1883 = vsel %vm1882, 1, 0
          %v1884 = vcvt.s32.f32 %v1883
          %v1886 = vlaneseq
          %v1887 = vshrl.u32 %v1886, 7
          %v1888 = vsub.s32 0, %v1887
          %v1889 = vrot.slane %v1884, %v1888
          %v1890 = vlaneseq
          %v1891 = vshrl.u32 %v1890, 7
          %v1892 = vsub.s32 1, %v1891
          %v1893 = vrot.slane %v1884, %v1892
          %v1894 = vlaneseq
          %v1895 = vshrl.u32 %v1894, 7
          %v1896 = vsub.s32 2, %v1895
          %v1897 = vrot.slane %v1884, %v1896
          %v1898 = vlaneseq
          %v1899 = vshrl.u32 %v1898, 7
          %v1900 = vsub.s32 3, %v1899
          %v1901 = vrot.slane %v1884, %v1900
          %v1902 = vlaneseq
          %v1903 = vshrl.u32 %v1902, 7
          %v1904 = vsub.s32 4, %v1903
          %v1905 = vrot.slane %v1884, %v1904
          %v1906 = vlaneseq
          %v1907 = vshrl.u32 %v1906, 7
          %v1908 = vsub.s32 5, %v1907
          %v1909 = vrot.slane %v1884, %v1908
          %v1910 = vlaneseq
          %v1911 = vshrl.u32 %v1910, 7
          %v1912 = vsub.s32 6, %v1911
          %v1913 = vrot.slane %v1884, %v1912
          %v1914 = vlaneseq
          %v1915 = vshrl.u32 %v1914, 7
          %v1916 = vsub.s32 7, %v1915
          %v1917 = vrot.slane %v1884, %v1916
          %v1926 = vmul.f32 %v1865, %v1889
          %v1927 = vmul.f32 %v1866, %v1893
          %v1928 = vmul.f32 %v1867, %v1897
          %v1929 = vmul.f32 %v1868, %v1901
          %v1930 = vmul.f32 %v1869, %v1905
          %v1931 = vmul.f32 %v1870, %v1909
          %v1932 = vmul.f32 %v1871, %v1913
          %v1933 = vmul.f32 %v1872, %v1917
          %v1934 = vmul.f32 %v1873, %v1889
          %v1935 = vmul.f32 %v1874, %v1893
          %v1936 = vmul.f32 %v1875, %v1897
          %v1937 = vmul.f32 %v1876, %v1901
          %v1938 = vmul.f32 %v1877, %v1905
          %v1939 = vmul.f32 %v1878, %v1909
          %v1940 = vmul.f32 %v1879, %v1913
          %v1941 = vmul.f32 %v1880, %v1917
          %1943 = vset.pattern.permute.xlu0 0
          %1944 = vperm.xlu0 %1943, %v1324
          %v1945 = vpop.permute.xlu0 %1944
          %1948 = vset.pattern.permute.xlu0 0
          %1949 = vperm.xlu0 %1948, %v1325
          %v1950 = vpop.permute.xlu0 %1949
          %v1952 = vmul.f32 %v1926, %v1945
          %v1953 = vmul.f32 %v1927, %v1945
          %v1954 = vmul.f32 %v1928, %v1945
          %v1955 = vmul.f32 %v1929, %v1945
          %v1956 = vmul.f32 %v1930, %v1945
          %v1957 = vmul.f32 %v1931, %v1945
          %v1958 = vmul.f32 %v1932, %v1945
          %v1959 = vmul.f32 %v1933, %v1945
          %v1960 = vmul.f32 %v1934, %v1950
          %v1961 = vmul.f32 %v1935, %v1950
          %v1962 = vmul.f32 %v1936, %v1950
          %v1963 = vmul.f32 %v1937, %v1950
          %v1964 = vmul.f32 %v1938, %v1950
          %v1965 = vmul.f32 %v1939, %v1950
          %v1966 = vmul.f32 %v1940, %v1950
          %v1967 = vmul.f32 %v1941, %v1950
          %1969 = vset.pattern.permute.xlu0 0
          %1970 = vperm.xlu0 %1969, %v1326
          %v1971 = vpop.permute.xlu0 %1970
          %1974 = vset.pattern.permute.xlu0 0
          %1975 = vperm.xlu0 %1974, %v1327
          %v1976 = vpop.permute.xlu0 %1975
          %v1978 = vadd.f32 %v1952, %v1971
          %v1979 = vadd.f32 %v1953, %v1971
          %v1980 = vadd.f32 %v1954, %v1971
          %v1981 = vadd.f32 %v1955, %v1971
          %v1982 = vadd.f32 %v1956, %v1971
          %v1983 = vadd.f32 %v1957, %v1971
          %v1984 = vadd.f32 %v1958, %v1971
          %v1985 = vadd.f32 %v1959, %v1971
          %v1986 = vadd.f32 %v1960, %v1976
          %v1987 = vadd.f32 %v1961, %v1976
          %v1988 = vadd.f32 %v1962, %v1976
          %v1989 = vadd.f32 %v1963, %v1976
          %v1990 = vadd.f32 %v1964, %v1976
          %v1991 = vadd.f32 %v1965, %v1976
          %v1992 = vadd.f32 %v1966, %v1976
          %v1993 = vadd.f32 %v1967, %v1976
          %v1994 = vmax.f32 %v1978, 0.0
          %v1995 = vmax.f32 %v1979, 0.0
          %v1996 = vmax.f32 %v1980, 0.0
          %v1997 = vmax.f32 %v1981, 0.0
          %v1998 = vmax.f32 %v1982, 0.0
          %v1999 = vmax.f32 %v1983, 0.0
          %v2000 = vmax.f32 %v1984, 0.0
          %v2001 = vmax.f32 %v1985, 0.0
          %v2002 = vmax.f32 %v1986, 0.0
          %v2003 = vmax.f32 %v1987, 0.0
          %v2004 = vmax.f32 %v1988, 0.0
          %v2005 = vmax.f32 %v1989, 0.0
          %v2006 = vmax.f32 %v1990, 0.0
          %v2007 = vmax.f32 %v1991, 0.0
          %v2008 = vmax.f32 %v1992, 0.0
          %v2009 = vmax.f32 %v1993, 0.0
          %s2010 = smul.u32 %s1329, 16
          %s2011 = smul.addr %s2010, 8
          %s2012 = scalar_lea.vmem [#allocation2], %s2011
          %2013 = vst [vmem:[%s2012] sm:$0xff] %v1994
          %2014 = vst [vmem:[%s2012 + $0x8] sm:$0xff] %v1995
          %2015 = vst [vmem:[%s2012 + $0x10] sm:$0xff] %v1996
          %2016 = vst [vmem:[%s2012 + $0x18] sm:$0xff] %v1997
          %2017 = vst [vmem:[%s2012 + $0x20] sm:$0xff] %v1998
          %2018 = vst [vmem:[%s2012 + $0x28] sm:$0xff] %v1999
          %2019 = vst [vmem:[%s2012 + $0x30] sm:$0xff] %v2000
          %2020 = vst [vmem:[%s2012 + $0x38] sm:$0xff] %v2001
          %2021 = vst [vmem:[%s2012 + $0x40] sm:$0xff] %v2002
          %2022 = vst [vmem:[%s2012 + $0x48] sm:$0xff] %v2003
          %2023 = vst [vmem:[%s2012 + $0x50] sm:$0xff] %v2004
          %2024 = vst [vmem:[%s2012 + $0x58] sm:$0xff] %v2005
          %2025 = vst [vmem:[%s2012 + $0x60] sm:$0xff] %v2006
          %2026 = vst [vmem:[%s2012 + $0x68] sm:$0xff] %v2007
          %2027 = vst [vmem:[%s2012 + $0x70] sm:$0xff] %v2008
          %2028 = vst [vmem:[%s2012 + $0x78] sm:$0xff] %v2009
          %v2029 = vmax.f32 %v1334, %v1994
          %v2030 = vmax.f32 %v1335, %v1995
          %v2031 = vmax.f32 %v1336, %v1996
          %v2032 = vmax.f32 %v1337, %v1997
          %v2033 = vmax.f32 %v1338, %v1998
          %v2034 = vmax.f32 %v1339, %v1999
          %v2035 = vmax.f32 %v1340, %v2000
          %v2036 = vmax.f32 %v1341, %v2001
          %v2037 = vmax.f32 %v1342, %v2002
          %v2038 = vmax.f32 %v1343, %v2003
          %v2039 = vmax.f32 %v1344, %v2004
          %v2040 = vmax.f32 %v1345, %v2005
          %v2041 = vmax.f32 %v1346, %v2006
          %v2042 = vmax.f32 %v1347, %v2007
          %v2043 = vmax.f32 %v1348, %v2008
          %v2044 = vmax.f32 %v1349, %v2009
        $region92: #{hardvfe_forward.1} parent=75 // loop_footer
          %s1333 = sadd.s32 1, %s1329
        $region93: #{hardvfe_forward.1} parent=75 // loop_footer_branch
          %1328 = sbr.rel target = $region89
        $region94: #{hardvfe_forward.1} parent=75 // loop_exit
          _
        %v2045 = vld [vmem:[%s10] sm:$0xff]
        %v2046 = vld [vmem:[%s10 + $0x8] sm:$0xff]
        %v2047 = vld [vmem:[%s10 + $0x10] sm:$0xff]
        %v2048 = vld [vmem:[%s10 + $0x18] sm:$0xff]
        %v2049 = vld [vmem:[%s12] sm:$0xff]
        %v2050 = vld [vmem:[%s12 + $0x8] sm:$0xff]
        %v2051 = vld [vmem:[%s12 + $0x10] sm:$0xff]
        %v2052 = vld [vmem:[%s12 + $0x18] sm:$0xff]
        %v2053 = vld [vmem:[%s13] sm:$0xff]
        %v2054 = vld [vmem:[%s13 + $0x8] sm:$0xff]
        %v2055 = vld [vmem:[%s13 + $0x10] sm:$0xff]
        %v2056 = vld [vmem:[%s13 + $0x18] sm:$0xff]
        %v2057 = vld [vmem:[%s11] sm:$0xff]
        %v2058 = vld [vmem:[%s11 + $0x8] sm:$0xff]
        %v2059 = vld [vmem:[%s11 + $0x10] sm:$0xff]
        %v2060 = vld [vmem:[%s11 + $0x18] sm:$0xff]
        %vm2061 = vcmask 130048
        %v2063 = vsel %vm2061, %v2057, 0
        %v2066 = vsel %vm2061, %v2058, 0
        %v2069 = vsel %vm2061, %v2059, 0
        %v2072 = vsel %vm2061, %v2060, 0
        %2074 = vmatprep.subr.mxu0 %v1335
        %2075 = vmatpush1.msra.mxu0 %v1334
        %2076 = vmatprep.subr.mxu0 %v1343
        %2077 = vmatpush1.msra.mxu0 %v1342
        %2078 = vmatprep.subr.mxu0 0.0
        %2079 = vmatpush1.msra.mxu0 0.0
        %2080 = vmatprep.subr.mxu0 0.0
        %2081 = vmatpush1.msra.mxu0 0.0
        %2082 = vmatprep.subr.mxu0 0.0
        %2083 = vmatpush1.msra.mxu0 0.0
        %2084 = vmatprep.subr.mxu0 0.0
        %2085 = vmatpush1.msra.mxu0 0.0
        %2086 = vmatprep.subr.mxu0 0.0
        %2087 = vmatpush1.msra.mxu0 0.0
        %2088 = vmatprep.subr.mxu0 0.0
        %2089 = vmatpush1.msra.mxu0 0.0
        %2090 = vmatprep.subr.mxu0 0.0
        %2091 = vmatpush1.msra.mxu0 0.0
        %2092 = vmatprep.subr.mxu0 0.0
        %2093 = vmatpush1.msra.mxu0 0.0
        %2094 = vmatprep.subr.mxu0 0.0
        %2095 = vmatpush1.msra.mxu0 0.0
        %2096 = vmatprep.subr.mxu0 0.0
        %2097 = vmatpush1.msra.mxu0 0.0
        %2098 = vmatprep.subr.mxu0 0.0
        %2099 = vmatpush1.msra.mxu0 0.0
        %2100 = vmatprep.subr.mxu0 0.0
        %2101 = vmatpush1.msra.mxu0 0.0
        %2102 = vmatprep.subr.mxu0 0.0
        %2103 = vmatpush1.msra.mxu0 0.0
        %2104 = vmatprep.subr.mxu0 0.0
        %2105 = vmatpush1.msra.mxu0 0.0
        %2106 = vmatprep.subr.mxu0 0.0
        %2107 = vmatpush1.msra.mxu0 0.0
        %2108 = vmatprep.subr.mxu0 0.0
        %2109 = vmatpush1.msra.mxu0 0.0
        %2110 = vmatprep.subr.mxu0 0.0
        %2111 = vmatpush1.msra.mxu0 0.0
        %2112 = vmatprep.subr.mxu0 0.0
        %2113 = vmatpush1.msra.mxu0 0.0
        %2114 = vmatprep.subr.mxu0 0.0
        %2115 = vmatpush1.msra.mxu0 0.0
        %2116 = vmatprep.subr.mxu0 0.0
        %2117 = vmatpush1.msra.mxu0 0.0
        %2118 = vmatprep.subr.mxu0 0.0
        %2119 = vmatpush1.msra.mxu0 0.0
        %2120 = vmatprep.subr.mxu0 0.0
        %2121 = vmatpush1.msra.mxu0 0.0
        %2122 = vmatprep.subr.mxu0 0.0
        %2123 = vmatpush1.msra.mxu0 0.0
        %2124 = vmatprep.subr.mxu0 0.0
        %2125 = vmatpush1.msra.mxu0 0.0
        %2126 = vmatprep.subr.mxu0 0.0
        %2127 = vmatpush1.msra.mxu0 0.0
        %2128 = vmatprep.subr.mxu0 0.0
        %2129 = vmatpush1.msra.mxu0 0.0
        %2130 = vmatprep.subr.mxu0 0.0
        %2131 = vmatpush1.msra.mxu0 0.0
        %2132 = vmatprep.subr.mxu0 0.0
        %2133 = vmatpush1.msra.mxu0 0.0
        %2134 = vmatprep.subr.mxu0 0.0
        %2135 = vmatpush1.msra.mxu0 0.0
        %2136 = vmatprep.subr.mxu0 0.0
        %2137 = vmatpush1.msra.mxu0 0.0
        %2138 = vmatprep.mubr.f32.mxu0 0.0
        %2139 = vmatmul.mubr.f32.gmra.mrb[0].mxu0 %v2063
        %v2140 = vpop.f32.mrb[0].mxu0
        %v2141 = vadd.f32 0.0, %v2140
        %v2142 = vpop.f32.mrb[0].mxu0
        %v2143 = vadd.f32 0.0, %v2142
        %2144 = vmatprep.mubr.f32.mxu0 0.0
        %2145 = vmatmul.mubr.f32.gmra.mrb[0].mxu0 %v2066
        %v2146 = vpop.f32.mrb[0].mxu0
        %v2147 = vadd.f32 0.0, %v2146
        %v2148 = vpop.f32.mrb[0].mxu0
        %v2149 = vadd.f32 0.0, %v2148
        %2150 = vmatprep.mubr.f32.mxu0 0.0
        %2151 = vmatmul.mubr.f32.gmra.mrb[0].mxu0 %v2069
        %v2152 = vpop.f32.mrb[0].mxu0
        %v2153 = vadd.f32 0.0, %v2152
        %v2154 = vpop.f32.mrb[0].mxu0
        %v2155 = vadd.f32 0.0, %v2154
        %2156 = vmatprep.mubr.f32.mxu0 0.0
        %2157 = vmatmul.mubr.f32.gmra.mrb[0].mxu0 %v2072
        %v2158 = vpop.f32.mrb[0].mxu0
        %v2159 = vadd.f32 0.0, %v2158
        %v2160 = vpop.f32.mrb[0].mxu0
        %v2161 = vadd.f32 0.0, %v2160
        %2162 = vdwg.mxu0
        %2163 = vmatprep.subr.mxu0 %v1337
        %2164 = vmatpush1.msra.mxu0 %v1336
        %2165 = vmatprep.subr.mxu0 %v1345
        %2166 = vmatpush1.msra.mxu0 %v1344
        %2167 = vmatprep.subr.mxu0 0.0
        %2168 = vmatpush1.msra.mxu0 0.0
        %2169 = vmatprep.subr.mxu0 0.0
        %2170 = vmatpush1.msra.mxu0 0.0
        %2171 = vmatprep.subr.mxu0 0.0
        %2172 = vmatpush1.msra.mxu0 0.0
        %2173 = vmatprep.subr.mxu0 0.0
        %2174 = vmatpush1.msra.mxu0 0.0
        %2175 = vmatprep.subr.mxu0 0.0
        %2176 = vmatpush1.msra.mxu0 0.0
        %2177 = vmatprep.subr.mxu0 0.0
        %2178 = vmatpush1.msra.mxu0 0.0
        %2179 = vmatprep.subr.mxu0 0.0
        %2180 = vmatpush1.msra.mxu0 0.0
        %2181 = vmatprep.subr.mxu0 0.0
        %2182 = vmatpush1.msra.mxu0 0.0
        %2183 = vmatprep.subr.mxu0 0.0
        %2184 = vmatpush1.msra.mxu0 0.0
        %2185 = vmatprep.subr.mxu0 0.0
        %2186 = vmatpush1.msra.mxu0 0.0
        %2187 = vmatprep.subr.mxu0 0.0
        %2188 = vmatpush1.msra.mxu0 0.0
        %2189 = vmatprep.subr.mxu0 0.0
        %2190 = vmatpush1.msra.mxu0 0.0
        %2191 = vmatprep.subr.mxu0 0.0
        %2192 = vmatpush1.msra.mxu0 0.0
        %2193 = vmatprep.subr.mxu0 0.0
        %2194 = vmatpush1.msra.mxu0 0.0
        %2195 = vmatprep.subr.mxu0 0.0
        %2196 = vmatpush1.msra.mxu0 0.0
        %2197 = vmatprep.subr.mxu0 0.0
        %2198 = vmatpush1.msra.mxu0 0.0
        %2199 = vmatprep.subr.mxu0 0.0
        %2200 = vmatpush1.msra.mxu0 0.0
        %2201 = vmatprep.subr.mxu0 0.0
        %2202 = vmatpush1.msra.mxu0 0.0
        %2203 = vmatprep.subr.mxu0 0.0
        %2204 = vmatpush1.msra.mxu0 0.0
        %2205 = vmatprep.subr.mxu0 0.0
        %2206 = vmatpush1.msra.mxu0 0.0
        %2207 = vmatprep.subr.mxu0 0.0
        %2208 = vmatpush1.msra.mxu0 0.0
        %2209 = vmatprep.subr.mxu0 0.0
        %2210 = vmatpush1.msra.mxu0 0.0
        %2211 = vmatprep.subr.mxu0 0.0
        %2212 = vmatpush1.msra.mxu0 0.0
        %2213 = vmatprep.subr.mxu0 0.0
        %2214 = vmatpush1.msra.mxu0 0.0
        %2215 = vmatprep.subr.mxu0 0.0
        %2216 = vmatpush1.msra.mxu0 0.0
        %2217 = vmatprep.subr.mxu0 0.0
        %2218 = vmatpush1.msra.mxu0 0.0
        %2219 = vmatprep.subr.mxu0 0.0
        %2220 = vmatpush1.msra.mxu0 0.0
        %2221 = vmatprep.subr.mxu0 0.0
        %2222 = vmatpush1.msra.mxu0 0.0
        %2223 = vmatprep.subr.mxu0 0.0
        %2224 = vmatpush1.msra.mxu0 0.0
        %2225 = vmatprep.subr.mxu0 0.0
        %2226 = vmatpush1.msra.mxu0 0.0
        %2227 = vmatprep.mubr.f32.mxu0 0.0
        %2228 = vmatmul.mubr.f32.gmra.mrb[0].mxu0 %v2063
        %v2229 = vpop.f32.mrb[0].mxu0
        %v2230 = vadd.f32 0.0, %v2229
        %v2231 = vpop.f32.mrb[0].mxu0
        %v2232 = vadd.f32 0.0, %v2231
        %2233 = vmatprep.mubr.f32.mxu0 0.0
        %2234 = vmatmul.mubr.f32.gmra.mrb[0].mxu0 %v2066
        %v2235 = vpop.f32.mrb[0].mxu0
        %v2236 = vadd.f32 0.0, %v2235
        %v2237 = vpop.f32.mrb[0].mxu0
        %v2238 = vadd.f32 0.0, %v2237
        %2239 = vmatprep.mubr.f32.mxu0 0.0
        %2240 = vmatmul.mubr.f32.gmra.mrb[0].mxu0 %v2069
        %v2241 = vpop.f32.mrb[0].mxu0
        %v2242 = vadd.f32 0.0, %v2241
        %v2243 = vpop.f32.mrb[0].mxu0
        %v2244 = vadd.f32 0.0, %v2243
        %2245 = vmatprep.mubr.f32.mxu0 0.0
        %2246 = vmatmul.mubr.f32.gmra.mrb[0].mxu0 %v2072
        %v2247 = vpop.f32.mrb[0].mxu0
        %v2248 = vadd.f32 0.0, %v2247
        %v2249 = vpop.f32.mrb[0].mxu0
        %v2250 = vadd.f32 0.0, %v2249
        %2251 = vdwg.mxu0
        %2252 = vmatprep.subr.mxu0 %v1339
        %2253 = vmatpush1.msra.mxu0 %v1338
        %2254 = vmatprep.subr.mxu0 %v1347
        %2255 = vmatpush1.msra.mxu0 %v1346
        %2256 = vmatprep.subr.mxu0 0.0
        %2257 = vmatpush1.msra.mxu0 0.0
        %2258 = vmatprep.subr.mxu0 0.0
        %2259 = vmatpush1.msra.mxu0 0.0
        %2260 = vmatprep.subr.mxu0 0.0
        %2261 = vmatpush1.msra.mxu0 0.0
        %2262 = vmatprep.subr.mxu0 0.0
        %2263 = vmatpush1.msra.mxu0 0.0
        %2264 = vmatprep.subr.mxu0 0.0
        %2265 = vmatpush1.msra.mxu0 0.0
        %2266 = vmatprep.subr.mxu0 0.0
        %2267 = vmatpush1.msra.mxu0 0.0
        %2268 = vmatprep.subr.mxu0 0.0
        %2269 = vmatpush1.msra.mxu0 0.0
        %2270 = vmatprep.subr.mxu0 0.0
        %2271 = vmatpush1.msra.mxu0 0.0
        %2272 = vmatprep.subr.mxu0 0.0
        %2273 = vmatpush1.msra.mxu0 0.0
        %2274 = vmatprep.subr.mxu0 0.0
        %2275 = vmatpush1.msra.mxu0 0.0
        %2276 = vmatprep.subr.mxu0 0.0
        %2277 = vmatpush1.msra.mxu0 0.0
        %2278 = vmatprep.subr.mxu0 0.0
        %2279 = vmatpush1.msra.mxu0 0.0
        %2280 = vmatprep.subr.mxu0 0.0
        %2281 = vmatpush1.msra.mxu0 0.0
        %2282 = vmatprep.subr.mxu0 0.0
        %2283 = vmatpush1.msra.mxu0 0.0
        %2284 = vmatprep.subr.mxu0 0.0
        %2285 = vmatpush1.msra.mxu0 0.0
        %2286 = vmatprep.subr.mxu0 0.0
        %2287 = vmatpush1.msra.mxu0 0.0
        %2288 = vmatprep.subr.mxu0 0.0
        %2289 = vmatpush1.msra.mxu0 0.0
        %2290 = vmatprep.subr.mxu0 0.0
        %2291 = vmatpush1.msra.mxu0 0.0
        %2292 = vmatprep.subr.mxu0 0.0
        %2293 = vmatpush1.msra.mxu0 0.0
        %2294 = vmatprep.subr.mxu0 0.0
        %2295 = vmatpush1.msra.mxu0 0.0
        %2296 = vmatprep.subr.mxu0 0.0
        %2297 = vmatpush1.msra.mxu0 0.0
        %2298 = vmatprep.subr.mxu0 0.0
        %2299 = vmatpush1.msra.mxu0 0.0
        %2300 = vmatprep.subr.mxu0 0.0
        %2301 = vmatpush1.msra.mxu0 0.0
        %2302 = vmatprep.subr.mxu0 0.0
        %2303 = vmatpush1.msra.mxu0 0.0
        %2304 = vmatprep.subr.mxu0 0.0
        %2305 = vmatpush1.msra.mxu0 0.0
        %2306 = vmatprep.subr.mxu0 0.0
        %2307 = vmatpush1.msra.mxu0 0.0
        %2308 = vmatprep.subr.mxu0 0.0
        %2309 = vmatpush1.msra.mxu0 0.0
        %2310 = vmatprep.subr.mxu0 0.0
        %2311 = vmatpush1.msra.mxu0 0.0
        %2312 = vmatprep.subr.mxu0 0.0
        %2313 = vmatpush1.msra.mxu0 0.0
        %2314 = vmatprep.subr.mxu0 0.0
        %2315 = vmatpush1.msra.mxu0 0.0
        %2316 = vmatprep.mubr.f32.mxu0 0.0
        %2317 = vmatmul.mubr.f32.gmra.mrb[0].mxu0 %v2063
        %v2318 = vpop.f32.mrb[0].mxu0
        %v2319 = vadd.f32 0.0, %v2318
        %v2320 = vpop.f32.mrb[0].mxu0
        %v2321 = vadd.f32 0.0, %v2320
        %2322 = vmatprep.mubr.f32.mxu0 0.0
        %2323 = vmatmul.mubr.f32.gmra.mrb[0].mxu0 %v2066
        %v2324 = vpop.f32.mrb[0].mxu0
        %v2325 = vadd.f32 0.0, %v2324
        %v2326 = vpop.f32.mrb[0].mxu0
        %v2327 = vadd.f32 0.0, %v2326
        %2328 = vmatprep.mubr.f32.mxu0 0.0
        %2329 = vmatmul.mubr.f32.gmra.mrb[0].mxu0 %v2069
        %v2330 = vpop.f32.mrb[0].mxu0
        %v2331 = vadd.f32 0.0, %v2330
        %v2332 = vpop.f32.mrb[0].mxu0
        %v2333 = vadd.f32 0.0, %v2332
        %2334 = vmatprep.mubr.f32.mxu0 0.0
        %2335 = vmatmul.mubr.f32.gmra.mrb[0].mxu0 %v2072
        %v2336 = vpop.f32.mrb[0].mxu0
        %v2337 = vadd.f32 0.0, %v2336
        %v2338 = vpop.f32.mrb[0].mxu0
        %v2339 = vadd.f32 0.0, %v2338
        %2340 = vdwg.mxu0
        %2341 = vmatprep.subr.mxu0 %v1341
        %2342 = vmatpush1.msra.mxu0 %v1340
        %2343 = vmatprep.subr.mxu0 %v1349
        %2344 = vmatpush1.msra.mxu0 %v1348
        %2345 = vmatprep.subr.mxu0 0.0
        %2346 = vmatpush1.msra.mxu0 0.0
        %2347 = vmatprep.subr.mxu0 0.0
        %2348 = vmatpush1.msra.mxu0 0.0
        %2349 = vmatprep.subr.mxu0 0.0
        %2350 = vmatpush1.msra.mxu0 0.0
        %2351 = vmatprep.subr.mxu0 0.0
        %2352 = vmatpush1.msra.mxu0 0.0
        %2353 = vmatprep.subr.mxu0 0.0
        %2354 = vmatpush1.msra.mxu0 0.0
        %2355 = vmatprep.subr.mxu0 0.0
        %2356 = vmatpush1.msra.mxu0 0.0
        %2357 = vmatprep.subr.mxu0 0.0
        %2358 = vmatpush1.msra.mxu0 0.0
        %2359 = vmatprep.subr.mxu0 0.0
        %2360 = vmatpush1.msra.mxu0 0.0
        %2361 = vmatprep.subr.mxu0 0.0
        %2362 = vmatpush1.msra.mxu0 0.0
        %2363 = vmatprep.subr.mxu0 0.0
        %2364 = vmatpush1.msra.mxu0 0.0
        %2365 = vmatprep.subr.mxu0 0.0
        %2366 = vmatpush1.msra.mxu0 0.0
        %2367 = vmatprep.subr.mxu0 0.0
        %2368 = vmatpush1.msra.mxu0 0.0
        %2369 = vmatprep.subr.mxu0 0.0
        %2370 = vmatpush1.msra.mxu0 0.0
        %2371 = vmatprep.subr.mxu0 0.0
        %2372 = vmatpush1.msra.mxu0 0.0
        %2373 = vmatprep.subr.mxu0 0.0
        %2374 = vmatpush1.msra.mxu0 0.0
        %2375 = vmatprep.subr.mxu0 0.0
        %2376 = vmatpush1.msra.mxu0 0.0
        %2377 = vmatprep.subr.mxu0 0.0
        %2378 = vmatpush1.msra.mxu0 0.0
        %2379 = vmatprep.subr.mxu0 0.0
        %2380 = vmatpush1.msra.mxu0 0.0
        %2381 = vmatprep.subr.mxu0 0.0
        %2382 = vmatpush1.msra.mxu0 0.0
        %2383 = vmatprep.subr.mxu0 0.0
        %2384 = vmatpush1.msra.mxu0 0.0
        %2385 = vmatprep.subr.mxu0 0.0
        %2386 = vmatpush1.msra.mxu0 0.0
        %2387 = vmatprep.subr.mxu0 0.0
        %2388 = vmatpush1.msra.mxu0 0.0
        %2389 = vmatprep.subr.mxu0 0.0
        %2390 = vmatpush1.msra.mxu0 0.0
        %2391 = vmatprep.subr.mxu0 0.0
        %2392 = vmatpush1.msra.mxu0 0.0
        %2393 = vmatprep.subr.mxu0 0.0
        %2394 = vmatpush1.msra.mxu0 0.0
        %2395 = vmatprep.subr.mxu0 0.0
        %2396 = vmatpush1.msra.mxu0 0.0
        %2397 = vmatprep.subr.mxu0 0.0
        %2398 = vmatpush1.msra.mxu0 0.0
        %2399 = vmatprep.subr.mxu0 0.0
        %2400 = vmatpush1.msra.mxu0 0.0
        %2401 = vmatprep.subr.mxu0 0.0
        %2402 = vmatpush1.msra.mxu0 0.0
        %2403 = vmatprep.subr.mxu0 0.0
        %2404 = vmatpush1.msra.mxu0 0.0
        %2405 = vmatprep.mubr.f32.mxu0 0.0
        %2406 = vmatmul.mubr.f32.gmra.mrb[0].mxu0 %v2063
        %v2407 = vpop.f32.mrb[0].mxu0
        %v2408 = vadd.f32 0.0, %v2407
        %v2409 = vpop.f32.mrb[0].mxu0
        %v2410 = vadd.f32 0.0, %v2409
        %2411 = vmatprep.mubr.f32.mxu0 0.0
        %2412 = vmatmul.mubr.f32.gmra.mrb[0].mxu0 %v2066
        %v2413 = vpop.f32.mrb[0].mxu0
        %v2414 = vadd.f32 0.0, %v2413
        %v2415 = vpop.f32.mrb[0].mxu0
        %v2416 = vadd.f32 0.0, %v2415
        %2417 = vmatprep.mubr.f32.mxu0 0.0
        %2418 = vmatmul.mubr.f32.gmra.mrb[0].mxu0 %v2069
        %v2419 = vpop.f32.mrb[0].mxu0
        %v2420 = vadd.f32 0.0, %v2419
        %v2421 = vpop.f32.mrb[0].mxu0
        %v2422 = vadd.f32 0.0, %v2421
        %2423 = vmatprep.mubr.f32.mxu0 0.0
        %2424 = vmatmul.mubr.f32.gmra.mrb[0].mxu0 %v2072
        %v2425 = vpop.f32.mrb[0].mxu0
        %v2426 = vadd.f32 0.0, %v2425
        %v2427 = vpop.f32.mrb[0].mxu0
        %v2428 = vadd.f32 0.0, %v2427
        %2429 = vdwg.mxu0
        loop: start=0, step=1, limit=32
        $region95: #{hardvfe_forward.1} parent=75 // loop_pre_header
          _
        $region96: #{hardvfe_forward.1} parent=75 // loop_header
          %s2431 = sphi 0, %s2435
          %p2432 = scmp.ge.s32.totalorder %s2431, 32
          %v2436 = vphi 0.0, %v2991
          %v2437 = vphi 0.0, %v2992
          %v2438 = vphi 0.0, %v2993
          %v2439 = vphi 0.0, %v2994
          %v2440 = vphi 0.0, %v2995
          %v2441 = vphi 0.0, %v2996
          %v2442 = vphi 0.0, %v2997
          %v2443 = vphi 0.0, %v2998
          %v2444 = vphi 0.0, %v2999
          %v2445 = vphi 0.0, %v3000
          %v2446 = vphi 0.0, %v3001
          %v2447 = vphi 0.0, %v3002
          %v2448 = vphi 0.0, %v3003
          %v2449 = vphi 0.0, %v3004
          %v2450 = vphi 0.0, %v3005
          %v2451 = vphi 0.0, %v3006
          %v2452 = vphi 0.0, %v3007
          %v2453 = vphi 0.0, %v3008
          %v2454 = vphi 0.0, %v3009
          %v2455 = vphi 0.0, %v3010
          %v2456 = vphi 0.0, %v3011
          %v2457 = vphi 0.0, %v3012
          %v2458 = vphi 0.0, %v3013
          %v2459 = vphi 0.0, %v3014
          %v2460 = vphi 0.0, %v3015
          %v2461 = vphi 0.0, %v3016
          %v2462 = vphi 0.0, %v3017
          %v2463 = vphi 0.0, %v3018
          %v2464 = vphi 0.0, %v3019
          %v2465 = vphi 0.0, %v3020
          %v2466 = vphi 0.0, %v3021
          %v2467 = vphi 0.0, %v3022
        $region97: #{hardvfe_forward.1} parent=75 // loop_header_branch
          %2434 = sbr.rel (%p2432) target = $region101
        $region98: #{hardvfe_forward.1} parent=75 // loop_body
          %s2468 = smul.u32 %s2431, 16
          %s2469 = smul.addr %s2468, 8
          %s2470 = scalar_lea.vmem [#allocation2], %s2469
          %v2471 = vld [vmem:[%s2470] sm:$0xff]
          %v2472 = vld [vmem:[%s2470 + $0x8] sm:$0xff]
          %v2473 = vld [vmem:[%s2470 + $0x10] sm:$0xff]
          %v2474 = vld [vmem:[%s2470 + $0x18] sm:$0xff]
          %v2475 = vld [vmem:[%s2470 + $0x20] sm:$0xff]
          %v2476 = vld [vmem:[%s2470 + $0x28] sm:$0xff]
          %v2477 = vld [vmem:[%s2470 + $0x30] sm:$0xff]
          %v2478 = vld [vmem:[%s2470 + $0x38] sm:$0xff]
          %v2479 = vld [vmem:[%s2470 + $0x40] sm:$0xff]
          %v2480 = vld [vmem:[%s2470 + $0x48] sm:$0xff]
          %v2481 = vld [vmem:[%s2470 + $0x50] sm:$0xff]
          %v2482 = vld [vmem:[%s2470 + $0x58] sm:$0xff]
          %v2483 = vld [vmem:[%s2470 + $0x60] sm:$0xff]
          %v2484 = vld [vmem:[%s2470 + $0x68] sm:$0xff]
          %v2485 = vld [vmem:[%s2470 + $0x70] sm:$0xff]
          %v2486 = vld [vmem:[%s2470 + $0x78] sm:$0xff]
          %v2488 = vsel %vm2061, %v2045, 0
          %v2491 = vsel %vm2061, %v2046, 0
          %v2494 = vsel %vm2061, %v2047, 0
          %v2497 = vsel %vm2061, %v2048, 0
          %2499 = vmatprep.subr.mxu0 %v2472
          %2500 = vmatpush1.msra.mxu0 %v2471
          %2501 = vmatprep.subr.mxu0 %v2480
          %2502 = vmatpush1.msra.mxu0 %v2479
          %2503 = vmatprep.subr.mxu0 0.0
          %2504 = vmatpush1.msra.mxu0 0.0
          %2505 = vmatprep.subr.mxu0 0.0
          %2506 = vmatpush1.msra.mxu0 0.0
          %2507 = vmatprep.subr.mxu0 0.0
          %2508 = vmatpush1.msra.mxu0 0.0
          %2509 = vmatprep.subr.mxu0 0.0
          %2510 = vmatpush1.msra.mxu0 0.0
          %2511 = vmatprep.subr.mxu0 0.0
          %2512 = vmatpush1.msra.mxu0 0.0
          %2513 = vmatprep.subr.mxu0 0.0
          %2514 = vmatpush1.msra.mxu0 0.0
          %2515 = vmatprep.subr.mxu0 0.0
          %2516 = vmatpush1.msra.mxu0 0.0
          %2517 = vmatprep.subr.mxu0 0.0
          %2518 = vmatpush1.msra.mxu0 0.0
          %2519 = vmatprep.subr.mxu0 0.0
          %2520 = vmatpush1.msra.mxu0 0.0
          %2521 = vmatprep.subr.mxu0 0.0
          %2522 = vmatpush1.msra.mxu0 0.0
          %2523 = vmatprep.subr.mxu0 0.0
          %2524 = vmatpush1.msra.mxu0 0.0
          %2525 = vmatprep.subr.mxu0 0.0
          %2526 = vmatpush1.msra.mxu0 0.0
          %2527 = vmatprep.subr.mxu0 0.0
          %2528 = vmatpush1.msra.mxu0 0.0
          %2529 = vmatprep.subr.mxu0 0.0
          %2530 = vmatpush1.msra.mxu0 0.0
          %2531 = vmatprep.subr.mxu0 0.0
          %2532 = vmatpush1.msra.mxu0 0.0
          %2533 = vmatprep.subr.mxu0 0.0
          %2534 = vmatpush1.msra.mxu0 0.0
          %2535 = vmatprep.subr.mxu0 0.0
          %2536 = vmatpush1.msra.mxu0 0.0
          %2537 = vmatprep.subr.mxu0 0.0
          %2538 = vmatpush1.msra.mxu0 0.0
          %2539 = vmatprep.subr.mxu0 0.0
          %2540 = vmatpush1.msra.mxu0 0.0
          %2541 = vmatprep.subr.mxu0 0.0
          %2542 = vmatpush1.msra.mxu0 0.0
          %2543 = vmatprep.subr.mxu0 0.0
          %2544 = vmatpush1.msra.mxu0 0.0
          %2545 = vmatprep.subr.mxu0 0.0
          %2546 = vmatpush1.msra.mxu0 0.0
          %2547 = vmatprep.subr.mxu0 0.0
          %2548 = vmatpush1.msra.mxu0 0.0
          %2549 = vmatprep.subr.mxu0 0.0
          %2550 = vmatpush1.msra.mxu0 0.0
          %2551 = vmatprep.subr.mxu0 0.0
          %2552 = vmatpush1.msra.mxu0 0.0
          %2553 = vmatprep.subr.mxu0 0.0
          %2554 = vmatpush1.msra.mxu0 0.0
          %2555 = vmatprep.subr.mxu0 0.0
          %2556 = vmatpush1.msra.mxu0 0.0
          %2557 = vmatprep.subr.mxu0 0.0
          %2558 = vmatpush1.msra.mxu0 0.0
          %2559 = vmatprep.subr.mxu0 0.0
          %2560 = vmatpush1.msra.mxu0 0.0
          %2561 = vmatprep.subr.mxu0 0.0
          %2562 = vmatpush1.msra.mxu0 0.0
          %2563 = vmatprep.mubr.f32.mxu0 0.0
          %2564 = vmatmul.mubr.f32.gmra.mrb[0].mxu0 %v2488
          %v2565 = vpop.f32.mrb[0].mxu0
          %v2566 = vadd.f32 %v2141, %v2565
          %v2567 = vpop.f32.mrb[0].mxu0
          %v2568 = vadd.f32 %v2143, %v2567
          %2569 = vmatprep.mubr.f32.mxu0 0.0
          %2570 = vmatmul.mubr.f32.gmra.mrb[0].mxu0 %v2491
          %v2571 = vpop.f32.mrb[0].mxu0
          %v2572 = vadd.f32 %v2147, %v2571
          %v2573 = vpop.f32.mrb[0].mxu0
          %v2574 = vadd.f32 %v2149, %v2573
          %2575 = vmatprep.mubr.f32.mxu0 0.0
          %2576 = vmatmul.mubr.f32.gmra.mrb[0].mxu0 %v2494
          %v2577 = vpop.f32.mrb[0].mxu0
          %v2578 = vadd.f32 %v2153, %v2577
          %v2579 = vpop.f32.mrb[0].mxu0
          %v2580 = vadd.f32 %v2155, %v2579
          %2581 = vmatprep.mubr.f32.mxu0 0.0
          %2582 = vmatmul.mubr.f32.gmra.mrb[0].mxu0 %v2497
          %v2583 = vpop.f32.mrb[0].mxu0
          %v2584 = vadd.f32 %v2159, %v2583
          %v2585 = vpop.f32.mrb[0].mxu0
          %v2586 = vadd.f32 %v2161, %v2585
          %2587 = vdwg.mxu0
          %2588 = vmatprep.subr.mxu0 %v2474
          %2589 = vmatpush1.msra.mxu0 %v2473
          %2590 = vmatprep.subr.mxu0 %v2482
          %2591 = vmatpush1.msra.mxu0 %v2481
          %2592 = vmatprep.subr.mxu0 0.0
          %2593 = vmatpush1.msra.mxu0 0.0
          %2594 = vmatprep.subr.mxu0 0.0
          %2595 = vmatpush1.msra.mxu0 0.0
          %2596 = vmatprep.subr.mxu0 0.0
          %2597 = vmatpush1.msra.mxu0 0.0
          %2598 = vmatprep.subr.mxu0 0.0
          %2599 = vmatpush1.msra.mxu0 0.0
          %2600 = vmatprep.subr.mxu0 0.0
          %2601 = vmatpush1.msra.mxu0 0.0
          %2602 = vmatprep.subr.mxu0 0.0
          %2603 = vmatpush1.msra.mxu0 0.0
          %2604 = vmatprep.subr.mxu0 0.0
          %2605 = vmatpush1.msra.mxu0 0.0
          %2606 = vmatprep.subr.mxu0 0.0
          %2607 = vmatpush1.msra.mxu0 0.0
          %2608 = vmatprep.subr.mxu0 0.0
          %2609 = vmatpush1.msra.mxu0 0.0
          %2610 = vmatprep.subr.mxu0 0.0
          %2611 = vmatpush1.msra.mxu0 0.0
          %2612 = vmatprep.subr.mxu0 0.0
          %2613 = vmatpush1.msra.mxu0 0.0
          %2614 = vmatprep.subr.mxu0 0.0
          %2615 = vmatpush1.msra.mxu0 0.0
          %2616 = vmatprep.subr.mxu0 0.0
          %2617 = vmatpush1.msra.mxu0 0.0
          %2618 = vmatprep.subr.mxu0 0.0
          %2619 = vmatpush1.msra.mxu0 0.0
          %2620 = vmatprep.subr.mxu0 0.0
          %2621 = vmatpush1.msra.mxu0 0.0
          %2622 = vmatprep.subr.mxu0 0.0
          %2623 = vmatpush1.msra.mxu0 0.0
          %2624 = vmatprep.subr.mxu0 0.0
          %2625 = vmatpush1.msra.mxu0 0.0
          %2626 = vmatprep.subr.mxu0 0.0
          %2627 = vmatpush1.msra.mxu0 0.0
          %2628 = vmatprep.subr.mxu0 0.0
          %2629 = vmatpush1.msra.mxu0 0.0
          %2630 = vmatprep.subr.mxu0 0.0
          %2631 = vmatpush1.msra.mxu0 0.0
          %2632 = vmatprep.subr.mxu0 0.0
          %2633 = vmatpush1.msra.mxu0 0.0
          %2634 = vmatprep.subr.mxu0 0.0
          %2635 = vmatpush1.msra.mxu0 0.0
          %2636 = vmatprep.subr.mxu0 0.0
          %2637 = vmatpush1.msra.mxu0 0.0
          %2638 = vmatprep.subr.mxu0 0.0
          %2639 = vmatpush1.msra.mxu0 0.0
          %2640 = vmatprep.subr.mxu0 0.0
          %2641 = vmatpush1.msra.mxu0 0.0
          %2642 = vmatprep.subr.mxu0 0.0
          %2643 = vmatpush1.msra.mxu0 0.0
          %2644 = vmatprep.subr.mxu0 0.0
          %2645 = vmatpush1.msra.mxu0 0.0
          %2646 = vmatprep.subr.mxu0 0.0
          %2647 = vmatpush1.msra.mxu0 0.0
          %2648 = vmatprep.subr.mxu0 0.0
          %2649 = vmatpush1.msra.mxu0 0.0
          %2650 = vmatprep.subr.mxu0 0.0
          %2651 = vmatpush1.msra.mxu0 0.0
          %2652 = vmatprep.mubr.f32.mxu0 0.0
          %2653 = vmatmul.mubr.f32.gmra.mrb[0].mxu0 %v2488
          %v2654 = vpop.f32.mrb[0].mxu0
          %v2655 = vadd.f32 %v2230, %v2654
          %v2656 = vpop.f32.mrb[0].mxu0
          %v2657 = vadd.f32 %v2232, %v2656
          %2658 = vmatprep.mubr.f32.mxu0 0.0
          %2659 = vmatmul.mubr.f32.gmra.mrb[0].mxu0 %v2491
          %v2660 = vpop.f32.mrb[0].mxu0
          %v2661 = vadd.f32 %v2236, %v2660
          %v2662 = vpop.f32.mrb[0].mxu0
          %v2663 = vadd.f32 %v2238, %v2662
          %2664 = vmatprep.mubr.f32.mxu0 0.0
          %2665 = vmatmul.mubr.f32.gmra.mrb[0].mxu0 %v2494
          %v2666 = vpop.f32.mrb[0].mxu0
          %v2667 = vadd.f32 %v2242, %v2666
          %v2668 = vpop.f32.mrb[0].mxu0
          %v2669 = vadd.f32 %v2244, %v2668
          %2670 = vmatprep.mubr.f32.mxu0 0.0
          %2671 = vmatmul.mubr.f32.gmra.mrb[0].mxu0 %v2497
          %v2672 = vpop.f32.mrb[0].mxu0
          %v2673 = vadd.f32 %v2248, %v2672
          %v2674 = vpop.f32.mrb[0].mxu0
          %v2675 = vadd.f32 %v2250, %v2674
          %2676 = vdwg.mxu0
          %2677 = vmatprep.subr.mxu0 %v2476
          %2678 = vmatpush1.msra.mxu0 %v2475
          %2679 = vmatprep.subr.mxu0 %v2484
          %2680 = vmatpush1.msra.mxu0 %v2483
          %2681 = vmatprep.subr.mxu0 0.0
          %2682 = vmatpush1.msra.mxu0 0.0
          %2683 = vmatprep.subr.mxu0 0.0
          %2684 = vmatpush1.msra.mxu0 0.0
          %2685 = vmatprep.subr.mxu0 0.0
          %2686 = vmatpush1.msra.mxu0 0.0
          %2687 = vmatprep.subr.mxu0 0.0
          %2688 = vmatpush1.msra.mxu0 0.0
          %2689 = vmatprep.subr.mxu0 0.0
          %2690 = vmatpush1.msra.mxu0 0.0
          %2691 = vmatprep.subr.mxu0 0.0
          %2692 = vmatpush1.msra.mxu0 0.0
          %2693 = vmatprep.subr.mxu0 0.0
          %2694 = vmatpush1.msra.mxu0 0.0
          %2695 = vmatprep.subr.mxu0 0.0
          %2696 = vmatpush1.msra.mxu0 0.0
          %2697 = vmatprep.subr.mxu0 0.0
          %2698 = vmatpush1.msra.mxu0 0.0
          %2699 = vmatprep.subr.mxu0 0.0
          %2700 = vmatpush1.msra.mxu0 0.0
          %2701 = vmatprep.subr.mxu0 0.0
          %2702 = vmatpush1.msra.mxu0 0.0
          %2703 = vmatprep.subr.mxu0 0.0
          %2704 = vmatpush1.msra.mxu0 0.0
          %2705 = vmatprep.subr.mxu0 0.0
          %2706 = vmatpush1.msra.mxu0 0.0
          %2707 = vmatprep.subr.mxu0 0.0
          %2708 = vmatpush1.msra.mxu0 0.0
          %2709 = vmatprep.subr.mxu0 0.0
          %2710 = vmatpush1.msra.mxu0 0.0
          %2711 = vmatprep.subr.mxu0 0.0
          %2712 = vmatpush1.msra.mxu0 0.0
          %2713 = vmatprep.subr.mxu0 0.0
          %2714 = vmatpush1.msra.mxu0 0.0
          %2715 = vmatprep.subr.mxu0 0.0
          %2716 = vmatpush1.msra.mxu0 0.0
          %2717 = vmatprep.subr.mxu0 0.0
          %2718 = vmatpush1.msra.mxu0 0.0
          %2719 = vmatprep.subr.mxu0 0.0
          %2720 = vmatpush1.msra.mxu0 0.0
          %2721 = vmatprep.subr.mxu0 0.0
          %2722 = vmatpush1.msra.mxu0 0.0
          %2723 = vmatprep.subr.mxu0 0.0
          %2724 = vmatpush1.msra.mxu0 0.0
          %2725 = vmatprep.subr.mxu0 0.0
          %2726 = vmatpush1.msra.mxu0 0.0
          %2727 = vmatprep.subr.mxu0 0.0
          %2728 = vmatpush1.msra.mxu0 0.0
          %2729 = vmatprep.subr.mxu0 0.0
          %2730 = vmatpush1.msra.mxu0 0.0
          %2731 = vmatprep.subr.mxu0 0.0
          %2732 = vmatpush1.msra.mxu0 0.0
          %2733 = vmatprep.subr.mxu0 0.0
          %2734 = vmatpush1.msra.mxu0 0.0
          %2735 = vmatprep.subr.mxu0 0.0
          %2736 = vmatpush1.msra.mxu0 0.0
          %2737 = vmatprep.subr.mxu0 0.0
          %2738 = vmatpush1.msra.mxu0 0.0
          %2739 = vmatprep.subr.mxu0 0.0
          %2740 = vmatpush1.msra.mxu0 0.0
          %2741 = vmatprep.mubr.f32.mxu0 0.0
          %2742 = vmatmul.mubr.f32.gmra.mrb[0].mxu0 %v2488
          %v2743 = vpop.f32.mrb[0].mxu0
          %v2744 = vadd.f32 %v2319, %v2743
          %v2745 = vpop.f32.mrb[0].mxu0
          %v2746 = vadd.f32 %v2321, %v2745
          %2747 = vmatprep.mubr.f32.mxu0 0.0
          %2748 = vmatmul.mubr.f32.gmra.mrb[0].mxu0 %v2491
          %v2749 = vpop.f32.mrb[0].mxu0
          %v2750 = vadd.f32 %v2325, %v2749
          %v2751 = vpop.f32.mrb[0].mxu0
          %v2752 = vadd.f32 %v2327, %v2751
          %2753 = vmatprep.mubr.f32.mxu0 0.0
          %2754 = vmatmul.mubr.f32.gmra.mrb[0].mxu0 %v2494
          %v2755 = vpop.f32.mrb[0].mxu0
          %v2756 = vadd.f32 %v2331, %v2755
          %v2757 = vpop.f32.mrb[0].mxu0
          %v2758 = vadd.f32 %v2333, %v2757
          %2759 = vmatprep.mubr.f32.mxu0 0.0
          %2760 = vmatmul.mubr.f32.gmra.mrb[0].mxu0 %v2497
          %v2761 = vpop.f32.mrb[0].mxu0
          %v2762 = vadd.f32 %v2337, %v2761
          %v2763 = vpop.f32.mrb[0].mxu0
          %v2764 = vadd.f32 %v2339, %v2763
          %2765 = vdwg.mxu0
          %2766 = vmatprep.subr.mxu0 %v2478
          %2767 = vmatpush1.msra.mxu0 %v2477
          %2768 = vmatprep.subr.mxu0 %v2486
          %2769 = vmatpush1.msra.mxu0 %v2485
          %2770 = vmatprep.subr.mxu0 0.0
          %2771 = vmatpush1.msra.mxu0 0.0
          %2772 = vmatprep.subr.mxu0 0.0
          %2773 = vmatpush1.msra.mxu0 0.0
          %2774 = vmatprep.subr.mxu0 0.0
          %2775 = vmatpush1.msra.mxu0 0.0
          %2776 = vmatprep.subr.mxu0 0.0
          %2777 = vmatpush1.msra.mxu0 0.0
          %2778 = vmatprep.subr.mxu0 0.0
          %2779 = vmatpush1.msra.mxu0 0.0
          %2780 = vmatprep.subr.mxu0 0.0
          %2781 = vmatpush1.msra.mxu0 0.0
          %2782 = vmatprep.subr.mxu0 0.0
          %2783 = vmatpush1.msra.mxu0 0.0
          %2784 = vmatprep.subr.mxu0 0.0
          %2785 = vmatpush1.msra.mxu0 0.0
          %2786 = vmatprep.subr.mxu0 0.0
          %2787 = vmatpush1.msra.mxu0 0.0
          %2788 = vmatprep.subr.mxu0 0.0
          %2789 = vmatpush1.msra.mxu0 0.0
          %2790 = vmatprep.subr.mxu0 0.0
          %2791 = vmatpush1.msra.mxu0 0.0
          %2792 = vmatprep.subr.mxu0 0.0
          %2793 = vmatpush1.msra.mxu0 0.0
          %2794 = vmatprep.subr.mxu0 0.0
          %2795 = vmatpush1.msra.mxu0 0.0
          %2796 = vmatprep.subr.mxu0 0.0
          %2797 = vmatpush1.msra.mxu0 0.0
          %2798 = vmatprep.subr.mxu0 0.0
          %2799 = vmatpush1.msra.mxu0 0.0
          %2800 = vmatprep.subr.mxu0 0.0
          %2801 = vmatpush1.msra.mxu0 0.0
          %2802 = vmatprep.subr.mxu0 0.0
          %2803 = vmatpush1.msra.mxu0 0.0
          %2804 = vmatprep.subr.mxu0 0.0
          %2805 = vmatpush1.msra.mxu0 0.0
          %2806 = vmatprep.subr.mxu0 0.0
          %2807 = vmatpush1.msra.mxu0 0.0
          %2808 = vmatprep.subr.mxu0 0.0
          %2809 = vmatpush1.msra.mxu0 0.0
          %2810 = vmatprep.subr.mxu0 0.0
          %2811 = vmatpush1.msra.mxu0 0.0
          %2812 = vmatprep.subr.mxu0 0.0
          %2813 = vmatpush1.msra.mxu0 0.0
          %2814 = vmatprep.subr.mxu0 0.0
          %2815 = vmatpush1.msra.mxu0 0.0
          %2816 = vmatprep.subr.mxu0 0.0
          %2817 = vmatpush1.msra.mxu0 0.0
          %2818 = vmatprep.subr.mxu0 0.0
          %2819 = vmatpush1.msra.mxu0 0.0
          %2820 = vmatprep.subr.mxu0 0.0
          %2821 = vmatpush1.msra.mxu0 0.0
          %2822 = vmatprep.subr.mxu0 0.0
          %2823 = vmatpush1.msra.mxu0 0.0
          %2824 = vmatprep.subr.mxu0 0.0
          %2825 = vmatpush1.msra.mxu0 0.0
          %2826 = vmatprep.subr.mxu0 0.0
          %2827 = vmatpush1.msra.mxu0 0.0
          %2828 = vmatprep.subr.mxu0 0.0
          %2829 = vmatpush1.msra.mxu0 0.0
          %2830 = vmatprep.mubr.f32.mxu0 0.0
          %2831 = vmatmul.mubr.f32.gmra.mrb[0].mxu0 %v2488
          %v2832 = vpop.f32.mrb[0].mxu0
          %v2833 = vadd.f32 %v2408, %v2832
          %v2834 = vpop.f32.mrb[0].mxu0
          %v2835 = vadd.f32 %v2410, %v2834
          %2836 = vmatprep.mubr.f32.mxu0 0.0
          %2837 = vmatmul.mubr.f32.gmra.mrb[0].mxu0 %v2491
          %v2838 = vpop.f32.mrb[0].mxu0
          %v2839 = vadd.f32 %v2414, %v2838
          %v2840 = vpop.f32.mrb[0].mxu0
          %v2841 = vadd.f32 %v2416, %v2840
          %2842 = vmatprep.mubr.f32.mxu0 0.0
          %2843 = vmatmul.mubr.f32.gmra.mrb[0].mxu0 %v2494
          %v2844 = vpop.f32.mrb[0].mxu0
          %v2845 = vadd.f32 %v2420, %v2844
          %v2846 = vpop.f32.mrb[0].mxu0
          %v2847 = vadd.f32 %v2422, %v2846
          %2848 = vmatprep.mubr.f32.mxu0 0.0
          %2849 = vmatmul.mubr.f32.gmra.mrb[0].mxu0 %v2497
          %v2850 = vpop.f32.mrb[0].mxu0
          %v2851 = vadd.f32 %v2426, %v2850
          %v2852 = vpop.f32.mrb[0].mxu0
          %v2853 = vadd.f32 %v2428, %v2852
          %2854 = vdwg.mxu0
          %2856 = vset.pattern.permute.xlu0 0
          %2857 = vperm.xlu0 %2856, %v2049
          %v2858 = vpop.permute.xlu0 %2857
          %2861 = vset.pattern.permute.xlu0 0
          %2862 = vperm.xlu0 %2861, %v2050
          %v2863 = vpop.permute.xlu0 %2862
          %2866 = vset.pattern.permute.xlu0 0
          %2867 = vperm.xlu0 %2866, %v2051
          %v2868 = vpop.permute.xlu0 %2867
          %2871 = vset.pattern.permute.xlu0 0
          %2872 = vperm.xlu0 %2871, %v2052
          %v2873 = vpop.permute.xlu0 %2872
          %v2875 = vmul.f32 %v2566, %v2858
          %v2876 = vmul.f32 %v2568, %v2858
          %v2877 = vmul.f32 %v2655, %v2858
          %v2878 = vmul.f32 %v2657, %v2858
          %v2879 = vmul.f32 %v2744, %v2858
          %v2880 = vmul.f32 %v2746, %v2858
          %v2881 = vmul.f32 %v2833, %v2858
          %v2882 = vmul.f32 %v2835, %v2858
          %v2883 = vmul.f32 %v2572, %v2863
          %v2884 = vmul.f32 %v2574, %v2863
          %v2885 = vmul.f32 %v2661, %v2863
          %v2886 = vmul.f32 %v2663, %v2863
          %v2887 = vmul.f32 %v2750, %v2863
          %v2888 = vmul.f32 %v2752, %v2863
          %v2889 = vmul.f32 %v2839, %v2863
          %v2890 = vmul.f32 %v2841, %v2863
          %v2891 = vmul.f32 %v2578, %v2868
          %v2892 = vmul.f32 %v2580, %v2868
          %v2893 = vmul.f32 %v2667, %v2868
          %v2894 = vmul.f32 %v2669, %v2868
          %v2895 = vmul.f32 %v2756, %v2868
          %v2896 = vmul.f32 %v2758, %v2868
          %v2897 = vmul.f32 %v2845, %v2868
          %v2898 = vmul.f32 %v2847, %v2868
          %v2899 = vmul.f32 %v2584, %v2873
          %v2900 = vmul.f32 %v2586, %v2873
          %v2901 = vmul.f32 %v2673, %v2873
          %v2902 = vmul.f32 %v2675, %v2873
          %v2903 = vmul.f32 %v2762, %v2873
          %v2904 = vmul.f32 %v2764, %v2873
          %v2905 = vmul.f32 %v2851, %v2873
          %v2906 = vmul.f32 %v2853, %v2873
          %2908 = vset.pattern.permute.xlu0 0
          %2909 = vperm.xlu0 %2908, %v2053
          %v2910 = vpop.permute.xlu0 %2909
          %2913 = vset.pattern.permute.xlu0 0
          %2914 = vperm.xlu0 %2913, %v2054
          %v2915 = vpop.permute.xlu0 %2914
          %2918 = vset.pattern.permute.xlu0 0
          %2919 = vperm.xlu0 %2918, %v2055
          %v2920 = vpop.permute.xlu0 %2919
          %2923 = vset.pattern.permute.xlu0 0
          %2924 = vperm.xlu0 %2923, %v2056
          %v2925 = vpop.permute.xlu0 %2924
          %v2927 = vadd.f32 %v2875, %v2910
          %v2928 = vadd.f32 %v2876, %v2910
          %v2929 = vadd.f32 %v2877, %v2910
          %v2930 = vadd.f32 %v2878, %v2910
          %v2931 = vadd.f32 %v2879, %v2910
          %v2932 = vadd.f32 %v2880, %v2910
          %v2933 = vadd.f32 %v2881, %v2910
          %v2934 = vadd.f32 %v2882, %v2910
          %v2935 = vadd.f32 %v2883, %v2915
          %v2936 = vadd.f32 %v2884, %v2915
          %v2937 = vadd.f32 %v2885, %v2915
          %v2938 = vadd.f32 %v2886, %v2915
          %v2939 = vadd.f32 %v2887, %v2915
          %v2940 = vadd.f32 %v2888, %v2915
          %v2941 = vadd.f32 %v2889, %v2915
          %v2942 = vadd.f32 %v2890, %v2915
          %v2943 = vadd.f32 %v2891, %v2920
          %v2944 = vadd.f32 %v2892, %v2920
          %v2945 = vadd.f32 %v2893, %v2920
          %v2946 = vadd.f32 %v2894, %v2920
          %v2947 = vadd.f32 %v2895, %v2920
          %v2948 = vadd.f32 %v2896, %v2920
          %v2949 = vadd.f32 %v2897, %v2920
          %v2950 = vadd.f32 %v2898, %v2920
          %v2951 = vadd.f32 %v2899, %v2925
          %v2952 = vadd.f32 %v2900, %v2925
          %v2953 = vadd.f32 %v2901, %v2925
          %v2954 = vadd.f32 %v2902, %v2925
          %v2955 = vadd.f32 %v2903, %v2925
          %v2956 = vadd.f32 %v2904, %v2925
          %v2957 = vadd.f32 %v2905, %v2925
          %v2958 = vadd.f32 %v2906, %v2925
          %v2959 = vmax.f32 %v2927, 0.0
          %v2960 = vmax.f32 %v2928, 0.0
          %v2961 = vmax.f32 %v2929, 0.0
          %v2962 = vmax.f32 %v2930, 0.0
          %v2963 = vmax.f32 %v2931, 0.0
          %v2964 = vmax.f32 %v2932, 0.0
          %v2965 = vmax.f32 %v2933, 0.0
          %v2966 = vmax.f32 %v2934, 0.0
          %v2967 = vmax.f32 %v2935, 0.0
          %v2968 = vmax.f32 %v2936, 0.0
          %v2969 = vmax.f32 %v2937, 0.0
          %v2970 = vmax.f32 %v2938, 0.0
          %v2971 = vmax.f32 %v2939, 0.0
          %v2972 = vmax.f32 %v2940, 0.0
          %v2973 = vmax.f32 %v2941, 0.0
          %v2974 = vmax.f32 %v2942, 0.0
          %v2975 = vmax.f32 %v2943, 0.0
          %v2976 = vmax.f32 %v2944, 0.0
          %v2977 = vmax.f32 %v2945, 0.0
          %v2978 = vmax.f32 %v2946, 0.0
          %v2979 = vmax.f32 %v2947, 0.0
          %v2980 = vmax.f32 %v2948, 0.0
          %v2981 = vmax.f32 %v2949, 0.0
          %v2982 = vmax.f32 %v2950, 0.0
          %v2983 = vmax.f32 %v2951, 0.0
          %v2984 = vmax.f32 %v2952, 0.0
          %v2985 = vmax.f32 %v2953, 0.0
          %v2986 = vmax.f32 %v2954, 0.0
          %v2987 = vmax.f32 %v2955, 0.0
          %v2988 = vmax.f32 %v2956, 0.0
          %v2989 = vmax.f32 %v2957, 0.0
          %v2990 = vmax.f32 %v2958, 0.0
          %v2991 = vmax.f32 %v2436, %v2959
          %v2992 = vmax.f32 %v2437, %v2960
          %v2993 = vmax.f32 %v2438, %v2961
          %v2994 = vmax.f32 %v2439, %v2962
          %v2995 = vmax.f32 %v2440, %v2963
          %v2996 = vmax.f32 %v2441, %v2964
          %v2997 = vmax.f32 %v2442, %v2965
          %v2998 = vmax.f32 %v2443, %v2966
          %v2999 = vmax.f32 %v2444, %v2967
          %v3000 = vmax.f32 %v2445, %v2968
          %v3001 = vmax.f32 %v2446, %v2969
          %v3002 = vmax.f32 %v2447, %v2970
          %v3003 = vmax.f32 %v2448, %v2971
          %v3004 = vmax.f32 %v2449, %v2972
          %v3005 = vmax.f32 %v2450, %v2973
          %v3006 = vmax.f32 %v2451, %v2974
          %v3007 = vmax.f32 %v2452, %v2975
          %v3008 = vmax.f32 %v2453, %v2976
          %v3009 = vmax.f32 %v2454, %v2977
          %v3010 = vmax.f32 %v2455, %v2978
          %v3011 = vmax.f32 %v2456, %v2979
          %v3012 = vmax.f32 %v2457, %v2980
          %v3013 = vmax.f32 %v2458, %v2981
          %v3014 = vmax.f32 %v2459, %v2982
          %v3015 = vmax.f32 %v2460, %v2983
          %v3016 = vmax.f32 %v2461, %v2984
          %v3017 = vmax.f32 %v2462, %v2985
          %v3018 = vmax.f32 %v2463, %v2986
          %v3019 = vmax.f32 %v2464, %v2987
          %v3020 = vmax.f32 %v2465, %v2988
          %v3021 = vmax.f32 %v2466, %v2989
          %v3022 = vmax.f32 %v2467, %v2990
        $region99: #{hardvfe_forward.1} parent=75 // loop_footer
          %s2435 = sadd.s32 1, %s2431
        $region100: #{hardvfe_forward.1} parent=75 // loop_footer_branch
          %2430 = sbr.rel target = $region96
        $region101: #{hardvfe_forward.1} parent=75 // loop_exit
          _
        %3023 = vst [vmem:[%s515] sm:$0xff] %v2436
        %3024 = vst [vmem:[%s515 + $0x8] sm:$0xff] %v2437
        %3025 = vst [vmem:[%s515 + $0x10] sm:$0xff] %v2438
        %3026 = vst [vmem:[%s515 + $0x18] sm:$0xff] %v2439
        %3027 = vst [vmem:[%s515 + $0x20] sm:$0xff] %v2440
        %3028 = vst [vmem:[%s515 + $0x28] sm:$0xff] %v2441
        %3029 = vst [vmem:[%s515 + $0x30] sm:$0xff] %v2442
        %3030 = vst [vmem:[%s515 + $0x38] sm:$0xff] %v2443
        %3031 = vst [vmem:[%s515 + $0x40] sm:$0xff] %v2444
        %3032 = vst [vmem:[%s515 + $0x48] sm:$0xff] %v2445
        %3033 = vst [vmem:[%s515 + $0x50] sm:$0xff] %v2446
        %3034 = vst [vmem:[%s515 + $0x58] sm:$0xff] %v2447
        %3035 = vst [vmem:[%s515 + $0x60] sm:$0xff] %v2448
        %3036 = vst [vmem:[%s515 + $0x68] sm:$0xff] %v2449
        %3037 = vst [vmem:[%s515 + $0x70] sm:$0xff] %v2450
        %3038 = vst [vmem:[%s515 + $0x78] sm:$0xff] %v2451
        %3039 = vst [vmem:[%s515 + $0x80] sm:$0xff] %v2452
        %3040 = vst [vmem:[%s515 + $0x88] sm:$0xff] %v2453
        %3041 = vst [vmem:[%s515 + $0x90] sm:$0xff] %v2454
        %3042 = vst [vmem:[%s515 + $0x98] sm:$0xff] %v2455
        %3043 = vst [vmem:[%s515 + $0xa0] sm:$0xff] %v2456
        %3044 = vst [vmem:[%s515 + $0xa8] sm:$0xff] %v2457
        %3045 = vst [vmem:[%s515 + $0xb0] sm:$0xff] %v2458
        %3046 = vst [vmem:[%s515 + $0xb8] sm:$0xff] %v2459
        %3047 = vst [vmem:[%s515 + $0xc0] sm:$0xff] %v2460
        %3048 = vst [vmem:[%s515 + $0xc8] sm:$0xff] %v2461
        %3049 = vst [vmem:[%s515 + $0xd0] sm:$0xff] %v2462
        %3050 = vst [vmem:[%s515 + $0xd8] sm:$0xff] %v2463
        %3051 = vst [vmem:[%s515 + $0xe0] sm:$0xff] %v2464
        %3052 = vst [vmem:[%s515 + $0xe8] sm:$0xff] %v2465
        %3053 = vst [vmem:[%s515 + $0xf0] sm:$0xff] %v2466
        %3054 = vst [vmem:[%s515 + $0xf8] sm:$0xff] %v2467
        %s3055 = sand.u32 %s348, 1
        %s3056 = scalar_lea.sflag [#allocation5], %s3055
        %s3057 = sand.u32 %s348, 1
        %s3058 = smul.addr %s3057, 256
        %s3059 = scalar_lea.vmem [#allocation6], %s3058
        // Predicated region
        $region102: #{hardvfe_forward.1} parent=75 // pred_check
          %p3060 = pneg %p358
        $region103: #{hardvfe_forward.1} parent=75 // pred_check_branch
          %3062 = sbr.rel (%p3060) target = $region105
        $region104: #{hardvfe_forward.1} parent=75 // pred_region
          %s3063 = smul.u32 8, %s31
          %s3065 = ssub.s32 4096, 4096
          %3066 = vsyncadd %s3056, %s3065
          %s3067 = smul.addr %s3063, 128
          %s3068 = scalar_lea.hbm %s14, %s3067
          %s3069 = sshll.u32 %s3059, 4
          %s3070 = int_to_ptr.vmem [resolvable:$true] %s3069
          %3075 = dma.vmem_to_hbm [thread:$0]  %s3070, 4096, %s3068, %s3056, 1024, 2048, 64
        $region105: #{hardvfe_forward.1} parent=75 // pred_fallthru
          _
      $region76: #{hardvfe_forward.1} parent=5 // pred_fallthru
        _
      %p3076 = scmp.le.s32.totalorder 2, %s26
      // Predicated region
      $region106: #{hardvfe_forward.1} parent=5 // pred_check
        %p3077 = pneg %p3076
      $region107: #{hardvfe_forward.1} parent=5 // pred_check_branch
        %3079 = sbr.rel (%p3077) target = $region109
      $region108: #{hardvfe_forward.1} parent=5 // pred_region
        %s3080 = ssub.s32 %s26, 2
        // Predicated region
        $region110: #{hardvfe_forward.1} parent=108 // pred_check
          %p3081 = pneg %p364
        $region111: #{hardvfe_forward.1} parent=108 // pred_check_branch
          %3083 = sbr.rel (%p3081) target = $region113
        $region112: #{hardvfe_forward.1} parent=108 // pred_region
          %s3084 = sand.u32 %s349, 1
          %s3085 = scalar_lea.sflag [#allocation5], %s3084
          %s3086 = sand.u32 %s349, 1
          %s3087 = smul.addr %s3086, 256
          %s3088 = scalar_lea.vmem [#allocation6], %s3087
          %3089 = dma.done %s3085, 4096
        $region113: #{hardvfe_forward.1} parent=108 // pred_fallthru
          _
      $region109: #{hardvfe_forward.1} parent=5 // pred_fallthru
        _
    $region6: #{hardvfe_forward.1} parent=1 // loop_footer
      %s30 = sadd.s32 1, %s26
    $region7: #{hardvfe_forward.1} parent=1 // loop_footer_branch
      %25 = sbr.rel target = $region3
    $region8: #{hardvfe_forward.1} parent=1 // loop_exit
      _
    %3090 = vsyncpa [#allocation4], 1
    %s3091 = scalar_lea.sflag [#allocation4], 1
    %3092 = vsyncpa %s3091, 1
    %3093 = vsyncpa [#allocation5], 1
    %s3094 = scalar_lea.sflag [#allocation5], 1
    %3095 = vsyncpa %s3094, 1

</llo_original>
